<compile_context>
chip_gen: v5e
topology: v5e:2x2
jax: 0.10.0
libtpu: 0.0.40
codegen_flags: <defaults>
</compile_context>

<pallas_src>
import functools
import math

import numpy as np
import jax
import jax.numpy as jnp
from jax import lax
from jax.experimental import pallas as pl
from jax.experimental.pallas import tpu as pltpu

# ----------------------------- config (small) --------------------------------
B = 2              # batch size
SEQ = 9            # 1 title token + 8 rest   (original: 201 = 1 + 200)
EMB = 32           # emb_dim / raw text dim   (original: 768)
HID = 32           # hidden_dim == output_dim (original: 128)
ATT_DIM = 4        # attention_dim            (original: 16)
NUM_PROP = 6
CAT_PROP = 11
N_USERS = 12
NUM_EXPERT = 5
DOMAIN_NUM = 4
MLP_DIMS = (16,)
NUM_HEADS = 4
DH = HID // NUM_HEADS
SCALE = 1.0 / math.sqrt(DH)
LRELU = 0.01
LN_EPS = 1e-5
SELU_ALPHA = 1.6732632423543772
SELU_SCALE = 1.0507009873554805

assert EMB == HID, "text_w is packed into the (HID,HID) slab"
assert 2 * ATT_DIM * ATT_DIM == HID, "att_w rows are packed into the (HID,HID) slab"
assert HID % NUM_HEADS == 0 and HID % 2 == 0
assert CAT_PROP + NUM_PROP <= HID

# ------------------- packed-slab row-block index constants --------------------
# W_HH (17*HID, HID):
#   0 feat([cat|num])  1 graph  2 text  3..7 layer0{attn_o,ff1,ff2,gcn,ma_o}
#   8..12 layer1{...}  13 it_t  14 it_g  15 att(pad)  16 fin(pad)
I_FEAT, I_GRAPH, I_TEXT, I_L0, I_L1, I_IT_T, I_IT_G, I_ATT, I_FIN = 0, 1, 2, 3, 8, 13, 14, 15, 16
RH_ATTN_O, RH_FF1, RH_FF2, RH_GCN, RH_MA_O = range(5)
# B_H (25, HID):
#   0 feat_b  1 graph_b  2 text_b
#   3..11 layer0{ln1_g,ln1_b,ln2_g,ln2_b,attn_o_b,ff1_b,ff2_b,gcn_b,ma_o_b}
#   12..20 layer1{...}  21 it_t_b  22 it_g_b  23 att_b(pad)  24 fin_b
J_FEAT, J_GRAPH, J_TEXT, J_L0, J_L1, J_IT_T, J_IT_G, J_ATT, J_FIN = 0, 1, 2, 3, 12, 21, 22, 23, 24
RB_LN1G, RB_LN1B, RB_LN2G, RB_LN2B, RB_ATTN_O, RB_FF1, RB_FF2, RB_GCN, RB_MA_O = range(9)
# W_QKV / B_QKV: 0 l0_qkv  1 l0_ma_qkv  2 l1_qkv  3 l1_ma_qkv
Q_QKV, Q_MA = 0, 1

# ========================= in-kernel math helpers =============================

def _dot(a, b):
    return jnp.dot(a, b, preferred_element_type=jnp.float32)


def _dot_t(a, b):  # a @ b.T without an explicit transpose
    return lax.dot_general(a, b, (((1,), (1,)), ((), ())),
                           preferred_element_type=jnp.float32)


def _leaky(x):
    return jnp.where(x >= 0, x, LRELU * x)


def _selu(x):
    return SELU_SCALE * jnp.where(x > 0, x, SELU_ALPHA * (jnp.exp(x) - 1.0))


def _layernorm(x, g, b):
    mu = jnp.mean(x, axis=-1, keepdims=True)
    xc = x - mu
    var = jnp.mean(xc * xc, axis=-1, keepdims=True)
    return xc * lax.rsqrt(var + LN_EPS) * g + b

# ========================= fused expert pipeline kernel =======================

def _expert_kernel(xpad_ref, textf_ref, anorm_ref, mask_ref, pblk_ref, ptblk_ref,
                   whh_ref, wqkv_ref, bh_ref, bqkv_ref,
                   o_ref, txt_ref, auf_ref, *, nbr, batch):
    # static carving of the packed weight slabs (row offsets are 8-aligned)
    def WH(k):
        return whh_ref[k * HID:(k + 1) * HID, :]

    def BH(k):
        return bh_ref[k:k + 1, :]

    def WQ(k):
        return wqkv_ref[k * HID:(k + 1) * HID, :]

    def BQ(k):
        return bqkv_ref[k:k + 1, :]

    anorm = anorm_ref[...]
    mask = mask_ref[...]

    # --- user-feature head: one block-diagonal matmul == [cat_linear|num_linear],
    #     LeakyReLU, then graph_linear (dropouts = identity).
    feat = _leaky(_dot(xpad_ref[...], WH(I_FEAT)) + BH(J_FEAT))        # (N, HID)
    auf_ref[...] = _leaky(_dot(feat, WH(I_GRAPH)) + BH(J_GRAPH))
    # --- text head
    txt_ref[...] = _dot(textf_ref[...], WH(I_TEXT)) + BH(J_TEXT)       # (B*S, HID)

    def mha_full(x, wqkv, bqkv, wo, bo):
        """Block-diagonal-masked self-attention over the whole (B*S, HID) slab.
        Concat-heads + single output projection; returns head-averaged probs."""
        n = x.shape[0]
        qkv = _dot(x, wqkv) + bqkv                                     # (n, 3*HID)
        ctx = []
        attn_sum = jnp.zeros((n, n), jnp.float32)
        for h in range(NUM_HEADS):
            lo = h * DH
            s = _dot_t(qkv[:, lo:lo + DH], qkv[:, HID + lo:HID + lo + DH]) * SCALE + mask
            e = jnp.exp(s - jnp.max(s, axis=-1, keepdims=True))
            p = e * pl.reciprocal(jnp.sum(e, axis=-1, keepdims=True), approx=True)
            attn_sum = attn_sum + p
            ctx.append(_dot(p, qkv[:, 2 * HID + lo:2 * HID + lo + DH]))
        out = _dot(jnp.concatenate(ctx, axis=-1), wo) + bo
        return out, attn_sum * (1.0 / NUM_HEADS)

    def mha_row0(nb_feat, wqkv, bqkv, wo, bo):
        """Self-attention over a tiny (k, HID) neighborhood; only row 0 is needed.
        The per-head softmaxes are fused into one (NUM_HEADS, k) pass."""
        qkv = _dot(nb_feat, wqkv) + bqkv
        s = jnp.concatenate(
            [_dot_t(qkv[0:1, h * DH:(h + 1) * DH],
                    qkv[:, HID + h * DH:HID + (h + 1) * DH])
             for h in range(NUM_HEADS)], axis=0) * SCALE               # (H, k)
        e = jnp.exp(s - jnp.max(s, axis=-1, keepdims=True))
        p = e * pl.reciprocal(jnp.sum(e, axis=-1, keepdims=True), approx=True)
        ctx = jnp.concatenate(
            [_dot(p[h:h + 1, :], qkv[:, 2 * HID + h * DH:2 * HID + (h + 1) * DH])
             for h in range(NUM_HEADS)], axis=-1)                      # (1, HID)
        return _dot(ctx, wo) + bo

    def respective(layer):
        whb = (I_L0, I_L1)[layer]
        bhb = (J_L0, J_L1)[layer]
        qb = 2 * layer
        # LModel: pre-norm transformer block, SELU FFN (all dropouts = identity)
        x = txt_ref[...]
        h = _layernorm(x, BH(bhb + RB_LN1G), BH(bhb + RB_LN1B))
        sa, attn_avg = mha_full(h, WQ(qb + Q_QKV), BQ(qb + Q_QKV),
                                WH(whb + RH_ATTN_O), BH(bhb + RB_ATTN_O))
        x = x + sa
        h2 = _layernorm(x, BH(bhb + RB_LN2G), BH(bhb + RB_LN2B))
        ff = _selu(_dot(h2, WH(whb + RH_FF1)) + BH(bhb + RB_FF1))
        txt_ref[...] = x + _dot(ff, WH(whb + RH_FF2)) + BH(bhb + RB_FF2)

        # TODO(synk): torch_geometric NeighborSampler subgraph sampling replaced by a
        # dense full-graph GCNConv with symmetric normalization (+ self loops).
        auf = auf_ref[...]
        auf_ref[...] = _leaky(_dot(anorm, _dot(auf, WH(whb + RH_GCN))) + BH(bhb + RB_GCN))

        # MultiAttn: sequential per-neighborhood self-attention, update row ui[0]
        for ui in nbr:
            nb_feat = jnp.concatenate([auf_ref[i:i + 1, :] for i in ui], axis=0)
            auf_ref[ui[0]:ui[0] + 1, :] = mha_row0(
                nb_feat, WQ(qb + Q_MA), BQ(qb + Q_MA),
                WH(whb + RH_MA_O), BH(bhb + RB_MA_O))

        # TODO(synk): FixedPooling class not provided; assumed adaptive average
        # pooling, expressed as a block-diagonal pooling-matrix sandwich.
        return _dot(_dot(pblk_ref[...], attn_avg), ptblk_ref[...])     # (B*A, B*A)

    pooled0 = respective(0)

    # --- InteractLayer (InteractModel_0); dropout = identity ------------------
    user_idx = [ui[0] for ui in nbr]
    g_ini = jnp.concatenate([auf_ref[i:i + 1, :] for i in user_idx], axis=0)   # (B, HID)
    t_ini = jnp.concatenate([txt_ref[b * SEQ:b * SEQ + 1, :] for b in range(batch)],
                            axis=0)                                            # (B, HID)
    t_tmp = _dot(t_ini, WH(I_IT_T)) + BH(J_IT_T)
    a = jnp.sum(t_ini * t_tmp, axis=-1, keepdims=True)
    b_ = jnp.sum(g_ini * t_ini, axis=-1, keepdims=True)
    m = jnp.maximum(a, b_)
    ea, eb = jnp.exp(a - m), jnp.exp(b_ - m)
    inv = pl.reciprocal(ea + eb, approx=True)
    t_new = (ea * inv) * t_ini + (eb * inv) * g_ini
    g_tmp = _dot(g_ini, WH(I_IT_G)) + BH(J_IT_G)
    c = jnp.sum(g_tmp * g_ini, axis=-1, keepdims=True)
    d = jnp.sum(g_ini * t_ini, axis=-1, keepdims=True)
    m2 = jnp.maximum(c, d)
    ec, ed = jnp.exp(c - m2), jnp.exp(d - m2)
    inv2 = pl.reciprocal(ec + ed, approx=True)
    g_new = (ec * inv2) * g_ini + (ed * inv2) * t_ini
    for b in range(batch):
        txt_ref[b * SEQ:b * SEQ + 1, :] = t_new[b:b + 1, :]
        auf_ref[user_idx[b]:user_idx[b] + 1, :] = g_new[b:b + 1, :]

    pooled1 = respective(1)

    # --- attention_linear on flattened pooled maps + final_linear --------------
    # (title_linear of the reference is dead code and omitted.)
    rows = []
    for b in range(batch):
        flats = []
        for pooled in (pooled0, pooled1):
            flats.append(jnp.concatenate(
                [pooled[b * ATT_DIM + i:b * ATT_DIM + i + 1,
                        b * ATT_DIM:(b + 1) * ATT_DIM] for i in range(ATT_DIM)],
                axis=-1))                                              # (1, A*A)
        rows.append(jnp.concatenate(flats, axis=-1))                   # (1, 2*A*A == HID)
    att_in = jnp.concatenate(rows, axis=0)                             # (B, HID)
    av = _leaky(_dot(att_in, WH(I_ATT)) + BH(J_ATT))                   # cols >= HID//3 stay 0
    fin = _dot(av, WH(I_FIN)) + BH(J_FIN)                              # (B, HID)
    # lane-dense writeback: (1, B*HID)
    o_ref[...] = jnp.concatenate([fin[b:b + 1, :] for b in range(batch)], axis=-1)

# ============================ pallas_call wrapper =============================

def expert_forward(packed, text_flat, xpad, a_norm, attn_mask, p_blk, pt_blk, nbr):
    batch = text_flat.shape[0] // SEQ
    kernel = functools.partial(_expert_kernel, nbr=nbr, batch=batch)

    def shared(arr):
        nd = arr.ndim
        return pl.BlockSpec(arr.shape, lambda e, _nd=nd: (0,) * _nd)

    def stacked(arr):
        nd = arr.ndim - 1
        return pl.BlockSpec((None,) + arr.shape[1:],
                            lambda e, _nd=nd: (e,) + (0,) * _nd)

    in_specs = [shared(xpad), shared(text_flat), shared(a_norm), shared(attn_mask),
                shared(p_blk), shared(pt_blk),
                stacked(packed["w_hh"]), stacked(packed["w_qkv"]),
                stacked(packed["b_h"]), stacked(packed["b_qkv"])]
    return pl.pallas_call(
        kernel,
        out_shape=jax.ShapeDtypeStruct((NUM_EXPERT, 1, batch * HID), jnp.float32),
        grid=(NUM_EXPERT,),
        in_specs=in_specs,
        out_specs=pl.BlockSpec((None, 1, batch * HID), lambda e: (e, 0, 0)),
        scratch_shapes=[pltpu.VMEM((batch * SEQ, HID), jnp.float32),   # text
                        pltpu.VMEM((N_USERS, HID), jnp.float32)],      # all_user_feature
        compiler_params=pltpu.CompilerParams(
            dimension_semantics=("parallel",),
            vmem_limit_bytes=32 * 1024 * 1024),
    )(xpad, text_flat, a_norm, attn_mask, p_blk, pt_blk,
      packed["w_hh"], packed["w_qkv"], packed["b_h"], packed["b_qkv"])


def model_forward(head_params, packed, text, num_feature, cat_feature, a_norm,
                  attn_mask, p_blk, pt_blk, *, category, user_neighbor_index):
    batch = text.shape[0]
    assert len(user_neighbor_index) == batch and len(category) == batch
    text_flat = text.reshape(batch * SEQ, EMB)
    xpad = jnp.zeros((N_USERS, HID), jnp.float32)
    xpad = xpad.at[:, :CAT_PROP].set(cat_feature)
    xpad = xpad.at[:, CAT_PROP:CAT_PROP + NUM_PROP].set(num_feature)

    expert_raw = expert_forward(packed, text_flat, xpad, a_norm, attn_mask,
                                p_blk, pt_blk, user_neighbor_index)
    expert_out = expert_raw.reshape(NUM_EXPERT, batch, HID)

    # --- gate + mixture + classifier: tiny, stays in plain jnp (one XLA fusion)
    domain_embedding = jnp.stack(
        [head_params["domain_embedding"][c] for c in category], axis=0)        # (B, EMB)
    one_user_tweet = jnp.mean(text, axis=1)                                    # (B, EMB)
    gate_in = jnp.concatenate([domain_embedding, one_user_tweet], axis=-1)
    g = jax.nn.relu(gate_in @ head_params["gate0"]["w"] + head_params["gate0"]["b"])
    g = g @ head_params["gate1"]["w"] + head_params["gate1"]["b"]
    gate = jax.nn.softmax(g, axis=1)                                           # (B, E)
    shared_feature = jnp.einsum("ebh,be->bh", expert_out, gate)
    # TODO(synk): MLP classifier class not provided; assumed Linear->ReLU stack
    # + Linear(->1), dropout = identity.
    h = shared_feature
    for lp in head_params["clf_hidden"]:
        h = jax.nn.relu(h @ lp["w"] + lp["b"])
    out = h @ head_params["clf_out"]["w"] + head_params["clf_out"]["b"]
    return jax.nn.sigmoid(out)[:, 0]

# ============================ parameter initialization ========================

class KeyGen:
    def __init__(self, seed):
        self.key = jax.random.PRNGKey(seed)

    def __call__(self):
        self.key, sub = jax.random.split(self.key)
        return sub


def init_linear(kg, fan_in, fan_out, n=None):
    bound = 1.0 / math.sqrt(fan_in)
    shape_w = (fan_in, fan_out) if n is None else (n, fan_in, fan_out)
    shape_b = (1, fan_out) if n is None else (n, 1, fan_out)
    w = jax.random.uniform(kg(), shape_w, jnp.float32, -bound, bound)
    b = jax.random.uniform(kg(), shape_b, jnp.float32, -bound, bound)
    return w, b


def init_experts(kg, n):
    p = {}

    def lin(name, fi, fo):
        p[name + "_w"], p[name + "_b"] = init_linear(kg, fi, fo, n=n)

    lin("num", NUM_PROP, HID // 2)
    lin("cat", CAT_PROP, HID // 2)
    lin("graph", HID, HID)
    lin("text", EMB, HID)
    for r in range(2):
        pref = f"m{r}_"
        p[pref + "ln1_g"] = jnp.ones((n, 1, HID), jnp.float32)
        p[pref + "ln1_b"] = jnp.zeros((n, 1, HID), jnp.float32)
        p[pref + "ln2_g"] = jnp.ones((n, 1, HID), jnp.float32)
        p[pref + "ln2_b"] = jnp.zeros((n, 1, HID), jnp.float32)
        lin(pref + "qkv", HID, 3 * HID)
        lin(pref + "attn_o", HID, HID)
        lin(pref + "ff1", HID, HID)
        lin(pref + "ff2", HID, HID)
        lin(pref + "gcn", HID, HID)
        lin(pref + "ma_qkv", HID, 3 * HID)
        lin(pref + "ma_o", HID, HID)
    lin("it_t", HID, HID)
    lin("it_g", HID, HID)
    lin("att", ATT_DIM * ATT_DIM * 2, HID // 3)
    lin("fin", HID // 3, HID)
    # NOTE: Model_2 / InteractModel_1 / user_feature_linear / output / title_linear
    # exist in the reference __init__ but never affect the forward output.
    return p


def pack_experts(p):
    """Pack the ~50 per-expert weight leaves into 4 stacked slabs so each grid
    step issues 4 weight DMAs instead of ~50."""
    n = NUM_EXPERT
    half = HID // 2
    f2 = 2 * ATT_DIM * ATT_DIM
    third = HID // 3
    # block-diagonal [cat_linear | num_linear] acting on [cat_feature|num_feature|0]
    feat_w = jnp.zeros((n, HID, HID), jnp.float32)
    feat_w = feat_w.at[:, :CAT_PROP, :half].set(p["cat_w"])
    feat_w = feat_w.at[:, CAT_PROP:CAT_PROP + NUM_PROP, half:].set(p["num_w"])
    feat_b = jnp.concatenate([p["cat_b"], p["num_b"]], axis=-1)
    # zero-padded attention_linear / final_linear (padding columns/rows are inert)
    att_w = jnp.zeros((n, HID, HID), jnp.float32).at[:, :f2, :third].set(p["att_w"])
    att_b = jnp.zeros((n, 1, HID), jnp.float32).at[:, :, :third].set(p["att_b"])
    fin_w = jnp.zeros((n, HID, HID), jnp.float32).at[:, :third, :].set(p["fin_w"])

    hh = [feat_w, p["graph_w"], p["text_w"]]
    bh = [feat_b, p["graph_b"], p["text_b"]]
    qk, bq = [], []
    for r in range(2):
        pre = f"m{r}_"
        hh += [p[pre + "attn_o_w"], p[pre + "ff1_w"], p[pre + "ff2_w"],
               p[pre + "gcn_w"], p[pre + "ma_o_w"]]
        bh += [p[pre + "ln1_g"], p[pre + "ln1_b"], p[pre + "ln2_g"], p[pre + "ln2_b"],
               p[pre + "attn_o_b"], p[pre + "ff1_b"], p[pre + "ff2_b"],
               p[pre + "gcn_b"], p[pre + "ma_o_b"]]
        qk += [p[pre + "qkv_w"], p[pre + "ma_qkv_w"]]
        bq += [p[pre + "qkv_b"], p[pre + "ma_qkv_b"]]
    hh += [p["it_t_w"], p["it_g_w"], att_w, fin_w]
    bh += [p["it_t_b"], p["it_g_b"], att_b, p["fin_b"]]
    return {"w_hh": jnp.concatenate(hh, axis=1),      # (E, 17*HID, HID)
            "w_qkv": jnp.concatenate(qk, axis=1),     # (E, 4*HID, 3*HID)
            "b_h": jnp.concatenate(bh, axis=1),       # (E, 25, HID)
            "b_qkv": jnp.concatenate(bq, axis=1)}     # (E, 4, 3*HID)


def init_model(kg):
    expert_params = init_experts(kg, NUM_EXPERT)
    g0w, g0b = init_linear(kg, EMB * 2, MLP_DIMS[-1])
    g1w, g1b = init_linear(kg, MLP_DIMS[-1], NUM_EXPERT)
    dims = [HID] + list(MLP_DIMS)
    clf_hidden = []
    for i in range(len(MLP_DIMS)):
        w_, b_ = init_linear(kg, dims[i], dims[i + 1])
        clf_hidden.append({"w": w_, "b": b_})
    cow, cob = init_linear(kg, MLP_DIMS[-1], 1)
    head_params = {
        "gate0": {"w": g0w, "b": g0b},
        "gate1": {"w": g1w, "b": g1b},
        "domain_embedding": jax.random.normal(kg(), (DOMAIN_NUM, EMB), jnp.float32),
        "clf_hidden": clf_hidden,
        "clf_out": {"w": cow, "b": cob},
    }
    return expert_params, head_params

# ============================== constant builders =============================

def gcn_norm_dense(edge_index, n):
    """Dense D^-1/2 (A + I) D^-1/2 with message direction src -> dst (PyG gcn_norm)."""
    A = np.zeros((n, n), np.float32)
    src, dst = edge_index
    A[dst, src] = 1.0
    A[np.arange(n), np.arange(n)] = 1.0
    deg = A.sum(axis=1)
    dinv = 1.0 / np.sqrt(np.maximum(deg, 1e-12))
    return (dinv[:, None] * A) * dinv[None, :]


def make_pool_matrix(s, f):
    """Adaptive-average-pooling weights: (f, s), row i averages rows of block i."""
    P = np.zeros((f, s), np.float32)
    for i in range(f):
        lo, hi = (i * s) // f, math.ceil((i + 1) * s / f)
        P[i, lo:hi] = 1.0 / (hi - lo)
    return P


def block_diag(P, nb):
    f, s = P.shape
    out = np.zeros((nb * f, nb * s), np.float32)
    for b in range(nb):
        out[b * f:(b + 1) * f, b * s:(b + 1) * s] = P
    return out


def make_attn_mask(nb, s):
    m = np.full((nb * s, nb * s), -1e30, np.float32)
    for b in range(nb):
        m[b * s:(b + 1) * s, b * s:(b + 1) * s] = 0.0
    return m

# ==================================== main ====================================

if __name__ == "__main__":
    kg = KeyGen(0)
    expert_params, head_params = init_model(kg)
    packed = pack_experts(expert_params)    # one-time weight-slab packing

    k0 = jax.random.PRNGKey(0)
    k1, k2, k3 = jax.random.split(k0, 3)
    text = jax.random.normal(k1, (B, SEQ, EMB), jnp.float32)
    num_feature = jax.random.normal(k2, (N_USERS, NUM_PROP), jnp.float32)
    cat_feature = jax.random.normal(k3, (N_USERS, CAT_PROP), jnp.float32)
    category = (1, 3)                                   # domain ids < DOMAIN_NUM
    user_neighbor_index = ((0, 1, 2, 3), (4, 5, 6))     # entry 0 is the user
    edge_index = np.array(
        [[0, 1, 1, 2, 3, 0, 4, 5, 5, 6, 7, 8, 9, 10, 10, 11],
         [1, 0, 2, 1, 0, 3, 5, 4, 6, 5, 8, 7, 10, 9, 11, 10]], dtype=np.int64)
    a_norm = jnp.asarray(gcn_norm_dense(edge_index, N_USERS))

    P = make_pool_matrix(SEQ, ATT_DIM)
    p_blk = jnp.asarray(block_diag(P, B))               # (B*ATT_DIM, B*SEQ)
    pt_blk = jnp.asarray(block_diag(P, B).T)            # (B*SEQ, B*ATT_DIM)
    attn_mask = jnp.asarray(make_attn_mask(B, SEQ))     # (B*SEQ, B*SEQ)

    fwd = jax.jit(functools.partial(model_forward, category=category,
                                    user_neighbor_index=user_neighbor_index))
    out = fwd(head_params, packed, text, num_feature, cat_feature, a_norm,
              attn_mask, p_blk, pt_blk)
    out = jax.block_until_ready(out)
    assert out.shape == (B,) and out.dtype == jnp.float32
    assert bool(jnp.all(jnp.isfinite(out)))
    print("KERNEL_OK")
</pallas_src>

<mosaic_0001>
module attributes {stable_mosaic.version = 11 : i64} {
  func.func @_expert_kernel(%arg0: i32, %arg1: memref<12x32xf32, #tpu.memory_space<vmem>>, %arg2: memref<18x32xf32, #tpu.memory_space<vmem>>, %arg3: memref<12x12xf32, #tpu.memory_space<vmem>>, %arg4: memref<18x18xf32, #tpu.memory_space<vmem>>, %arg5: memref<8x18xf32, #tpu.memory_space<vmem>>, %arg6: memref<18x8xf32, #tpu.memory_space<vmem>>, %arg7: memref<1x544x32xf32, #tpu.memory_space<vmem>>, %arg8: memref<1x128x96xf32, #tpu.memory_space<vmem>>, %arg9: memref<1x25x32xf32, #tpu.memory_space<vmem>>, %arg10: memref<1x4x96xf32, #tpu.memory_space<vmem>>, %arg11: memref<1x1x64xf32, #tpu.memory_space<vmem>>, %arg12: memref<18x32xf32, #tpu.memory_space<vmem>>, %arg13: memref<12x32xf32, #tpu.memory_space<vmem>>) attributes {dimension_semantics = [#tpu.dimension_semantics<parallel>], iteration_bounds = array<i64: 5>, scalar_prefetch = 0 : i64, scratch_operands = 2 : i64, tpu.core_type = #tpu.core_type<tc>, window_params = [{pipeline_mode = #tpu.pipeline_mode<synchronous>, transform_indices = @transform_0, window_bounds = array<i64: 12, 32>}, {pipeline_mode = #tpu.pipeline_mode<synchronous>, transform_indices = @transform_1, window_bounds = array<i64: 18, 32>}, {pipeline_mode = #tpu.pipeline_mode<synchronous>, transform_indices = @transform_2, window_bounds = array<i64: 12, 12>}, {pipeline_mode = #tpu.pipeline_mode<synchronous>, transform_indices = @transform_3, window_bounds = array<i64: 18, 18>}, {pipeline_mode = #tpu.pipeline_mode<synchronous>, transform_indices = @transform_4, window_bounds = array<i64: 8, 18>}, {pipeline_mode = #tpu.pipeline_mode<synchronous>, transform_indices = @transform_5, window_bounds = array<i64: 18, 8>}, {transform_indices = @transform_6, window_bounds = array<i64: 1, 544, 32>}, {transform_indices = @transform_7, window_bounds = array<i64: 1, 128, 96>}, {transform_indices = @transform_8, window_bounds = array<i64: 1, 25, 32>}, {transform_indices = @transform_9, window_bounds = array<i64: 1, 4, 96>}, {transform_indices = @transform_10, window_bounds = array<i64: 1, 1, 64>}]} {
    %c0 = arith.constant 0 : index
    %c0_0 = arith.constant 0 : index
    %0 = vector.load %arg3[%c0, %c0_0] : memref<12x12xf32, #tpu.memory_space<vmem>>, vector<12x12xf32>
    %c0_1 = arith.constant 0 : index
    %c0_2 = arith.constant 0 : index
    %1 = vector.load %arg4[%c0_1, %c0_2] : memref<18x18xf32, #tpu.memory_space<vmem>>, vector<18x18xf32>
    %c0_3 = arith.constant 0 : index
    %c0_4 = arith.constant 0 : index
    %2 = vector.load %arg1[%c0_3, %c0_4] : memref<12x32xf32, #tpu.memory_space<vmem>>, vector<12x32xf32>
    %c0_5 = arith.constant 0 : index
    %c0_6 = arith.constant 0 : index
    %c0_7 = arith.constant 0 : index
    %3 = vector.load %arg7[%c0_5, %c0_6, %c0_7] : memref<1x544x32xf32, #tpu.memory_space<vmem>>, vector<1x32x32xf32>
    %4 = vector.shape_cast %3 : vector<1x32x32xf32> to vector<32x32xf32>
    %cst = arith.constant dense<0.000000e+00> : vector<12x32xf32>
    %5 = tpu.matmul %2, %4, %cst {dimension_numbers = #tpu.dot_dimension_numbers<[1], [0], [0], [1], [0, 0, 1, 1], [], []>} : vector<12x32xf32>, vector<32x32xf32>, vector<12x32xf32> -> vector<12x32xf32>
    %c0_8 = arith.constant 0 : index
    %c0_9 = arith.constant 0 : index
    %c0_10 = arith.constant 0 : index
    %6 = vector.load %arg9[%c0_8, %c0_9, %c0_10] : memref<1x25x32xf32, #tpu.memory_space<vmem>>, vector<1x1x32xf32>
    %7 = vector.shape_cast %6 : vector<1x1x32xf32> to vector<1x32xf32>
    %8 = vector.broadcast %7 : vector<1x32xf32> to vector<12x32xf32>
    %9 = arith.addf %5, %8 : vector<12x32xf32>
    %cst_11 = arith.constant 0.000000e+00 : f32
    %10 = vector.broadcast %cst_11 : f32 to vector<12x32xf32>
    %11 = arith.cmpf oge, %9, %10 : vector<12x32xf32>
    %cst_12 = arith.constant 0.00999999977 : f32
    %12 = vector.broadcast %cst_12 : f32 to vector<12x32xf32>
    %13 = arith.mulf %12, %9 : vector<12x32xf32>
    %14 = arith.select %11, %9, %13 : vector<12x32xi1>, vector<12x32xf32>
    %c0_13 = arith.constant 0 : index
    %c32 = arith.constant 32 : index
    %c0_14 = arith.constant 0 : index
    %15 = vector.load %arg7[%c0_13, %c32, %c0_14] : memref<1x544x32xf32, #tpu.memory_space<vmem>>, vector<1x32x32xf32>
    %16 = vector.shape_cast %15 : vector<1x32x32xf32> to vector<32x32xf32>
    %cst_15 = arith.constant dense<0.000000e+00> : vector<12x32xf32>
    %17 = tpu.matmul %14, %16, %cst_15 {dimension_numbers = #tpu.dot_dimension_numbers<[1], [0], [0], [1], [0, 0, 1, 1], [], []>} : vector<12x32xf32>, vector<32x32xf32>, vector<12x32xf32> -> vector<12x32xf32>
    %c0_16 = arith.constant 0 : index
    %c1 = arith.constant 1 : index
    %c0_17 = arith.constant 0 : index
    %18 = vector.load %arg9[%c0_16, %c1, %c0_17] : memref<1x25x32xf32, #tpu.memory_space<vmem>>, vector<1x1x32xf32>
    %19 = vector.shape_cast %18 : vector<1x1x32xf32> to vector<1x32xf32>
    %20 = vector.broadcast %19 : vector<1x32xf32> to vector<12x32xf32>
    %21 = arith.addf %17, %20 : vector<12x32xf32>
    %cst_18 = arith.constant 0.000000e+00 : f32
    %22 = vector.broadcast %cst_18 : f32 to vector<12x32xf32>
    %23 = arith.cmpf oge, %21, %22 : vector<12x32xf32>
    %cst_19 = arith.constant 0.00999999977 : f32
    %24 = vector.broadcast %cst_19 : f32 to vector<12x32xf32>
    %25 = arith.mulf %24, %21 : vector<12x32xf32>
    %26 = arith.select %23, %21, %25 : vector<12x32xi1>, vector<12x32xf32>
    %c0_20 = arith.constant 0 : index
    %c0_21 = arith.constant 0 : index
    %27 = vector.load %arg13[%c0_20, %c0_21] : memref<12x32xf32, #tpu.memory_space<vmem>>, vector<12x32xf32>
    tpu.vector_store %arg13[%c0_20, %c0_21], %26 {strides = array<i32>} : memref<12x32xf32, #tpu.memory_space<vmem>>, vector<12x32xf32>,
    %c0_22 = arith.constant 0 : index
    %c0_23 = arith.constant 0 : index
    %28 = vector.load %arg2[%c0_22, %c0_23] : memref<18x32xf32, #tpu.memory_space<vmem>>, vector<18x32xf32>
    %c0_24 = arith.constant 0 : index
    %c64 = arith.constant 64 : index
    %c0_25 = arith.constant 0 : index
    %29 = vector.load %arg7[%c0_24, %c64, %c0_25] : memref<1x544x32xf32, #tpu.memory_space<vmem>>, vector<1x32x32xf32>
    %30 = vector.shape_cast %29 : vector<1x32x32xf32> to vector<32x32xf32>
    %cst_26 = arith.constant dense<0.000000e+00> : vector<18x32xf32>
    %31 = tpu.matmul %28, %30, %cst_26 {dimension_numbers = #tpu.dot_dimension_numbers<[1], [0], [0], [1], [0, 0, 1, 1], [], []>} : vector<18x32xf32>, vector<32x32xf32>, vector<18x32xf32> -> vector<18x32xf32>
    %c0_27 = arith.constant 0 : index
    %c2 = arith.constant 2 : index
    %c0_28 = arith.constant 0 : index
    %32 = vector.load %arg9[%c0_27, %c2, %c0_28] : memref<1x25x32xf32, #tpu.memory_space<vmem>>, vector<1x1x32xf32>
    %33 = vector.shape_cast %32 : vector<1x1x32xf32> to vector<1x32xf32>
    %34 = vector.broadcast %33 : vector<1x32xf32> to vector<18x32xf32>
    %35 = arith.addf %31, %34 : vector<18x32xf32>
    %c0_29 = arith.constant 0 : index
    %c0_30 = arith.constant 0 : index
    %36 = vector.load %arg12[%c0_29, %c0_30] : memref<18x32xf32, #tpu.memory_space<vmem>>, vector<18x32xf32>
    tpu.vector_store %arg12[%c0_29, %c0_30], %35 {strides = array<i32>} : memref<18x32xf32, #tpu.memory_space<vmem>>, vector<18x32xf32>,
    %c0_31 = arith.constant 0 : index
    %c0_32 = arith.constant 0 : index
    %37 = vector.load %arg12[%c0_31, %c0_32] : memref<18x32xf32, #tpu.memory_space<vmem>>, vector<18x32xf32>
    %c0_33 = arith.constant 0 : index
    %c3 = arith.constant 3 : index
    %c0_34 = arith.constant 0 : index
    %38 = vector.load %arg9[%c0_33, %c3, %c0_34] : memref<1x25x32xf32, #tpu.memory_space<vmem>>, vector<1x1x32xf32>
    %39 = vector.shape_cast %38 : vector<1x1x32xf32> to vector<1x32xf32>
    %c0_35 = arith.constant 0 : index
    %c4 = arith.constant 4 : index
    %c0_36 = arith.constant 0 : index
    %40 = vector.load %arg9[%c0_35, %c4, %c0_36] : memref<1x25x32xf32, #tpu.memory_space<vmem>>, vector<1x1x32xf32>
    %41 = vector.shape_cast %40 : vector<1x1x32xf32> to vector<1x32xf32>
    %cst_37 = arith.constant dense<0.000000e+00> : vector<18xf32>
    %42 = vector.multi_reduction <add>, %37, %cst_37 [1] : vector<18x32xf32> to vector<18xf32>
    %43 = vector.shape_cast %42 : vector<18xf32> to vector<18x1xf32>
    %cst_38 = arith.constant 3.200000e+01 : f32
    %44 = vector.broadcast %cst_38 : f32 to vector<18x1xf32>
    %45 = arith.divf %43, %44 : vector<18x1xf32>
    %46 = vector.broadcast %45 : vector<18x1xf32> to vector<18x32xf32>
    %47 = arith.subf %37, %46 : vector<18x32xf32>
    %48 = arith.mulf %47, %47 : vector<18x32xf32>
    %cst_39 = arith.constant dense<0.000000e+00> : vector<18xf32>
    %49 = vector.multi_reduction <add>, %48, %cst_39 [1] : vector<18x32xf32> to vector<18xf32>
    %50 = vector.shape_cast %49 : vector<18xf32> to vector<18x1xf32>
    %cst_40 = arith.constant 3.200000e+01 : f32
    %51 = vector.broadcast %cst_40 : f32 to vector<18x1xf32>
    %52 = arith.divf %50, %51 : vector<18x1xf32>
    %cst_41 = arith.constant 9.99999974E-6 : f32
    %53 = vector.broadcast %cst_41 : f32 to vector<18x1xf32>
    %54 = arith.addf %52, %53 : vector<18x1xf32>
    %55 = math.rsqrt %54 : vector<18x1xf32>
    %56 = vector.broadcast %55 : vector<18x1xf32> to vector<18x32xf32>
    %57 = arith.mulf %47, %56 : vector<18x32xf32>
    %58 = vector.broadcast %39 : vector<1x32xf32> to vector<18x32xf32>
    %59 = arith.mulf %57, %58 : vector<18x32xf32>
    %60 = vector.broadcast %41 : vector<1x32xf32> to vector<18x32xf32>
    %61 = arith.addf %59, %60 : vector<18x32xf32>
    %c0_42 = arith.constant 0 : index
    %c0_43 = arith.constant 0 : index
    %c0_44 = arith.constant 0 : index
    %62 = vector.load %arg8[%c0_42, %c0_43, %c0_44] : memref<1x128x96xf32, #tpu.memory_space<vmem>>, vector<1x32x96xf32>
    %63 = vector.shape_cast %62 : vector<1x32x96xf32> to vector<32x96xf32>
    %c0_45 = arith.constant 0 : index
    %c0_46 = arith.constant 0 : index
    %c0_47 = arith.constant 0 : index
    %64 = vector.load %arg10[%c0_45, %c0_46, %c0_47] : memref<1x4x96xf32, #tpu.memory_space<vmem>>, vector<1x1x96xf32>
    %65 = vector.shape_cast %64 : vector<1x1x96xf32> to vector<1x96xf32>
    %c0_48 = arith.constant 0 : index
    %c96 = arith.constant 96 : index
    %c0_49 = arith.constant 0 : index
    %66 = vector.load %arg7[%c0_48, %c96, %c0_49] : memref<1x544x32xf32, #tpu.memory_space<vmem>>, vector<1x32x32xf32>
    %67 = vector.shape_cast %66 : vector<1x32x32xf32> to vector<32x32xf32>
    %c0_50 = arith.constant 0 : index
    %c7 = arith.constant 7 : index
    %c0_51 = arith.constant 0 : index
    %68 = vector.load %arg9[%c0_50, %c7, %c0_51] : memref<1x25x32xf32, #tpu.memory_space<vmem>>, vector<1x1x32xf32>
    %69 = vector.shape_cast %68 : vector<1x1x32xf32> to vector<1x32xf32>
    %cst_52 = arith.constant dense<0.000000e+00> : vector<18x96xf32>
    %70 = tpu.matmul %61, %63, %cst_52 {dimension_numbers = #tpu.dot_dimension_numbers<[1], [0], [0], [1], [0, 0, 1, 1], [], []>} : vector<18x32xf32>, vector<32x96xf32>, vector<18x96xf32> -> vector<18x96xf32>
    %71 = vector.broadcast %65 : vector<1x96xf32> to vector<18x96xf32>
    %72 = arith.addf %70, %71 : vector<18x96xf32>
    %cst_53 = arith.constant 0.000000e+00 : f32
    %73 = vector.broadcast %cst_53 : f32 to vector<18x18xf32>
    %74 = vector.extract_strided_slice %72 {offsets = [0, 0], sizes = [18, 8], strides = [1, 1]} : vector<18x96xf32> to vector<18x8xf32>
    %75 = vector.extract_strided_slice %72 {offsets = [0, 32], sizes = [18, 8], strides = [1, 1]} : vector<18x96xf32> to vector<18x8xf32>
    %cst_54 = arith.constant dense<0.000000e+00> : vector<18x18xf32>
    %76 = tpu.matmul %74, %75, %cst_54 {dimension_numbers = #tpu.dot_dimension_numbers<[1], [1], [0], [0], [0, 0, 1, 0], [], []>} : vector<18x8xf32>, vector<18x8xf32>, vector<18x18xf32> -> vector<18x18xf32>
    %cst_55 = arith.constant 0.353553385 : f32
    %77 = vector.broadcast %cst_55 : f32 to vector<18x18xf32>
    %78 = arith.mulf %76, %77 : vector<18x18xf32>
    %79 = arith.addf %78, %1 : vector<18x18xf32>
    %cst_56 = arith.constant dense<0xFF800000> : vector<18xf32>
    %80 = vector.multi_reduction <maximumf>, %79, %cst_56 [1] : vector<18x18xf32> to vector<18xf32>
    %81 = vector.shape_cast %80 : vector<18xf32> to vector<18x1xf32>
    %82 = vector.broadcast %81 : vector<18x1xf32> to vector<18x18xf32>
    %83 = arith.subf %79, %82 : vector<18x18xf32>
    %84 = math.exp %83 : vector<18x18xf32>
    %cst_57 = arith.constant dense<0.000000e+00> : vector<18xf32>
    %85 = vector.multi_reduction <add>, %84, %cst_57 [1] : vector<18x18xf32> to vector<18xf32>
    %86 = vector.shape_cast %85 : vector<18xf32> to vector<18x1xf32>
    %87 = tpu.reciprocal %86 {approx = true} : vector<18x1xf32> -> vector<18x1xf32>
    %88 = vector.broadcast %87 : vector<18x1xf32> to vector<18x18xf32>
    %89 = arith.mulf %84, %88 : vector<18x18xf32>
    %90 = arith.addf %73, %89 : vector<18x18xf32>
    %91 = vector.extract_strided_slice %72 {offsets = [0, 64], sizes = [18, 8], strides = [1, 1]} : vector<18x96xf32> to vector<18x8xf32>
    %cst_58 = arith.constant dense<0.000000e+00> : vector<18x8xf32>
    %92 = tpu.matmul %89, %91, %cst_58 {dimension_numbers = #tpu.dot_dimension_numbers<[1], [0], [0], [1], [0, 0, 1, 1], [], []>} : vector<18x18xf32>, vector<18x8xf32>, vector<18x8xf32> -> vector<18x8xf32>
    %93 = vector.extract_strided_slice %72 {offsets = [0, 8], sizes = [18, 8], strides = [1, 1]} : vector<18x96xf32> to vector<18x8xf32>
    %94 = vector.extract_strided_slice %72 {offsets = [0, 40], sizes = [18, 8], strides = [1, 1]} : vector<18x96xf32> to vector<18x8xf32>
    %cst_59 = arith.constant dense<0.000000e+00> : vector<18x18xf32>
    %95 = tpu.matmul %93, %94, %cst_59 {dimension_numbers = #tpu.dot_dimension_numbers<[1], [1], [0], [0], [0, 0, 1, 0], [], []>} : vector<18x8xf32>, vector<18x8xf32>, vector<18x18xf32> -> vector<18x18xf32>
    %cst_60 = arith.constant 0.353553385 : f32
    %96 = vector.broadcast %cst_60 : f32 to vector<18x18xf32>
    %97 = arith.mulf %95, %96 : vector<18x18xf32>
    %98 = arith.addf %97, %1 : vector<18x18xf32>
    %cst_61 = arith.constant dense<0xFF800000> : vector<18xf32>
    %99 = vector.multi_reduction <maximumf>, %98, %cst_61 [1] : vector<18x18xf32> to vector<18xf32>
    %100 = vector.shape_cast %99 : vector<18xf32> to vector<18x1xf32>
    %101 = vector.broadcast %100 : vector<18x1xf32> to vector<18x18xf32>
    %102 = arith.subf %98, %101 : vector<18x18xf32>
    %103 = math.exp %102 : vector<18x18xf32>
    %cst_62 = arith.constant dense<0.000000e+00> : vector<18xf32>
    %104 = vector.multi_reduction <add>, %103, %cst_62 [1] : vector<18x18xf32> to vector<18xf32>
    %105 = vector.shape_cast %104 : vector<18xf32> to vector<18x1xf32>
    %106 = tpu.reciprocal %105 {approx = true} : vector<18x1xf32> -> vector<18x1xf32>
    %107 = vector.broadcast %106 : vector<18x1xf32> to vector<18x18xf32>
    %108 = arith.mulf %103, %107 : vector<18x18xf32>
    %109 = arith.addf %90, %108 : vector<18x18xf32>
    %110 = vector.extract_strided_slice %72 {offsets = [0, 72], sizes = [18, 8], strides = [1, 1]} : vector<18x96xf32> to vector<18x8xf32>
    %cst_63 = arith.constant dense<0.000000e+00> : vector<18x8xf32>
    %111 = tpu.matmul %108, %110, %cst_63 {dimension_numbers = #tpu.dot_dimension_numbers<[1], [0], [0], [1], [0, 0, 1, 1], [], []>} : vector<18x18xf32>, vector<18x8xf32>, vector<18x8xf32> -> vector<18x8xf32>
    %112 = vector.extract_strided_slice %72 {offsets = [0, 16], sizes = [18, 8], strides = [1, 1]} : vector<18x96xf32> to vector<18x8xf32>
    %113 = vector.extract_strided_slice %72 {offsets = [0, 48], sizes = [18, 8], strides = [1, 1]} : vector<18x96xf32> to vector<18x8xf32>
    %cst_64 = arith.constant dense<0.000000e+00> : vector<18x18xf32>
    %114 = tpu.matmul %112, %113, %cst_64 {dimension_numbers = #tpu.dot_dimension_numbers<[1], [1], [0], [0], [0, 0, 1, 0], [], []>} : vector<18x8xf32>, vector<18x8xf32>, vector<18x18xf32> -> vector<18x18xf32>
    %cst_65 = arith.constant 0.353553385 : f32
    %115 = vector.broadcast %cst_65 : f32 to vector<18x18xf32>
    %116 = arith.mulf %114, %115 : vector<18x18xf32>
    %117 = arith.addf %116, %1 : vector<18x18xf32>
    %cst_66 = arith.constant dense<0xFF800000> : vector<18xf32>
    %118 = vector.multi_reduction <maximumf>, %117, %cst_66 [1] : vector<18x18xf32> to vector<18xf32>
    %119 = vector.shape_cast %118 : vector<18xf32> to vector<18x1xf32>
    %120 = vector.broadcast %119 : vector<18x1xf32> to vector<18x18xf32>
    %121 = arith.subf %117, %120 : vector<18x18xf32>
    %122 = math.exp %121 : vector<18x18xf32>
    %cst_67 = arith.constant dense<0.000000e+00> : vector<18xf32>
    %123 = vector.multi_reduction <add>, %122, %cst_67 [1] : vector<18x18xf32> to vector<18xf32>
    %124 = vector.shape_cast %123 : vector<18xf32> to vector<18x1xf32>
    %125 = tpu.reciprocal %124 {approx = true} : vector<18x1xf32> -> vector<18x1xf32>
    %126 = vector.broadcast %125 : vector<18x1xf32> to vector<18x18xf32>
    %127 = arith.mulf %122, %126 : vector<18x18xf32>
    %128 = arith.addf %109, %127 : vector<18x18xf32>
    %129 = vector.extract_strided_slice %72 {offsets = [0, 80], sizes = [18, 8], strides = [1, 1]} : vector<18x96xf32> to vector<18x8xf32>
    %cst_68 = arith.constant dense<0.000000e+00> : vector<18x8xf32>
    %130 = tpu.matmul %127, %129, %cst_68 {dimension_numbers = #tpu.dot_dimension_numbers<[1], [0], [0], [1], [0, 0, 1, 1], [], []>} : vector<18x18xf32>, vector<18x8xf32>, vector<18x8xf32> -> vector<18x8xf32>
    %131 = vector.extract_strided_slice %72 {offsets = [0, 24], sizes = [18, 8], strides = [1, 1]} : vector<18x96xf32> to vector<18x8xf32>
    %132 = vector.extract_strided_slice %72 {offsets = [0, 56], sizes = [18, 8], strides = [1, 1]} : vector<18x96xf32> to vector<18x8xf32>
    %cst_69 = arith.constant dense<0.000000e+00> : vector<18x18xf32>
    %133 = tpu.matmul %131, %132, %cst_69 {dimension_numbers = #tpu.dot_dimension_numbers<[1], [1], [0], [0], [0, 0, 1, 0], [], []>} : vector<18x8xf32>, vector<18x8xf32>, vector<18x18xf32> -> vector<18x18xf32>
    %cst_70 = arith.constant 0.353553385 : f32
    %134 = vector.broadcast %cst_70 : f32 to vector<18x18xf32>
    %135 = arith.mulf %133, %134 : vector<18x18xf32>
    %136 = arith.addf %135, %1 : vector<18x18xf32>
    %cst_71 = arith.constant dense<0xFF800000> : vector<18xf32>
    %137 = vector.multi_reduction <maximumf>, %136, %cst_71 [1] : vector<18x18xf32> to vector<18xf32>
    %138 = vector.shape_cast %137 : vector<18xf32> to vector<18x1xf32>
    %139 = vector.broadcast %138 : vector<18x1xf32> to vector<18x18xf32>
    %140 = arith.subf %136, %139 : vector<18x18xf32>
    %141 = math.exp %140 : vector<18x18xf32>
    %cst_72 = arith.constant dense<0.000000e+00> : vector<18xf32>
    %142 = vector.multi_reduction <add>, %141, %cst_72 [1] : vector<18x18xf32> to vector<18xf32>
    %143 = vector.shape_cast %142 : vector<18xf32> to vector<18x1xf32>
    %144 = tpu.reciprocal %143 {approx = true} : vector<18x1xf32> -> vector<18x1xf32>
    %145 = vector.broadcast %144 : vector<18x1xf32> to vector<18x18xf32>
    %146 = arith.mulf %141, %145 : vector<18x18xf32>
    %147 = arith.addf %128, %146 : vector<18x18xf32>
    %148 = vector.extract_strided_slice %72 {offsets = [0, 88], sizes = [18, 8], strides = [1, 1]} : vector<18x96xf32> to vector<18x8xf32>
    %cst_73 = arith.constant dense<0.000000e+00> : vector<18x8xf32>
    %149 = tpu.matmul %146, %148, %cst_73 {dimension_numbers = #tpu.dot_dimension_numbers<[1], [0], [0], [1], [0, 0, 1, 1], [], []>} : vector<18x18xf32>, vector<18x8xf32>, vector<18x8xf32> -> vector<18x8xf32>
    %150 = tpu.concatenate %92, %111, %130, %149 in 1 : vector<18x8xf32>, vector<18x8xf32>, vector<18x8xf32>, vector<18x8xf32> -> vector<18x32xf32>
    %cst_74 = arith.constant dense<0.000000e+00> : vector<18x32xf32>
    %151 = tpu.matmul %150, %67, %cst_74 {dimension_numbers = #tpu.dot_dimension_numbers<[1], [0], [0], [1], [0, 0, 1, 1], [], []>} : vector<18x32xf32>, vector<32x32xf32>, vector<18x32xf32> -> vector<18x32xf32>
    %152 = vector.broadcast %69 : vector<1x32xf32> to vector<18x32xf32>
    %153 = arith.addf %151, %152 : vector<18x32xf32>
    %cst_75 = arith.constant 2.500000e-01 : f32
    %154 = vector.broadcast %cst_75 : f32 to vector<18x18xf32>
    %155 = arith.mulf %147, %154 : vector<18x18xf32>
    %156 = arith.addf %37, %153 : vector<18x32xf32>
    %c0_76 = arith.constant 0 : index
    %c5 = arith.constant 5 : index
    %c0_77 = arith.constant 0 : index
    %157 = vector.load %arg9[%c0_76, %c5, %c0_77] : memref<1x25x32xf32, #tpu.memory_space<vmem>>, vector<1x1x32xf32>
    %158 = vector.shape_cast %157 : vector<1x1x32xf32> to vector<1x32xf32>
    %c0_78 = arith.constant 0 : index
    %c6 = arith.constant 6 : index
    %c0_79 = arith.constant 0 : index
    %159 = vector.load %arg9[%c0_78, %c6, %c0_79] : memref<1x25x32xf32, #tpu.memory_space<vmem>>, vector<1x1x32xf32>
    %160 = vector.shape_cast %159 : vector<1x1x32xf32> to vector<1x32xf32>
    %cst_80 = arith.constant dense<0.000000e+00> : vector<18xf32>
    %161 = vector.multi_reduction <add>, %156, %cst_80 [1] : vector<18x32xf32> to vector<18xf32>
    %162 = vector.shape_cast %161 : vector<18xf32> to vector<18x1xf32>
    %cst_81 = arith.constant 3.200000e+01 : f32
    %163 = vector.broadcast %cst_81 : f32 to vector<18x1xf32>
    %164 = arith.divf %162, %163 : vector<18x1xf32>
    %165 = vector.broadcast %164 : vector<18x1xf32> to vector<18x32xf32>
    %166 = arith.subf %156, %165 : vector<18x32xf32>
    %167 = arith.mulf %166, %166 : vector<18x32xf32>
    %cst_82 = arith.constant dense<0.000000e+00> : vector<18xf32>
    %168 = vector.multi_reduction <add>, %167, %cst_82 [1] : vector<18x32xf32> to vector<18xf32>
    %169 = vector.shape_cast %168 : vector<18xf32> to vector<18x1xf32>
    %cst_83 = arith.constant 3.200000e+01 : f32
    %170 = vector.broadcast %cst_83 : f32 to vector<18x1xf32>
    %171 = arith.divf %169, %170 : vector<18x1xf32>
    %cst_84 = arith.constant 9.99999974E-6 : f32
    %172 = vector.broadcast %cst_84 : f32 to vector<18x1xf32>
    %173 = arith.addf %171, %172 : vector<18x1xf32>
    %174 = math.rsqrt %173 : vector<18x1xf32>
    %175 = vector.broadcast %174 : vector<18x1xf32> to vector<18x32xf32>
    %176 = arith.mulf %166, %175 : vector<18x32xf32>
    %177 = vector.broadcast %158 : vector<1x32xf32> to vector<18x32xf32>
    %178 = arith.mulf %176, %177 : vector<18x32xf32>
    %179 = vector.broadcast %160 : vector<1x32xf32> to vector<18x32xf32>
    %180 = arith.addf %178, %179 : vector<18x32xf32>
    %c0_85 = arith.constant 0 : index
    %c128 = arith.constant 128 : index
    %c0_86 = arith.constant 0 : index
    %181 = vector.load %arg7[%c0_85, %c128, %c0_86] : memref<1x544x32xf32, #tpu.memory_space<vmem>>, vector<1x32x32xf32>
    %182 = vector.shape_cast %181 : vector<1x32x32xf32> to vector<32x32xf32>
    %cst_87 = arith.constant dense<0.000000e+00> : vector<18x32xf32>
    %183 = tpu.matmul %180, %182, %cst_87 {dimension_numbers = #tpu.dot_dimension_numbers<[1], [0], [0], [1], [0, 0, 1, 1], [], []>} : vector<18x32xf32>, vector<32x32xf32>, vector<18x32xf32> -> vector<18x32xf32>
    %c0_88 = arith.constant 0 : index
    %c8 = arith.constant 8 : index
    %c0_89 = arith.constant 0 : index
    %184 = vector.load %arg9[%c0_88, %c8, %c0_89] : memref<1x25x32xf32, #tpu.memory_space<vmem>>, vector<1x1x32xf32>
    %185 = vector.shape_cast %184 : vector<1x1x32xf32> to vector<1x32xf32>
    %186 = vector.broadcast %185 : vector<1x32xf32> to vector<18x32xf32>
    %187 = arith.addf %183, %186 : vector<18x32xf32>
    %cst_90 = arith.constant 0.000000e+00 : f32
    %188 = vector.broadcast %cst_90 : f32 to vector<18x32xf32>
    %189 = arith.cmpf ogt, %187, %188 : vector<18x32xf32>
    %190 = math.exp %187 : vector<18x32xf32>
    %cst_91 = arith.constant 1.000000e+00 : f32
    %191 = vector.broadcast %cst_91 : f32 to vector<18x32xf32>
    %192 = arith.subf %190, %191 : vector<18x32xf32>
    %cst_92 = arith.constant 1.67326319 : f32
    %193 = vector.broadcast %cst_92 : f32 to vector<18x32xf32>
    %194 = arith.mulf %193, %192 : vector<18x32xf32>
    %195 = arith.select %189, %187, %194 : vector<18x32xi1>, vector<18x32xf32>
    %cst_93 = arith.constant 1.05070102 : f32
    %196 = vector.broadcast %cst_93 : f32 to vector<18x32xf32>
    %197 = arith.mulf %196, %195 : vector<18x32xf32>
    %c0_94 = arith.constant 0 : index
    %c160 = arith.constant 160 : index
    %c0_95 = arith.constant 0 : index
    %198 = vector.load %arg7[%c0_94, %c160, %c0_95] : memref<1x544x32xf32, #tpu.memory_space<vmem>>, vector<1x32x32xf32>
    %199 = vector.shape_cast %198 : vector<1x32x32xf32> to vector<32x32xf32>
    %cst_96 = arith.constant dense<0.000000e+00> : vector<18x32xf32>
    %200 = tpu.matmul %197, %199, %cst_96 {dimension_numbers = #tpu.dot_dimension_numbers<[1], [0], [0], [1], [0, 0, 1, 1], [], []>} : vector<18x32xf32>, vector<32x32xf32>, vector<18x32xf32> -> vector<18x32xf32>
    %201 = arith.addf %156, %200 : vector<18x32xf32>
    %c0_97 = arith.constant 0 : index
    %c9 = arith.constant 9 : index
    %c0_98 = arith.constant 0 : index
    %202 = vector.load %arg9[%c0_97, %c9, %c0_98] : memref<1x25x32xf32, #tpu.memory_space<vmem>>, vector<1x1x32xf32>
    %203 = vector.shape_cast %202 : vector<1x1x32xf32> to vector<1x32xf32>
    %204 = vector.broadcast %203 : vector<1x32xf32> to vector<18x32xf32>
    %205 = arith.addf %201, %204 : vector<18x32xf32>
    %c0_99 = arith.constant 0 : index
    %c0_100 = arith.constant 0 : index
    %206 = vector.load %arg12[%c0_99, %c0_100] : memref<18x32xf32, #tpu.memory_space<vmem>>, vector<18x32xf32>
    tpu.vector_store %arg12[%c0_99, %c0_100], %205 {strides = array<i32>} : memref<18x32xf32, #tpu.memory_space<vmem>>, vector<18x32xf32>,
    %c0_101 = arith.constant 0 : index
    %c0_102 = arith.constant 0 : index
    %207 = vector.load %arg13[%c0_101, %c0_102] : memref<12x32xf32, #tpu.memory_space<vmem>>, vector<12x32xf32>
    %c0_103 = arith.constant 0 : index
    %c192 = arith.constant 192 : index
    %c0_104 = arith.constant 0 : index
    %208 = vector.load %arg7[%c0_103, %c192, %c0_104] : memref<1x544x32xf32, #tpu.memory_space<vmem>>, vector<1x32x32xf32>
    %209 = vector.shape_cast %208 : vector<1x32x32xf32> to vector<32x32xf32>
    %cst_105 = arith.constant dense<0.000000e+00> : vector<12x32xf32>
    %210 = tpu.matmul %207, %209, %cst_105 {dimension_numbers = #tpu.dot_dimension_numbers<[1], [0], [0], [1], [0, 0, 1, 1], [], []>} : vector<12x32xf32>, vector<32x32xf32>, vector<12x32xf32> -> vector<12x32xf32>
    %cst_106 = arith.constant dense<0.000000e+00> : vector<12x32xf32>
    %211 = tpu.matmul %0, %210, %cst_106 {dimension_numbers = #tpu.dot_dimension_numbers<[1], [0], [0], [1], [0, 0, 1, 1], [], []>} : vector<12x12xf32>, vector<12x32xf32>, vector<12x32xf32> -> vector<12x32xf32>
    %c0_107 = arith.constant 0 : index
    %c10 = arith.constant 10 : index
    %c0_108 = arith.constant 0 : index
    %212 = vector.load %arg9[%c0_107, %c10, %c0_108] : memref<1x25x32xf32, #tpu.memory_space<vmem>>, vector<1x1x32xf32>
    %213 = vector.shape_cast %212 : vector<1x1x32xf32> to vector<1x32xf32>
    %214 = vector.broadcast %213 : vector<1x32xf32> to vector<12x32xf32>
    %215 = arith.addf %211, %214 : vector<12x32xf32>
    %cst_109 = arith.constant 0.000000e+00 : f32
    %216 = vector.broadcast %cst_109 : f32 to vector<12x32xf32>
    %217 = arith.cmpf oge, %215, %216 : vector<12x32xf32>
    %cst_110 = arith.constant 0.00999999977 : f32
    %218 = vector.broadcast %cst_110 : f32 to vector<12x32xf32>
    %219 = arith.mulf %218, %215 : vector<12x32xf32>
    %220 = arith.select %217, %215, %219 : vector<12x32xi1>, vector<12x32xf32>
    %c0_111 = arith.constant 0 : index
    %c0_112 = arith.constant 0 : index
    %221 = vector.load %arg13[%c0_111, %c0_112] : memref<12x32xf32, #tpu.memory_space<vmem>>, vector<12x32xf32>
    tpu.vector_store %arg13[%c0_111, %c0_112], %220 {strides = array<i32>} : memref<12x32xf32, #tpu.memory_space<vmem>>, vector<12x32xf32>,
    %c0_113 = arith.constant 0 : index
    %c0_114 = arith.constant 0 : index
    %222 = vector.load %arg13[%c0_113, %c0_114] : memref<12x32xf32, #tpu.memory_space<vmem>>, vector<1x32xf32>
    %c1_115 = arith.constant 1 : index
    %c0_116 = arith.constant 0 : index
    %223 = vector.load %arg13[%c1_115, %c0_116] : memref<12x32xf32, #tpu.memory_space<vmem>>, vector<1x32xf32>
    %c2_117 = arith.constant 2 : index
    %c0_118 = arith.constant 0 : index
    %224 = vector.load %arg13[%c2_117, %c0_118] : memref<12x32xf32, #tpu.memory_space<vmem>>, vector<1x32xf32>
    %c3_119 = arith.constant 3 : index
    %c0_120 = arith.constant 0 : index
    %225 = vector.load %arg13[%c3_119, %c0_120] : memref<12x32xf32, #tpu.memory_space<vmem>>, vector<1x32xf32>
    %226 = tpu.concatenate %222, %223, %224, %225 in 0 : vector<1x32xf32>, vector<1x32xf32>, vector<1x32xf32>, vector<1x32xf32> -> vector<4x32xf32>
    %c0_121 = arith.constant 0 : index
    %c32_122 = arith.constant 32 : index
    %c0_123 = arith.constant 0 : index
    %227 = vector.load %arg8[%c0_121, %c32_122, %c0_123] : memref<1x128x96xf32, #tpu.memory_space<vmem>>, vector<1x32x96xf32>
    %228 = vector.shape_cast %227 : vector<1x32x96xf32> to vector<32x96xf32>
    %c0_124 = arith.constant 0 : index
    %c1_125 = arith.constant 1 : index
    %c0_126 = arith.constant 0 : index
    %229 = vector.load %arg10[%c0_124, %c1_125, %c0_126] : memref<1x4x96xf32, #tpu.memory_space<vmem>>, vector<1x1x96xf32>
    %230 = vector.shape_cast %229 : vector<1x1x96xf32> to vector<1x96xf32>
    %c0_127 = arith.constant 0 : index
    %c224 = arith.constant 224 : index
    %c0_128 = arith.constant 0 : index
    %231 = vector.load %arg7[%c0_127, %c224, %c0_128] : memref<1x544x32xf32, #tpu.memory_space<vmem>>, vector<1x32x32xf32>
    %232 = vector.shape_cast %231 : vector<1x32x32xf32> to vector<32x32xf32>
    %c0_129 = arith.constant 0 : index
    %c11 = arith.constant 11 : index
    %c0_130 = arith.constant 0 : index
    %233 = vector.load %arg9[%c0_129, %c11, %c0_130] : memref<1x25x32xf32, #tpu.memory_space<vmem>>, vector<1x1x32xf32>
    %234 = vector.shape_cast %233 : vector<1x1x32xf32> to vector<1x32xf32>
    %cst_131 = arith.constant dense<0.000000e+00> : vector<4x96xf32>
    %235 = tpu.matmul %226, %228, %cst_131 {dimension_numbers = #tpu.dot_dimension_numbers<[1], [0], [0], [1], [0, 0, 1, 1], [], []>} : vector<4x32xf32>, vector<32x96xf32>, vector<4x96xf32> -> vector<4x96xf32>
    %236 = vector.broadcast %230 : vector<1x96xf32> to vector<4x96xf32>
    %237 = arith.addf %235, %236 : vector<4x96xf32>
    %238 = vector.extract_strided_slice %237 {offsets = [0, 0], sizes = [1, 8], strides = [1, 1]} : vector<4x96xf32> to vector<1x8xf32>
    %239 = vector.extract_strided_slice %237 {offsets = [0, 32], sizes = [4, 8], strides = [1, 1]} : vector<4x96xf32> to vector<4x8xf32>
    %cst_132 = arith.constant dense<0.000000e+00> : vector<1x4xf32>
    %240 = tpu.matmul %238, %239, %cst_132 {dimension_numbers = #tpu.dot_dimension_numbers<[1], [1], [0], [0], [0, 0, 1, 0], [], []>} : vector<1x8xf32>, vector<4x8xf32>, vector<1x4xf32> -> vector<1x4xf32>
    %241 = vector.extract_strided_slice %237 {offsets = [0, 8], sizes = [1, 8], strides = [1, 1]} : vector<4x96xf32> to vector<1x8xf32>
    %242 = vector.extract_strided_slice %237 {offsets = [0, 40], sizes = [4, 8], strides = [1, 1]} : vector<4x96xf32> to vector<4x8xf32>
    %cst_133 = arith.constant dense<0.000000e+00> : vector<1x4xf32>
    %243 = tpu.matmul %241, %242, %cst_133 {dimension_numbers = #tpu.dot_dimension_numbers<[1], [1], [0], [0], [0, 0, 1, 0], [], []>} : vector<1x8xf32>, vector<4x8xf32>, vector<1x4xf32> -> vector<1x4xf32>
    %244 = vector.extract_strided_slice %237 {offsets = [0, 16], sizes = [1, 8], strides = [1, 1]} : vector<4x96xf32> to vector<1x8xf32>
    %245 = vector.extract_strided_slice %237 {offsets = [0, 48], sizes = [4, 8], strides = [1, 1]} : vector<4x96xf32> to vector<4x8xf32>
    %cst_134 = arith.constant dense<0.000000e+00> : vector<1x4xf32>
    %246 = tpu.matmul %244, %245, %cst_134 {dimension_numbers = #tpu.dot_dimension_numbers<[1], [1], [0], [0], [0, 0, 1, 0], [], []>} : vector<1x8xf32>, vector<4x8xf32>, vector<1x4xf32> -> vector<1x4xf32>
    %247 = vector.extract_strided_slice %237 {offsets = [0, 24], sizes = [1, 8], strides = [1, 1]} : vector<4x96xf32> to vector<1x8xf32>
    %248 = vector.extract_strided_slice %237 {offsets = [0, 56], sizes = [4, 8], strides = [1, 1]} : vector<4x96xf32> to vector<4x8xf32>
    %cst_135 = arith.constant dense<0.000000e+00> : vector<1x4xf32>
    %249 = tpu.matmul %247, %248, %cst_135 {dimension_numbers = #tpu.dot_dimension_numbers<[1], [1], [0], [0], [0, 0, 1, 0], [], []>} : vector<1x8xf32>, vector<4x8xf32>, vector<1x4xf32> -> vector<1x4xf32>
    %250 = tpu.concatenate %240, %243, %246, %249 in 0 : vector<1x4xf32>, vector<1x4xf32>, vector<1x4xf32>, vector<1x4xf32> -> vector<4x4xf32>
    %cst_136 = arith.constant 0.353553385 : f32
    %251 = vector.broadcast %cst_136 : f32 to vector<4x4xf32>
    %252 = arith.mulf %250, %251 : vector<4x4xf32>
    %cst_137 = arith.constant dense<0xFF800000> : vector<4xf32>
    %253 = vector.multi_reduction <maximumf>, %252, %cst_137 [1] : vector<4x4xf32> to vector<4xf32>
    %254 = vector.shape_cast %253 : vector<4xf32> to vector<4x1xf32>
    %255 = vector.broadcast %254 : vector<4x1xf32> to vector<4x4xf32>
    %256 = arith.subf %252, %255 : vector<4x4xf32>
    %257 = math.exp %256 : vector<4x4xf32>
    %cst_138 = arith.constant dense<0.000000e+00> : vector<4xf32>
    %258 = vector.multi_reduction <add>, %257, %cst_138 [1] : vector<4x4xf32> to vector<4xf32>
    %259 = vector.shape_cast %258 : vector<4xf32> to vector<4x1xf32>
    %260 = tpu.reciprocal %259 {approx = true} : vector<4x1xf32> -> vector<4x1xf32>
    %261 = vector.broadcast %260 : vector<4x1xf32> to vector<4x4xf32>
    %262 = arith.mulf %257, %261 : vector<4x4xf32>
    %263 = vector.extract_strided_slice %262 {offsets = [0, 0], sizes = [1, 4], strides = [1, 1]} : vector<4x4xf32> to vector<1x4xf32>
    %264 = vector.extract_strided_slice %237 {offsets = [0, 64], sizes = [4, 8], strides = [1, 1]} : vector<4x96xf32> to vector<4x8xf32>
    %cst_139 = arith.constant dense<0.000000e+00> : vector<1x8xf32>
    %265 = tpu.matmul %263, %264, %cst_139 {dimension_numbers = #tpu.dot_dimension_numbers<[1], [0], [0], [1], [0, 0, 1, 1], [], []>} : vector<1x4xf32>, vector<4x8xf32>, vector<1x8xf32> -> vector<1x8xf32>
    %266 = vector.extract_strided_slice %262 {offsets = [1, 0], sizes = [1, 4], strides = [1, 1]} : vector<4x4xf32> to vector<1x4xf32>
    %267 = vector.extract_strided_slice %237 {offsets = [0, 72], sizes = [4, 8], strides = [1, 1]} : vector<4x96xf32> to vector<4x8xf32>
    %cst_140 = arith.constant dense<0.000000e+00> : vector<1x8xf32>
    %268 = tpu.matmul %266, %267, %cst_140 {dimension_numbers = #tpu.dot_dimension_numbers<[1], [0], [0], [1], [0, 0, 1, 1], [], []>} : vector<1x4xf32>, vector<4x8xf32>, vector<1x8xf32> -> vector<1x8xf32>
    %269 = vector.extract_strided_slice %262 {offsets = [2, 0], sizes = [1, 4], strides = [1, 1]} : vector<4x4xf32> to vector<1x4xf32>
    %270 = vector.extract_strided_slice %237 {offsets = [0, 80], sizes = [4, 8], strides = [1, 1]} : vector<4x96xf32> to vector<4x8xf32>
    %cst_141 = arith.constant dense<0.000000e+00> : vector<1x8xf32>
    %271 = tpu.matmul %269, %270, %cst_141 {dimension_numbers = #tpu.dot_dimension_numbers<[1], [0], [0], [1], [0, 0, 1, 1], [], []>} : vector<1x4xf32>, vector<4x8xf32>, vector<1x8xf32> -> vector<1x8xf32>
    %272 = vector.extract_strided_slice %262 {offsets = [3, 0], sizes = [1, 4], strides = [1, 1]} : vector<4x4xf32> to vector<1x4xf32>
    %273 = vector.extract_strided_slice %237 {offsets = [0, 88], sizes = [4, 8], strides = [1, 1]} : vector<4x96xf32> to vector<4x8xf32>
    %cst_142 = arith.constant dense<0.000000e+00> : vector<1x8xf32>
    %274 = tpu.matmul %272, %273, %cst_142 {dimension_numbers = #tpu.dot_dimension_numbers<[1], [0], [0], [1], [0, 0, 1, 1], [], []>} : vector<1x4xf32>, vector<4x8xf32>, vector<1x8xf32> -> vector<1x8xf32>
    %275 = tpu.concatenate %265, %268, %271, %274 in 1 : vector<1x8xf32>, vector<1x8xf32>, vector<1x8xf32>, vector<1x8xf32> -> vector<1x32xf32>
    %cst_143 = arith.constant dense<0.000000e+00> : vector<1x32xf32>
    %276 = tpu.matmul %275, %232, %cst_143 {dimension_numbers = #tpu.dot_dimension_numbers<[1], [0], [0], [1], [0, 0, 1, 1], [], []>} : vector<1x32xf32>, vector<32x32xf32>, vector<1x32xf32> -> vector<1x32xf32>
    %277 = arith.addf %276, %234 : vector<1x32xf32>
    %c0_144 = arith.constant 0 : index
    %c0_145 = arith.constant 0 : index
    %278 = vector.load %arg13[%c0_144, %c0_145] : memref<12x32xf32, #tpu.memory_space<vmem>>, vector<1x32xf32>
    tpu.vector_store %arg13[%c0_144, %c0_145], %277 {strides = array<i32>} : memref<12x32xf32, #tpu.memory_space<vmem>>, vector<1x32xf32>,
    %c4_146 = arith.constant 4 : index
    %c0_147 = arith.constant 0 : index
    %279 = vector.load %arg13[%c4_146, %c0_147] : memref<12x32xf32, #tpu.memory_space<vmem>>, vector<1x32xf32>
    %c5_148 = arith.constant 5 : index
    %c0_149 = arith.constant 0 : index
    %280 = vector.load %arg13[%c5_148, %c0_149] : memref<12x32xf32, #tpu.memory_space<vmem>>, vector<1x32xf32>
    %c6_150 = arith.constant 6 : index
    %c0_151 = arith.constant 0 : index
    %281 = vector.load %arg13[%c6_150, %c0_151] : memref<12x32xf32, #tpu.memory_space<vmem>>, vector<1x32xf32>
    %282 = tpu.concatenate %279, %280, %281 in 0 : vector<1x32xf32>, vector<1x32xf32>, vector<1x32xf32> -> vector<3x32xf32>
    %c0_152 = arith.constant 0 : index
    %c32_153 = arith.constant 32 : index
    %c0_154 = arith.constant 0 : index
    %283 = vector.load %arg8[%c0_152, %c32_153, %c0_154] : memref<1x128x96xf32, #tpu.memory_space<vmem>>, vector<1x32x96xf32>
    %284 = vector.shape_cast %283 : vector<1x32x96xf32> to vector<32x96xf32>
    %c0_155 = arith.constant 0 : index
    %c1_156 = arith.constant 1 : index
    %c0_157 = arith.constant 0 : index
    %285 = vector.load %arg10[%c0_155, %c1_156, %c0_157] : memref<1x4x96xf32, #tpu.memory_space<vmem>>, vector<1x1x96xf32>
    %286 = vector.shape_cast %285 : vector<1x1x96xf32> to vector<1x96xf32>
    %c0_158 = arith.constant 0 : index
    %c224_159 = arith.constant 224 : index
    %c0_160 = arith.constant 0 : index
    %287 = vector.load %arg7[%c0_158, %c224_159, %c0_160] : memref<1x544x32xf32, #tpu.memory_space<vmem>>, vector<1x32x32xf32>
    %288 = vector.shape_cast %287 : vector<1x32x32xf32> to vector<32x32xf32>
    %c0_161 = arith.constant 0 : index
    %c11_162 = arith.constant 11 : index
    %c0_163 = arith.constant 0 : index
    %289 = vector.load %arg9[%c0_161, %c11_162, %c0_163] : memref<1x25x32xf32, #tpu.memory_space<vmem>>, vector<1x1x32xf32>
    %290 = vector.shape_cast %289 : vector<1x1x32xf32> to vector<1x32xf32>
    %cst_164 = arith.constant dense<0.000000e+00> : vector<3x96xf32>
    %291 = tpu.matmul %282, %284, %cst_164 {dimension_numbers = #tpu.dot_dimension_numbers<[1], [0], [0], [1], [0, 0, 1, 1], [], []>} : vector<3x32xf32>, vector<32x96xf32>, vector<3x96xf32> -> vector<3x96xf32>
    %292 = vector.broadcast %286 : vector<1x96xf32> to vector<3x96xf32>
    %293 = arith.addf %291, %292 : vector<3x96xf32>
    %294 = vector.extract_strided_slice %293 {offsets = [0, 0], sizes = [1, 8], strides = [1, 1]} : vector<3x96xf32> to vector<1x8xf32>
    %295 = vector.extract_strided_slice %293 {offsets = [0, 32], sizes = [3, 8], strides = [1, 1]} : vector<3x96xf32> to vector<3x8xf32>
    %cst_165 = arith.constant dense<0.000000e+00> : vector<1x3xf32>
    %296 = tpu.matmul %294, %295, %cst_165 {dimension_numbers = #tpu.dot_dimension_numbers<[1], [1], [0], [0], [0, 0, 1, 0], [], []>} : vector<1x8xf32>, vector<3x8xf32>, vector<1x3xf32> -> vector<1x3xf32>
    %297 = vector.extract_strided_slice %293 {offsets = [0, 8], sizes = [1, 8], strides = [1, 1]} : vector<3x96xf32> to vector<1x8xf32>
    %298 = vector.extract_strided_slice %293 {offsets = [0, 40], sizes = [3, 8], strides = [1, 1]} : vector<3x96xf32> to vector<3x8xf32>
    %cst_166 = arith.constant dense<0.000000e+00> : vector<1x3xf32>
    %299 = tpu.matmul %297, %298, %cst_166 {dimension_numbers = #tpu.dot_dimension_numbers<[1], [1], [0], [0], [0, 0, 1, 0], [], []>} : vector<1x8xf32>, vector<3x8xf32>, vector<1x3xf32> -> vector<1x3xf32>
    %300 = vector.extract_strided_slice %293 {offsets = [0, 16], sizes = [1, 8], strides = [1, 1]} : vector<3x96xf32> to vector<1x8xf32>
    %301 = vector.extract_strided_slice %293 {offsets = [0, 48], sizes = [3, 8], strides = [1, 1]} : vector<3x96xf32> to vector<3x8xf32>
    %cst_167 = arith.constant dense<0.000000e+00> : vector<1x3xf32>
    %302 = tpu.matmul %300, %301, %cst_167 {dimension_numbers = #tpu.dot_dimension_numbers<[1], [1], [0], [0], [0, 0, 1, 0], [], []>} : vector<1x8xf32>, vector<3x8xf32>, vector<1x3xf32> -> vector<1x3xf32>
    %303 = vector.extract_strided_slice %293 {offsets = [0, 24], sizes = [1, 8], strides = [1, 1]} : vector<3x96xf32> to vector<1x8xf32>
    %304 = vector.extract_strided_slice %293 {offsets = [0, 56], sizes = [3, 8], strides = [1, 1]} : vector<3x96xf32> to vector<3x8xf32>
    %cst_168 = arith.constant dense<0.000000e+00> : vector<1x3xf32>
    %305 = tpu.matmul %303, %304, %cst_168 {dimension_numbers = #tpu.dot_dimension_numbers<[1], [1], [0], [0], [0, 0, 1, 0], [], []>} : vector<1x8xf32>, vector<3x8xf32>, vector<1x3xf32> -> vector<1x3xf32>
    %306 = tpu.concatenate %296, %299, %302, %305 in 0 : vector<1x3xf32>, vector<1x3xf32>, vector<1x3xf32>, vector<1x3xf32> -> vector<4x3xf32>
    %cst_169 = arith.constant 0.353553385 : f32
    %307 = vector.broadcast %cst_169 : f32 to vector<4x3xf32>
    %308 = arith.mulf %306, %307 : vector<4x3xf32>
    %cst_170 = arith.constant dense<0xFF800000> : vector<4xf32>
    %309 = vector.multi_reduction <maximumf>, %308, %cst_170 [1] : vector<4x3xf32> to vector<4xf32>
    %310 = vector.shape_cast %309 : vector<4xf32> to vector<4x1xf32>
    %311 = vector.broadcast %310 : vector<4x1xf32> to vector<4x3xf32>
    %312 = arith.subf %308, %311 : vector<4x3xf32>
    %313 = math.exp %312 : vector<4x3xf32>
    %cst_171 = arith.constant dense<0.000000e+00> : vector<4xf32>
    %314 = vector.multi_reduction <add>, %313, %cst_171 [1] : vector<4x3xf32> to vector<4xf32>
    %315 = vector.shape_cast %314 : vector<4xf32> to vector<4x1xf32>
    %316 = tpu.reciprocal %315 {approx = true} : vector<4x1xf32> -> vector<4x1xf32>
    %317 = vector.broadcast %316 : vector<4x1xf32> to vector<4x3xf32>
    %318 = arith.mulf %313, %317 : vector<4x3xf32>
    %319 = vector.extract_strided_slice %318 {offsets = [0, 0], sizes = [1, 3], strides = [1, 1]} : vector<4x3xf32> to vector<1x3xf32>
    %320 = vector.extract_strided_slice %293 {offsets = [0, 64], sizes = [3, 8], strides = [1, 1]} : vector<3x96xf32> to vector<3x8xf32>
    %cst_172 = arith.constant dense<0.000000e+00> : vector<1x8xf32>
    %321 = tpu.matmul %319, %320, %cst_172 {dimension_numbers = #tpu.dot_dimension_numbers<[1], [0], [0], [1], [0, 0, 1, 1], [], []>} : vector<1x3xf32>, vector<3x8xf32>, vector<1x8xf32> -> vector<1x8xf32>
    %322 = vector.extract_strided_slice %318 {offsets = [1, 0], sizes = [1, 3], strides = [1, 1]} : vector<4x3xf32> to vector<1x3xf32>
    %323 = vector.extract_strided_slice %293 {offsets = [0, 72], sizes = [3, 8], strides = [1, 1]} : vector<3x96xf32> to vector<3x8xf32>
    %cst_173 = arith.constant dense<0.000000e+00> : vector<1x8xf32>
    %324 = tpu.matmul %322, %323, %cst_173 {dimension_numbers = #tpu.dot_dimension_numbers<[1], [0], [0], [1], [0, 0, 1, 1], [], []>} : vector<1x3xf32>, vector<3x8xf32>, vector<1x8xf32> -> vector<1x8xf32>
    %325 = vector.extract_strided_slice %318 {offsets = [2, 0], sizes = [1, 3], strides = [1, 1]} : vector<4x3xf32> to vector<1x3xf32>
    %326 = vector.extract_strided_slice %293 {offsets = [0, 80], sizes = [3, 8], strides = [1, 1]} : vector<3x96xf32> to vector<3x8xf32>
    %cst_174 = arith.constant dense<0.000000e+00> : vector<1x8xf32>
    %327 = tpu.matmul %325, %326, %cst_174 {dimension_numbers = #tpu.dot_dimension_numbers<[1], [0], [0], [1], [0, 0, 1, 1], [], []>} : vector<1x3xf32>, vector<3x8xf32>, vector<1x8xf32> -> vector<1x8xf32>
    %328 = vector.extract_strided_slice %318 {offsets = [3, 0], sizes = [1, 3], strides = [1, 1]} : vector<4x3xf32> to vector<1x3xf32>
    %329 = vector.extract_strided_slice %293 {offsets = [0, 88], sizes = [3, 8], strides = [1, 1]} : vector<3x96xf32> to vector<3x8xf32>
    %cst_175 = arith.constant dense<0.000000e+00> : vector<1x8xf32>
    %330 = tpu.matmul %328, %329, %cst_175 {dimension_numbers = #tpu.dot_dimension_numbers<[1], [0], [0], [1], [0, 0, 1, 1], [], []>} : vector<1x3xf32>, vector<3x8xf32>, vector<1x8xf32> -> vector<1x8xf32>
    %331 = tpu.concatenate %321, %324, %327, %330 in 1 : vector<1x8xf32>, vector<1x8xf32>, vector<1x8xf32>, vector<1x8xf32> -> vector<1x32xf32>
    %cst_176 = arith.constant dense<0.000000e+00> : vector<1x32xf32>
    %332 = tpu.matmul %331, %288, %cst_176 {dimension_numbers = #tpu.dot_dimension_numbers<[1], [0], [0], [1], [0, 0, 1, 1], [], []>} : vector<1x32xf32>, vector<32x32xf32>, vector<1x32xf32> -> vector<1x32xf32>
    %333 = arith.addf %332, %290 : vector<1x32xf32>
    %c4_177 = arith.constant 4 : index
    %c0_178 = arith.constant 0 : index
    %334 = vector.load %arg13[%c4_177, %c0_178] : memref<12x32xf32, #tpu.memory_space<vmem>>, vector<1x32xf32>
    tpu.vector_store %arg13[%c4_177, %c0_178], %333 {strides = array<i32>} : memref<12x32xf32, #tpu.memory_space<vmem>>, vector<1x32xf32>,
    %c0_179 = arith.constant 0 : index
    %c0_180 = arith.constant 0 : index
    %335 = vector.load %arg5[%c0_179, %c0_180] : memref<8x18xf32, #tpu.memory_space<vmem>>, vector<8x18xf32>
    %cst_181 = arith.constant dense<0.000000e+00> : vector<8x18xf32>
    %336 = tpu.matmul %335, %155, %cst_181 {dimension_numbers = #tpu.dot_dimension_numbers<[1], [0], [0], [1], [0, 0, 1, 1], [], []>} : vector<8x18xf32>, vector<18x18xf32>, vector<8x18xf32> -> vector<8x18xf32>
    %c0_182 = arith.constant 0 : index
    %c0_183 = arith.constant 0 : index
    %337 = vector.load %arg6[%c0_182, %c0_183] : memref<18x8xf32, #tpu.memory_space<vmem>>, vector<18x8xf32>
    %cst_184 = arith.constant dense<0.000000e+00> : vector<8x8xf32>
    %338 = tpu.matmul %336, %337, %cst_184 {dimension_numbers = #tpu.dot_dimension_numbers<[1], [0], [0], [1], [0, 0, 1, 1], [], []>} : vector<8x18xf32>, vector<18x8xf32>, vector<8x8xf32> -> vector<8x8xf32>
    %c0_185 = arith.constant 0 : index
    %c0_186 = arith.constant 0 : index
    %339 = vector.load %arg13[%c0_185, %c0_186] : memref<12x32xf32, #tpu.memory_space<vmem>>, vector<1x32xf32>
    %c4_187 = arith.constant 4 : index
    %c0_188 = arith.constant 0 : index
    %340 = vector.load %arg13[%c4_187, %c0_188] : memref<12x32xf32, #tpu.memory_space<vmem>>, vector<1x32xf32>
    %341 = tpu.concatenate %339, %340 in 0 : vector<1x32xf32>, vector<1x32xf32> -> vector<2x32xf32>
    %c0_189 = arith.constant 0 : index
    %c0_190 = arith.constant 0 : index
    %342 = vector.load %arg12[%c0_189, %c0_190] : memref<18x32xf32, #tpu.memory_space<vmem>>, vector<1x32xf32>
    %c9_191 = arith.constant 9 : index
    %c0_192 = arith.constant 0 : index
    %343 = vector.load %arg12[%c9_191, %c0_192] : memref<18x32xf32, #tpu.memory_space<vmem>>, vector<1x32xf32>
    %344 = tpu.concatenate %342, %343 in 0 : vector<1x32xf32>, vector<1x32xf32> -> vector<2x32xf32>
    %c0_193 = arith.constant 0 : index
    %c416 = arith.constant 416 : index
    %c0_194 = arith.constant 0 : index
    %345 = vector.load %arg7[%c0_193, %c416, %c0_194] : memref<1x544x32xf32, #tpu.memory_space<vmem>>, vector<1x32x32xf32>
    %346 = vector.shape_cast %345 : vector<1x32x32xf32> to vector<32x32xf32>
    %cst_195 = arith.constant dense<0.000000e+00> : vector<2x32xf32>
    %347 = tpu.matmul %344, %346, %cst_195 {dimension_numbers = #tpu.dot_dimension_numbers<[1], [0], [0], [1], [0, 0, 1, 1], [], []>} : vector<2x32xf32>, vector<32x32xf32>, vector<2x32xf32> -> vector<2x32xf32>
    %c0_196 = arith.constant 0 : index
    %c21 = arith.constant 21 : index
    %c0_197 = arith.constant 0 : index
    %348 = vector.load %arg9[%c0_196, %c21, %c0_197] : memref<1x25x32xf32, #tpu.memory_space<vmem>>, vector<1x1x32xf32>
    %349 = vector.shape_cast %348 : vector<1x1x32xf32> to vector<1x32xf32>
    %350 = vector.broadcast %349 : vector<1x32xf32> to vector<2x32xf32>
    %351 = arith.addf %347, %350 : vector<2x32xf32>
    %352 = arith.mulf %344, %351 : vector<2x32xf32>
    %cst_198 = arith.constant dense<0.000000e+00> : vector<2xf32>
    %353 = vector.multi_reduction <add>, %352, %cst_198 [1] : vector<2x32xf32> to vector<2xf32>
    %354 = vector.shape_cast %353 : vector<2xf32> to vector<2x1xf32>
    %355 = arith.mulf %341, %344 : vector<2x32xf32>
    %cst_199 = arith.constant dense<0.000000e+00> : vector<2xf32>
    %356 = vector.multi_reduction <add>, %355, %cst_199 [1] : vector<2x32xf32> to vector<2xf32>
    %357 = vector.shape_cast %356 : vector<2xf32> to vector<2x1xf32>
    %358 = arith.maximumf %354, %357 : vector<2x1xf32>
    %359 = arith.subf %354, %358 : vector<2x1xf32>
    %360 = math.exp %359 : vector<2x1xf32>
    %361 = arith.subf %357, %358 : vector<2x1xf32>
    %362 = math.exp %361 : vector<2x1xf32>
    %363 = arith.addf %360, %362 : vector<2x1xf32>
    %364 = tpu.reciprocal %363 {approx = true} : vector<2x1xf32> -> vector<2x1xf32>
    %365 = arith.mulf %360, %364 : vector<2x1xf32>
    %366 = vector.broadcast %365 : vector<2x1xf32> to vector<2x32xf32>
    %367 = arith.mulf %366, %344 : vector<2x32xf32>
    %368 = arith.mulf %362, %364 : vector<2x1xf32>
    %369 = vector.broadcast %368 : vector<2x1xf32> to vector<2x32xf32>
    %370 = arith.mulf %369, %341 : vector<2x32xf32>
    %371 = arith.addf %367, %370 : vector<2x32xf32>
    %c0_200 = arith.constant 0 : index
    %c448 = arith.constant 448 : index
    %c0_201 = arith.constant 0 : index
    %372 = vector.load %arg7[%c0_200, %c448, %c0_201] : memref<1x544x32xf32, #tpu.memory_space<vmem>>, vector<1x32x32xf32>
    %373 = vector.shape_cast %372 : vector<1x32x32xf32> to vector<32x32xf32>
    %cst_202 = arith.constant dense<0.000000e+00> : vector<2x32xf32>
    %374 = tpu.matmul %341, %373, %cst_202 {dimension_numbers = #tpu.dot_dimension_numbers<[1], [0], [0], [1], [0, 0, 1, 1], [], []>} : vector<2x32xf32>, vector<32x32xf32>, vector<2x32xf32> -> vector<2x32xf32>
    %c0_203 = arith.constant 0 : index
    %c22 = arith.constant 22 : index
    %c0_204 = arith.constant 0 : index
    %375 = vector.load %arg9[%c0_203, %c22, %c0_204] : memref<1x25x32xf32, #tpu.memory_space<vmem>>, vector<1x1x32xf32>
    %376 = vector.shape_cast %375 : vector<1x1x32xf32> to vector<1x32xf32>
    %377 = vector.broadcast %376 : vector<1x32xf32> to vector<2x32xf32>
    %378 = arith.addf %374, %377 : vector<2x32xf32>
    %379 = arith.mulf %378, %341 : vector<2x32xf32>
    %cst_205 = arith.constant dense<0.000000e+00> : vector<2xf32>
    %380 = vector.multi_reduction <add>, %379, %cst_205 [1] : vector<2x32xf32> to vector<2xf32>
    %381 = vector.shape_cast %380 : vector<2xf32> to vector<2x1xf32>
    %382 = arith.mulf %341, %344 : vector<2x32xf32>
    %cst_206 = arith.constant dense<0.000000e+00> : vector<2xf32>
    %383 = vector.multi_reduction <add>, %382, %cst_206 [1] : vector<2x32xf32> to vector<2xf32>
    %384 = vector.shape_cast %383 : vector<2xf32> to vector<2x1xf32>
    %385 = arith.maximumf %381, %384 : vector<2x1xf32>
    %386 = arith.subf %381, %385 : vector<2x1xf32>
    %387 = math.exp %386 : vector<2x1xf32>
    %388 = arith.subf %384, %385 : vector<2x1xf32>
    %389 = math.exp %388 : vector<2x1xf32>
    %390 = arith.addf %387, %389 : vector<2x1xf32>
    %391 = tpu.reciprocal %390 {approx = true} : vector<2x1xf32> -> vector<2x1xf32>
    %392 = arith.mulf %387, %391 : vector<2x1xf32>
    %393 = vector.broadcast %392 : vector<2x1xf32> to vector<2x32xf32>
    %394 = arith.mulf %393, %341 : vector<2x32xf32>
    %395 = arith.mulf %389, %391 : vector<2x1xf32>
    %396 = vector.broadcast %395 : vector<2x1xf32> to vector<2x32xf32>
    %397 = arith.mulf %396, %344 : vector<2x32xf32>
    %398 = arith.addf %394, %397 : vector<2x32xf32>
    %399 = vector.extract_strided_slice %371 {offsets = [0, 0], sizes = [1, 32], strides = [1, 1]} : vector<2x32xf32> to vector<1x32xf32>
    %c0_207 = arith.constant 0 : index
    %c0_208 = arith.constant 0 : index
    %400 = vector.load %arg12[%c0_207, %c0_208] : memref<18x32xf32, #tpu.memory_space<vmem>>, vector<1x32xf32>
    tpu.vector_store %arg12[%c0_207, %c0_208], %399 {strides = array<i32>} : memref<18x32xf32, #tpu.memory_space<vmem>>, vector<1x32xf32>,
    %401 = vector.extract_strided_slice %398 {offsets = [0, 0], sizes = [1, 32], strides = [1, 1]} : vector<2x32xf32> to vector<1x32xf32>
    %c0_209 = arith.constant 0 : index
    %c0_210 = arith.constant 0 : index
    %402 = vector.load %arg13[%c0_209, %c0_210] : memref<12x32xf32, #tpu.memory_space<vmem>>, vector<1x32xf32>
    tpu.vector_store %arg13[%c0_209, %c0_210], %401 {strides = array<i32>} : memref<12x32xf32, #tpu.memory_space<vmem>>, vector<1x32xf32>,
    %403 = vector.extract_strided_slice %371 {offsets = [1, 0], sizes = [1, 32], strides = [1, 1]} : vector<2x32xf32> to vector<1x32xf32>
    %c9_211 = arith.constant 9 : index
    %c0_212 = arith.constant 0 : index
    %404 = vector.load %arg12[%c9_211, %c0_212] : memref<18x32xf32, #tpu.memory_space<vmem>>, vector<1x32xf32>
    tpu.vector_store %arg12[%c9_211, %c0_212], %403 {strides = array<i32>} : memref<18x32xf32, #tpu.memory_space<vmem>>, vector<1x32xf32>,
    %405 = vector.extract_strided_slice %398 {offsets = [1, 0], sizes = [1, 32], strides = [1, 1]} : vector<2x32xf32> to vector<1x32xf32>
    %c4_213 = arith.constant 4 : index
    %c0_214 = arith.constant 0 : index
    %406 = vector.load %arg13[%c4_213, %c0_214] : memref<12x32xf32, #tpu.memory_space<vmem>>, vector<1x32xf32>
    tpu.vector_store %arg13[%c4_213, %c0_214], %405 {strides = array<i32>} : memref<12x32xf32, #tpu.memory_space<vmem>>, vector<1x32xf32>,
    %c0_215 = arith.constant 0 : index
    %c0_216 = arith.constant 0 : index
    %407 = vector.load %arg12[%c0_215, %c0_216] : memref<18x32xf32, #tpu.memory_space<vmem>>, vector<18x32xf32>
    %c0_217 = arith.constant 0 : index
    %c12 = arith.constant 12 : index
    %c0_218 = arith.constant 0 : index
    %408 = vector.load %arg9[%c0_217, %c12, %c0_218] : memref<1x25x32xf32, #tpu.memory_space<vmem>>, vector<1x1x32xf32>
    %409 = vector.shape_cast %408 : vector<1x1x32xf32> to vector<1x32xf32>
    %c0_219 = arith.constant 0 : index
    %c13 = arith.constant 13 : index
    %c0_220 = arith.constant 0 : index
    %410 = vector.load %arg9[%c0_219, %c13, %c0_220] : memref<1x25x32xf32, #tpu.memory_space<vmem>>, vector<1x1x32xf32>
    %411 = vector.shape_cast %410 : vector<1x1x32xf32> to vector<1x32xf32>
    %cst_221 = arith.constant dense<0.000000e+00> : vector<18xf32>
    %412 = vector.multi_reduction <add>, %407, %cst_221 [1] : vector<18x32xf32> to vector<18xf32>
    %413 = vector.shape_cast %412 : vector<18xf32> to vector<18x1xf32>
    %cst_222 = arith.constant 3.200000e+01 : f32
    %414 = vector.broadcast %cst_222 : f32 to vector<18x1xf32>
    %415 = arith.divf %413, %414 : vector<18x1xf32>
    %416 = vector.broadcast %415 : vector<18x1xf32> to vector<18x32xf32>
    %417 = arith.subf %407, %416 : vector<18x32xf32>
    %418 = arith.mulf %417, %417 : vector<18x32xf32>
    %cst_223 = arith.constant dense<0.000000e+00> : vector<18xf32>
    %419 = vector.multi_reduction <add>, %418, %cst_223 [1] : vector<18x32xf32> to vector<18xf32>
    %420 = vector.shape_cast %419 : vector<18xf32> to vector<18x1xf32>
    %cst_224 = arith.constant 3.200000e+01 : f32
    %421 = vector.broadcast %cst_224 : f32 to vector<18x1xf32>
    %422 = arith.divf %420, %421 : vector<18x1xf32>
    %cst_225 = arith.constant 9.99999974E-6 : f32
    %423 = vector.broadcast %cst_225 : f32 to vector<18x1xf32>
    %424 = arith.addf %422, %423 : vector<18x1xf32>
    %425 = math.rsqrt %424 : vector<18x1xf32>
    %426 = vector.broadcast %425 : vector<18x1xf32> to vector<18x32xf32>
    %427 = arith.mulf %417, %426 : vector<18x32xf32>
    %428 = vector.broadcast %409 : vector<1x32xf32> to vector<18x32xf32>
    %429 = arith.mulf %427, %428 : vector<18x32xf32>
    %430 = vector.broadcast %411 : vector<1x32xf32> to vector<18x32xf32>
    %431 = arith.addf %429, %430 : vector<18x32xf32>
    %c0_226 = arith.constant 0 : index
    %c64_227 = arith.constant 64 : index
    %c0_228 = arith.constant 0 : index
    %432 = vector.load %arg8[%c0_226, %c64_227, %c0_228] : memref<1x128x96xf32, #tpu.memory_space<vmem>>, vector<1x32x96xf32>
    %433 = vector.shape_cast %432 : vector<1x32x96xf32> to vector<32x96xf32>
    %c0_229 = arith.constant 0 : index
    %c2_230 = arith.constant 2 : index
    %c0_231 = arith.constant 0 : index
    %434 = vector.load %arg10[%c0_229, %c2_230, %c0_231] : memref<1x4x96xf32, #tpu.memory_space<vmem>>, vector<1x1x96xf32>
    %435 = vector.shape_cast %434 : vector<1x1x96xf32> to vector<1x96xf32>
    %c0_232 = arith.constant 0 : index
    %c256 = arith.constant 256 : index
    %c0_233 = arith.constant 0 : index
    %436 = vector.load %arg7[%c0_232, %c256, %c0_233] : memref<1x544x32xf32, #tpu.memory_space<vmem>>, vector<1x32x32xf32>
    %437 = vector.shape_cast %436 : vector<1x32x32xf32> to vector<32x32xf32>
    %c0_234 = arith.constant 0 : index
    %c16 = arith.constant 16 : index
    %c0_235 = arith.constant 0 : index
    %438 = vector.load %arg9[%c0_234, %c16, %c0_235] : memref<1x25x32xf32, #tpu.memory_space<vmem>>, vector<1x1x32xf32>
    %439 = vector.shape_cast %438 : vector<1x1x32xf32> to vector<1x32xf32>
    %cst_236 = arith.constant dense<0.000000e+00> : vector<18x96xf32>
    %440 = tpu.matmul %431, %433, %cst_236 {dimension_numbers = #tpu.dot_dimension_numbers<[1], [0], [0], [1], [0, 0, 1, 1], [], []>} : vector<18x32xf32>, vector<32x96xf32>, vector<18x96xf32> -> vector<18x96xf32>
    %441 = vector.broadcast %435 : vector<1x96xf32> to vector<18x96xf32>
    %442 = arith.addf %440, %441 : vector<18x96xf32>
    %cst_237 = arith.constant 0.000000e+00 : f32
    %443 = vector.broadcast %cst_237 : f32 to vector<18x18xf32>
    %444 = vector.extract_strided_slice %442 {offsets = [0, 0], sizes = [18, 8], strides = [1, 1]} : vector<18x96xf32> to vector<18x8xf32>
    %445 = vector.extract_strided_slice %442 {offsets = [0, 32], sizes = [18, 8], strides = [1, 1]} : vector<18x96xf32> to vector<18x8xf32>
    %cst_238 = arith.constant dense<0.000000e+00> : vector<18x18xf32>
    %446 = tpu.matmul %444, %445, %cst_238 {dimension_numbers = #tpu.dot_dimension_numbers<[1], [1], [0], [0], [0, 0, 1, 0], [], []>} : vector<18x8xf32>, vector<18x8xf32>, vector<18x18xf32> -> vector<18x18xf32>
    %cst_239 = arith.constant 0.353553385 : f32
    %447 = vector.broadcast %cst_239 : f32 to vector<18x18xf32>
    %448 = arith.mulf %446, %447 : vector<18x18xf32>
    %449 = arith.addf %448, %1 : vector<18x18xf32>
    %cst_240 = arith.constant dense<0xFF800000> : vector<18xf32>
    %450 = vector.multi_reduction <maximumf>, %449, %cst_240 [1] : vector<18x18xf32> to vector<18xf32>
    %451 = vector.shape_cast %450 : vector<18xf32> to vector<18x1xf32>
    %452 = vector.broadcast %451 : vector<18x1xf32> to vector<18x18xf32>
    %453 = arith.subf %449, %452 : vector<18x18xf32>
    %454 = math.exp %453 : vector<18x18xf32>
    %cst_241 = arith.constant dense<0.000000e+00> : vector<18xf32>
    %455 = vector.multi_reduction <add>, %454, %cst_241 [1] : vector<18x18xf32> to vector<18xf32>
    %456 = vector.shape_cast %455 : vector<18xf32> to vector<18x1xf32>
    %457 = tpu.reciprocal %456 {approx = true} : vector<18x1xf32> -> vector<18x1xf32>
    %458 = vector.broadcast %457 : vector<18x1xf32> to vector<18x18xf32>
    %459 = arith.mulf %454, %458 : vector<18x18xf32>
    %460 = arith.addf %443, %459 : vector<18x18xf32>
    %461 = vector.extract_strided_slice %442 {offsets = [0, 64], sizes = [18, 8], strides = [1, 1]} : vector<18x96xf32> to vector<18x8xf32>
    %cst_242 = arith.constant dense<0.000000e+00> : vector<18x8xf32>
    %462 = tpu.matmul %459, %461, %cst_242 {dimension_numbers = #tpu.dot_dimension_numbers<[1], [0], [0], [1], [0, 0, 1, 1], [], []>} : vector<18x18xf32>, vector<18x8xf32>, vector<18x8xf32> -> vector<18x8xf32>
    %463 = vector.extract_strided_slice %442 {offsets = [0, 8], sizes = [18, 8], strides = [1, 1]} : vector<18x96xf32> to vector<18x8xf32>
    %464 = vector.extract_strided_slice %442 {offsets = [0, 40], sizes = [18, 8], strides = [1, 1]} : vector<18x96xf32> to vector<18x8xf32>
    %cst_243 = arith.constant dense<0.000000e+00> : vector<18x18xf32>
    %465 = tpu.matmul %463, %464, %cst_243 {dimension_numbers = #tpu.dot_dimension_numbers<[1], [1], [0], [0], [0, 0, 1, 0], [], []>} : vector<18x8xf32>, vector<18x8xf32>, vector<18x18xf32> -> vector<18x18xf32>
    %cst_244 = arith.constant 0.353553385 : f32
    %466 = vector.broadcast %cst_244 : f32 to vector<18x18xf32>
    %467 = arith.mulf %465, %466 : vector<18x18xf32>
    %468 = arith.addf %467, %1 : vector<18x18xf32>
    %cst_245 = arith.constant dense<0xFF800000> : vector<18xf32>
    %469 = vector.multi_reduction <maximumf>, %468, %cst_245 [1] : vector<18x18xf32> to vector<18xf32>
    %470 = vector.shape_cast %469 : vector<18xf32> to vector<18x1xf32>
    %471 = vector.broadcast %470 : vector<18x1xf32> to vector<18x18xf32>
    %472 = arith.subf %468, %471 : vector<18x18xf32>
    %473 = math.exp %472 : vector<18x18xf32>
    %cst_246 = arith.constant dense<0.000000e+00> : vector<18xf32>
    %474 = vector.multi_reduction <add>, %473, %cst_246 [1] : vector<18x18xf32> to vector<18xf32>
    %475 = vector.shape_cast %474 : vector<18xf32> to vector<18x1xf32>
    %476 = tpu.reciprocal %475 {approx = true} : vector<18x1xf32> -> vector<18x1xf32>
    %477 = vector.broadcast %476 : vector<18x1xf32> to vector<18x18xf32>
    %478 = arith.mulf %473, %477 : vector<18x18xf32>
    %479 = arith.addf %460, %478 : vector<18x18xf32>
    %480 = vector.extract_strided_slice %442 {offsets = [0, 72], sizes = [18, 8], strides = [1, 1]} : vector<18x96xf32> to vector<18x8xf32>
    %cst_247 = arith.constant dense<0.000000e+00> : vector<18x8xf32>
    %481 = tpu.matmul %478, %480, %cst_247 {dimension_numbers = #tpu.dot_dimension_numbers<[1], [0], [0], [1], [0, 0, 1, 1], [], []>} : vector<18x18xf32>, vector<18x8xf32>, vector<18x8xf32> -> vector<18x8xf32>
    %482 = vector.extract_strided_slice %442 {offsets = [0, 16], sizes = [18, 8], strides = [1, 1]} : vector<18x96xf32> to vector<18x8xf32>
    %483 = vector.extract_strided_slice %442 {offsets = [0, 48], sizes = [18, 8], strides = [1, 1]} : vector<18x96xf32> to vector<18x8xf32>
    %cst_248 = arith.constant dense<0.000000e+00> : vector<18x18xf32>
    %484 = tpu.matmul %482, %483, %cst_248 {dimension_numbers = #tpu.dot_dimension_numbers<[1], [1], [0], [0], [0, 0, 1, 0], [], []>} : vector<18x8xf32>, vector<18x8xf32>, vector<18x18xf32> -> vector<18x18xf32>
    %cst_249 = arith.constant 0.353553385 : f32
    %485 = vector.broadcast %cst_249 : f32 to vector<18x18xf32>
    %486 = arith.mulf %484, %485 : vector<18x18xf32>
    %487 = arith.addf %486, %1 : vector<18x18xf32>
    %cst_250 = arith.constant dense<0xFF800000> : vector<18xf32>
    %488 = vector.multi_reduction <maximumf>, %487, %cst_250 [1] : vector<18x18xf32> to vector<18xf32>
    %489 = vector.shape_cast %488 : vector<18xf32> to vector<18x1xf32>
    %490 = vector.broadcast %489 : vector<18x1xf32> to vector<18x18xf32>
    %491 = arith.subf %487, %490 : vector<18x18xf32>
    %492 = math.exp %491 : vector<18x18xf32>
    %cst_251 = arith.constant dense<0.000000e+00> : vector<18xf32>
    %493 = vector.multi_reduction <add>, %492, %cst_251 [1] : vector<18x18xf32> to vector<18xf32>
    %494 = vector.shape_cast %493 : vector<18xf32> to vector<18x1xf32>
    %495 = tpu.reciprocal %494 {approx = true} : vector<18x1xf32> -> vector<18x1xf32>
    %496 = vector.broadcast %495 : vector<18x1xf32> to vector<18x18xf32>
    %497 = arith.mulf %492, %496 : vector<18x18xf32>
    %498 = arith.addf %479, %497 : vector<18x18xf32>
    %499 = vector.extract_strided_slice %442 {offsets = [0, 80], sizes = [18, 8], strides = [1, 1]} : vector<18x96xf32> to vector<18x8xf32>
    %cst_252 = arith.constant dense<0.000000e+00> : vector<18x8xf32>
    %500 = tpu.matmul %497, %499, %cst_252 {dimension_numbers = #tpu.dot_dimension_numbers<[1], [0], [0], [1], [0, 0, 1, 1], [], []>} : vector<18x18xf32>, vector<18x8xf32>, vector<18x8xf32> -> vector<18x8xf32>
    %501 = vector.extract_strided_slice %442 {offsets = [0, 24], sizes = [18, 8], strides = [1, 1]} : vector<18x96xf32> to vector<18x8xf32>
    %502 = vector.extract_strided_slice %442 {offsets = [0, 56], sizes = [18, 8], strides = [1, 1]} : vector<18x96xf32> to vector<18x8xf32>
    %cst_253 = arith.constant dense<0.000000e+00> : vector<18x18xf32>
    %503 = tpu.matmul %501, %502, %cst_253 {dimension_numbers = #tpu.dot_dimension_numbers<[1], [1], [0], [0], [0, 0, 1, 0], [], []>} : vector<18x8xf32>, vector<18x8xf32>, vector<18x18xf32> -> vector<18x18xf32>
    %cst_254 = arith.constant 0.353553385 : f32
    %504 = vector.broadcast %cst_254 : f32 to vector<18x18xf32>
    %505 = arith.mulf %503, %504 : vector<18x18xf32>
    %506 = arith.addf %505, %1 : vector<18x18xf32>
    %cst_255 = arith.constant dense<0xFF800000> : vector<18xf32>
    %507 = vector.multi_reduction <maximumf>, %506, %cst_255 [1] : vector<18x18xf32> to vector<18xf32>
    %508 = vector.shape_cast %507 : vector<18xf32> to vector<18x1xf32>
    %509 = vector.broadcast %508 : vector<18x1xf32> to vector<18x18xf32>
    %510 = arith.subf %506, %509 : vector<18x18xf32>
    %511 = math.exp %510 : vector<18x18xf32>
    %cst_256 = arith.constant dense<0.000000e+00> : vector<18xf32>
    %512 = vector.multi_reduction <add>, %511, %cst_256 [1] : vector<18x18xf32> to vector<18xf32>
    %513 = vector.shape_cast %512 : vector<18xf32> to vector<18x1xf32>
    %514 = tpu.reciprocal %513 {approx = true} : vector<18x1xf32> -> vector<18x1xf32>
    %515 = vector.broadcast %514 : vector<18x1xf32> to vector<18x18xf32>
    %516 = arith.mulf %511, %515 : vector<18x18xf32>
    %517 = arith.addf %498, %516 : vector<18x18xf32>
    %518 = vector.extract_strided_slice %442 {offsets = [0, 88], sizes = [18, 8], strides = [1, 1]} : vector<18x96xf32> to vector<18x8xf32>
    %cst_257 = arith.constant dense<0.000000e+00> : vector<18x8xf32>
    %519 = tpu.matmul %516, %518, %cst_257 {dimension_numbers = #tpu.dot_dimension_numbers<[1], [0], [0], [1], [0, 0, 1, 1], [], []>} : vector<18x18xf32>, vector<18x8xf32>, vector<18x8xf32> -> vector<18x8xf32>
    %520 = tpu.concatenate %462, %481, %500, %519 in 1 : vector<18x8xf32>, vector<18x8xf32>, vector<18x8xf32>, vector<18x8xf32> -> vector<18x32xf32>
    %cst_258 = arith.constant dense<0.000000e+00> : vector<18x32xf32>
    %521 = tpu.matmul %520, %437, %cst_258 {dimension_numbers = #tpu.dot_dimension_numbers<[1], [0], [0], [1], [0, 0, 1, 1], [], []>} : vector<18x32xf32>, vector<32x32xf32>, vector<18x32xf32> -> vector<18x32xf32>
    %522 = vector.broadcast %439 : vector<1x32xf32> to vector<18x32xf32>
    %523 = arith.addf %521, %522 : vector<18x32xf32>
    %cst_259 = arith.constant 2.500000e-01 : f32
    %524 = vector.broadcast %cst_259 : f32 to vector<18x18xf32>
    %525 = arith.mulf %517, %524 : vector<18x18xf32>
    %526 = arith.addf %407, %523 : vector<18x32xf32>
    %c0_260 = arith.constant 0 : index
    %c14 = arith.constant 14 : index
    %c0_261 = arith.constant 0 : index
    %527 = vector.load %arg9[%c0_260, %c14, %c0_261] : memref<1x25x32xf32, #tpu.memory_space<vmem>>, vector<1x1x32xf32>
    %528 = vector.shape_cast %527 : vector<1x1x32xf32> to vector<1x32xf32>
    %c0_262 = arith.constant 0 : index
    %c15 = arith.constant 15 : index
    %c0_263 = arith.constant 0 : index
    %529 = vector.load %arg9[%c0_262, %c15, %c0_263] : memref<1x25x32xf32, #tpu.memory_space<vmem>>, vector<1x1x32xf32>
    %530 = vector.shape_cast %529 : vector<1x1x32xf32> to vector<1x32xf32>
    %cst_264 = arith.constant dense<0.000000e+00> : vector<18xf32>
    %531 = vector.multi_reduction <add>, %526, %cst_264 [1] : vector<18x32xf32> to vector<18xf32>
    %532 = vector.shape_cast %531 : vector<18xf32> to vector<18x1xf32>
    %cst_265 = arith.constant 3.200000e+01 : f32
    %533 = vector.broadcast %cst_265 : f32 to vector<18x1xf32>
    %534 = arith.divf %532, %533 : vector<18x1xf32>
    %535 = vector.broadcast %534 : vector<18x1xf32> to vector<18x32xf32>
    %536 = arith.subf %526, %535 : vector<18x32xf32>
    %537 = arith.mulf %536, %536 : vector<18x32xf32>
    %cst_266 = arith.constant dense<0.000000e+00> : vector<18xf32>
    %538 = vector.multi_reduction <add>, %537, %cst_266 [1] : vector<18x32xf32> to vector<18xf32>
    %539 = vector.shape_cast %538 : vector<18xf32> to vector<18x1xf32>
    %cst_267 = arith.constant 3.200000e+01 : f32
    %540 = vector.broadcast %cst_267 : f32 to vector<18x1xf32>
    %541 = arith.divf %539, %540 : vector<18x1xf32>
    %cst_268 = arith.constant 9.99999974E-6 : f32
    %542 = vector.broadcast %cst_268 : f32 to vector<18x1xf32>
    %543 = arith.addf %541, %542 : vector<18x1xf32>
    %544 = math.rsqrt %543 : vector<18x1xf32>
    %545 = vector.broadcast %544 : vector<18x1xf32> to vector<18x32xf32>
    %546 = arith.mulf %536, %545 : vector<18x32xf32>
    %547 = vector.broadcast %528 : vector<1x32xf32> to vector<18x32xf32>
    %548 = arith.mulf %546, %547 : vector<18x32xf32>
    %549 = vector.broadcast %530 : vector<1x32xf32> to vector<18x32xf32>
    %550 = arith.addf %548, %549 : vector<18x32xf32>
    %c0_269 = arith.constant 0 : index
    %c288 = arith.constant 288 : index
    %c0_270 = arith.constant 0 : index
    %551 = vector.load %arg7[%c0_269, %c288, %c0_270] : memref<1x544x32xf32, #tpu.memory_space<vmem>>, vector<1x32x32xf32>
    %552 = vector.shape_cast %551 : vector<1x32x32xf32> to vector<32x32xf32>
    %cst_271 = arith.constant dense<0.000000e+00> : vector<18x32xf32>
    %553 = tpu.matmul %550, %552, %cst_271 {dimension_numbers = #tpu.dot_dimension_numbers<[1], [0], [0], [1], [0, 0, 1, 1], [], []>} : vector<18x32xf32>, vector<32x32xf32>, vector<18x32xf32> -> vector<18x32xf32>
    %c0_272 = arith.constant 0 : index
    %c17 = arith.constant 17 : index
    %c0_273 = arith.constant 0 : index
    %554 = vector.load %arg9[%c0_272, %c17, %c0_273] : memref<1x25x32xf32, #tpu.memory_space<vmem>>, vector<1x1x32xf32>
    %555 = vector.shape_cast %554 : vector<1x1x32xf32> to vector<1x32xf32>
    %556 = vector.broadcast %555 : vector<1x32xf32> to vector<18x32xf32>
    %557 = arith.addf %553, %556 : vector<18x32xf32>
    %cst_274 = arith.constant 0.000000e+00 : f32
    %558 = vector.broadcast %cst_274 : f32 to vector<18x32xf32>
    %559 = arith.cmpf ogt, %557, %558 : vector<18x32xf32>
    %560 = math.exp %557 : vector<18x32xf32>
    %cst_275 = arith.constant 1.000000e+00 : f32
    %561 = vector.broadcast %cst_275 : f32 to vector<18x32xf32>
    %562 = arith.subf %560, %561 : vector<18x32xf32>
    %cst_276 = arith.constant 1.67326319 : f32
    %563 = vector.broadcast %cst_276 : f32 to vector<18x32xf32>
    %564 = arith.mulf %563, %562 : vector<18x32xf32>
    %565 = arith.select %559, %557, %564 : vector<18x32xi1>, vector<18x32xf32>
    %cst_277 = arith.constant 1.05070102 : f32
    %566 = vector.broadcast %cst_277 : f32 to vector<18x32xf32>
    %567 = arith.mulf %566, %565 : vector<18x32xf32>
    %c0_278 = arith.constant 0 : index
    %c320 = arith.constant 320 : index
    %c0_279 = arith.constant 0 : index
    %568 = vector.load %arg7[%c0_278, %c320, %c0_279] : memref<1x544x32xf32, #tpu.memory_space<vmem>>, vector<1x32x32xf32>
    %569 = vector.shape_cast %568 : vector<1x32x32xf32> to vector<32x32xf32>
    %cst_280 = arith.constant dense<0.000000e+00> : vector<18x32xf32>
    %570 = tpu.matmul %567, %569, %cst_280 {dimension_numbers = #tpu.dot_dimension_numbers<[1], [0], [0], [1], [0, 0, 1, 1], [], []>} : vector<18x32xf32>, vector<32x32xf32>, vector<18x32xf32> -> vector<18x32xf32>
    %571 = arith.addf %526, %570 : vector<18x32xf32>
    %c0_281 = arith.constant 0 : index
    %c18 = arith.constant 18 : index
    %c0_282 = arith.constant 0 : index
    %572 = vector.load %arg9[%c0_281, %c18, %c0_282] : memref<1x25x32xf32, #tpu.memory_space<vmem>>, vector<1x1x32xf32>
    %573 = vector.shape_cast %572 : vector<1x1x32xf32> to vector<1x32xf32>
    %574 = vector.broadcast %573 : vector<1x32xf32> to vector<18x32xf32>
    %575 = arith.addf %571, %574 : vector<18x32xf32>
    %c0_283 = arith.constant 0 : index
    %c0_284 = arith.constant 0 : index
    %576 = vector.load %arg12[%c0_283, %c0_284] : memref<18x32xf32, #tpu.memory_space<vmem>>, vector<18x32xf32>
    tpu.vector_store %arg12[%c0_283, %c0_284], %575 {strides = array<i32>} : memref<18x32xf32, #tpu.memory_space<vmem>>, vector<18x32xf32>,
    %c0_285 = arith.constant 0 : index
    %c0_286 = arith.constant 0 : index
    %577 = vector.load %arg13[%c0_285, %c0_286] : memref<12x32xf32, #tpu.memory_space<vmem>>, vector<12x32xf32>
    %c0_287 = arith.constant 0 : index
    %c352 = arith.constant 352 : index
    %c0_288 = arith.constant 0 : index
    %578 = vector.load %arg7[%c0_287, %c352, %c0_288] : memref<1x544x32xf32, #tpu.memory_space<vmem>>, vector<1x32x32xf32>
    %579 = vector.shape_cast %578 : vector<1x32x32xf32> to vector<32x32xf32>
    %cst_289 = arith.constant dense<0.000000e+00> : vector<12x32xf32>
    %580 = tpu.matmul %577, %579, %cst_289 {dimension_numbers = #tpu.dot_dimension_numbers<[1], [0], [0], [1], [0, 0, 1, 1], [], []>} : vector<12x32xf32>, vector<32x32xf32>, vector<12x32xf32> -> vector<12x32xf32>
    %cst_290 = arith.constant dense<0.000000e+00> : vector<12x32xf32>
    %581 = tpu.matmul %0, %580, %cst_290 {dimension_numbers = #tpu.dot_dimension_numbers<[1], [0], [0], [1], [0, 0, 1, 1], [], []>} : vector<12x12xf32>, vector<12x32xf32>, vector<12x32xf32> -> vector<12x32xf32>
    %c0_291 = arith.constant 0 : index
    %c19 = arith.constant 19 : index
    %c0_292 = arith.constant 0 : index
    %582 = vector.load %arg9[%c0_291, %c19, %c0_292] : memref<1x25x32xf32, #tpu.memory_space<vmem>>, vector<1x1x32xf32>
    %583 = vector.shape_cast %582 : vector<1x1x32xf32> to vector<1x32xf32>
    %584 = vector.broadcast %583 : vector<1x32xf32> to vector<12x32xf32>
    %585 = arith.addf %581, %584 : vector<12x32xf32>
    %cst_293 = arith.constant 0.000000e+00 : f32
    %586 = vector.broadcast %cst_293 : f32 to vector<12x32xf32>
    %587 = arith.cmpf oge, %585, %586 : vector<12x32xf32>
    %cst_294 = arith.constant 0.00999999977 : f32
    %588 = vector.broadcast %cst_294 : f32 to vector<12x32xf32>
    %589 = arith.mulf %588, %585 : vector<12x32xf32>
    %590 = arith.select %587, %585, %589 : vector<12x32xi1>, vector<12x32xf32>
    %c0_295 = arith.constant 0 : index
    %c0_296 = arith.constant 0 : index
    %591 = vector.load %arg13[%c0_295, %c0_296] : memref<12x32xf32, #tpu.memory_space<vmem>>, vector<12x32xf32>
    tpu.vector_store %arg13[%c0_295, %c0_296], %590 {strides = array<i32>} : memref<12x32xf32, #tpu.memory_space<vmem>>, vector<12x32xf32>,
    %c0_297 = arith.constant 0 : index
    %c0_298 = arith.constant 0 : index
    %592 = vector.load %arg13[%c0_297, %c0_298] : memref<12x32xf32, #tpu.memory_space<vmem>>, vector<1x32xf32>
    %c1_299 = arith.constant 1 : index
    %c0_300 = arith.constant 0 : index
    %593 = vector.load %arg13[%c1_299, %c0_300] : memref<12x32xf32, #tpu.memory_space<vmem>>, vector<1x32xf32>
    %c2_301 = arith.constant 2 : index
    %c0_302 = arith.constant 0 : index
    %594 = vector.load %arg13[%c2_301, %c0_302] : memref<12x32xf32, #tpu.memory_space<vmem>>, vector<1x32xf32>
    %c3_303 = arith.constant 3 : index
    %c0_304 = arith.constant 0 : index
    %595 = vector.load %arg13[%c3_303, %c0_304] : memref<12x32xf32, #tpu.memory_space<vmem>>, vector<1x32xf32>
    %596 = tpu.concatenate %592, %593, %594, %595 in 0 : vector<1x32xf32>, vector<1x32xf32>, vector<1x32xf32>, vector<1x32xf32> -> vector<4x32xf32>
    %c0_305 = arith.constant 0 : index
    %c96_306 = arith.constant 96 : index
    %c0_307 = arith.constant 0 : index
    %597 = vector.load %arg8[%c0_305, %c96_306, %c0_307] : memref<1x128x96xf32, #tpu.memory_space<vmem>>, vector<1x32x96xf32>
    %598 = vector.shape_cast %597 : vector<1x32x96xf32> to vector<32x96xf32>
    %c0_308 = arith.constant 0 : index
    %c3_309 = arith.constant 3 : index
    %c0_310 = arith.constant 0 : index
    %599 = vector.load %arg10[%c0_308, %c3_309, %c0_310] : memref<1x4x96xf32, #tpu.memory_space<vmem>>, vector<1x1x96xf32>
    %600 = vector.shape_cast %599 : vector<1x1x96xf32> to vector<1x96xf32>
    %c0_311 = arith.constant 0 : index
    %c384 = arith.constant 384 : index
    %c0_312 = arith.constant 0 : index
    %601 = vector.load %arg7[%c0_311, %c384, %c0_312] : memref<1x544x32xf32, #tpu.memory_space<vmem>>, vector<1x32x32xf32>
    %602 = vector.shape_cast %601 : vector<1x32x32xf32> to vector<32x32xf32>
    %c0_313 = arith.constant 0 : index
    %c20 = arith.constant 20 : index
    %c0_314 = arith.constant 0 : index
    %603 = vector.load %arg9[%c0_313, %c20, %c0_314] : memref<1x25x32xf32, #tpu.memory_space<vmem>>, vector<1x1x32xf32>
    %604 = vector.shape_cast %603 : vector<1x1x32xf32> to vector<1x32xf32>
    %cst_315 = arith.constant dense<0.000000e+00> : vector<4x96xf32>
    %605 = tpu.matmul %596, %598, %cst_315 {dimension_numbers = #tpu.dot_dimension_numbers<[1], [0], [0], [1], [0, 0, 1, 1], [], []>} : vector<4x32xf32>, vector<32x96xf32>, vector<4x96xf32> -> vector<4x96xf32>
    %606 = vector.broadcast %600 : vector<1x96xf32> to vector<4x96xf32>
    %607 = arith.addf %605, %606 : vector<4x96xf32>
    %608 = vector.extract_strided_slice %607 {offsets = [0, 0], sizes = [1, 8], strides = [1, 1]} : vector<4x96xf32> to vector<1x8xf32>
    %609 = vector.extract_strided_slice %607 {offsets = [0, 32], sizes = [4, 8], strides = [1, 1]} : vector<4x96xf32> to vector<4x8xf32>
    %cst_316 = arith.constant dense<0.000000e+00> : vector<1x4xf32>
    %610 = tpu.matmul %608, %609, %cst_316 {dimension_numbers = #tpu.dot_dimension_numbers<[1], [1], [0], [0], [0, 0, 1, 0], [], []>} : vector<1x8xf32>, vector<4x8xf32>, vector<1x4xf32> -> vector<1x4xf32>
    %611 = vector.extract_strided_slice %607 {offsets = [0, 8], sizes = [1, 8], strides = [1, 1]} : vector<4x96xf32> to vector<1x8xf32>
    %612 = vector.extract_strided_slice %607 {offsets = [0, 40], sizes = [4, 8], strides = [1, 1]} : vector<4x96xf32> to vector<4x8xf32>
    %cst_317 = arith.constant dense<0.000000e+00> : vector<1x4xf32>
    %613 = tpu.matmul %611, %612, %cst_317 {dimension_numbers = #tpu.dot_dimension_numbers<[1], [1], [0], [0], [0, 0, 1, 0], [], []>} : vector<1x8xf32>, vector<4x8xf32>, vector<1x4xf32> -> vector<1x4xf32>
    %614 = vector.extract_strided_slice %607 {offsets = [0, 16], sizes = [1, 8], strides = [1, 1]} : vector<4x96xf32> to vector<1x8xf32>
    %615 = vector.extract_strided_slice %607 {offsets = [0, 48], sizes = [4, 8], strides = [1, 1]} : vector<4x96xf32> to vector<4x8xf32>
    %cst_318 = arith.constant dense<0.000000e+00> : vector<1x4xf32>
    %616 = tpu.matmul %614, %615, %cst_318 {dimension_numbers = #tpu.dot_dimension_numbers<[1], [1], [0], [0], [0, 0, 1, 0], [], []>} : vector<1x8xf32>, vector<4x8xf32>, vector<1x4xf32> -> vector<1x4xf32>
    %617 = vector.extract_strided_slice %607 {offsets = [0, 24], sizes = [1, 8], strides = [1, 1]} : vector<4x96xf32> to vector<1x8xf32>
    %618 = vector.extract_strided_slice %607 {offsets = [0, 56], sizes = [4, 8], strides = [1, 1]} : vector<4x96xf32> to vector<4x8xf32>
    %cst_319 = arith.constant dense<0.000000e+00> : vector<1x4xf32>
    %619 = tpu.matmul %617, %618, %cst_319 {dimension_numbers = #tpu.dot_dimension_numbers<[1], [1], [0], [0], [0, 0, 1, 0], [], []>} : vector<1x8xf32>, vector<4x8xf32>, vector<1x4xf32> -> vector<1x4xf32>
    %620 = tpu.concatenate %610, %613, %616, %619 in 0 : vector<1x4xf32>, vector<1x4xf32>, vector<1x4xf32>, vector<1x4xf32> -> vector<4x4xf32>
    %cst_320 = arith.constant 0.353553385 : f32
    %621 = vector.broadcast %cst_320 : f32 to vector<4x4xf32>
    %622 = arith.mulf %620, %621 : vector<4x4xf32>
    %cst_321 = arith.constant dense<0xFF800000> : vector<4xf32>
    %623 = vector.multi_reduction <maximumf>, %622, %cst_321 [1] : vector<4x4xf32> to vector<4xf32>
    %624 = vector.shape_cast %623 : vector<4xf32> to vector<4x1xf32>
    %625 = vector.broadcast %624 : vector<4x1xf32> to vector<4x4xf32>
    %626 = arith.subf %622, %625 : vector<4x4xf32>
    %627 = math.exp %626 : vector<4x4xf32>
    %cst_322 = arith.constant dense<0.000000e+00> : vector<4xf32>
    %628 = vector.multi_reduction <add>, %627, %cst_322 [1] : vector<4x4xf32> to vector<4xf32>
    %629 = vector.shape_cast %628 : vector<4xf32> to vector<4x1xf32>
    %630 = tpu.reciprocal %629 {approx = true} : vector<4x1xf32> -> vector<4x1xf32>
    %631 = vector.broadcast %630 : vector<4x1xf32> to vector<4x4xf32>
    %632 = arith.mulf %627, %631 : vector<4x4xf32>
    %633 = vector.extract_strided_slice %632 {offsets = [0, 0], sizes = [1, 4], strides = [1, 1]} : vector<4x4xf32> to vector<1x4xf32>
    %634 = vector.extract_strided_slice %607 {offsets = [0, 64], sizes = [4, 8], strides = [1, 1]} : vector<4x96xf32> to vector<4x8xf32>
    %cst_323 = arith.constant dense<0.000000e+00> : vector<1x8xf32>
    %635 = tpu.matmul %633, %634, %cst_323 {dimension_numbers = #tpu.dot_dimension_numbers<[1], [0], [0], [1], [0, 0, 1, 1], [], []>} : vector<1x4xf32>, vector<4x8xf32>, vector<1x8xf32> -> vector<1x8xf32>
    %636 = vector.extract_strided_slice %632 {offsets = [1, 0], sizes = [1, 4], strides = [1, 1]} : vector<4x4xf32> to vector<1x4xf32>
    %637 = vector.extract_strided_slice %607 {offsets = [0, 72], sizes = [4, 8], strides = [1, 1]} : vector<4x96xf32> to vector<4x8xf32>
    %cst_324 = arith.constant dense<0.000000e+00> : vector<1x8xf32>
    %638 = tpu.matmul %636, %637, %cst_324 {dimension_numbers = #tpu.dot_dimension_numbers<[1], [0], [0], [1], [0, 0, 1, 1], [], []>} : vector<1x4xf32>, vector<4x8xf32>, vector<1x8xf32> -> vector<1x8xf32>
    %639 = vector.extract_strided_slice %632 {offsets = [2, 0], sizes = [1, 4], strides = [1, 1]} : vector<4x4xf32> to vector<1x4xf32>
    %640 = vector.extract_strided_slice %607 {offsets = [0, 80], sizes = [4, 8], strides = [1, 1]} : vector<4x96xf32> to vector<4x8xf32>
    %cst_325 = arith.constant dense<0.000000e+00> : vector<1x8xf32>
    %641 = tpu.matmul %639, %640, %cst_325 {dimension_numbers = #tpu.dot_dimension_numbers<[1], [0], [0], [1], [0, 0, 1, 1], [], []>} : vector<1x4xf32>, vector<4x8xf32>, vector<1x8xf32> -> vector<1x8xf32>
    %642 = vector.extract_strided_slice %632 {offsets = [3, 0], sizes = [1, 4], strides = [1, 1]} : vector<4x4xf32> to vector<1x4xf32>
    %643 = vector.extract_strided_slice %607 {offsets = [0, 88], sizes = [4, 8], strides = [1, 1]} : vector<4x96xf32> to vector<4x8xf32>
    %cst_326 = arith.constant dense<0.000000e+00> : vector<1x8xf32>
    %644 = tpu.matmul %642, %643, %cst_326 {dimension_numbers = #tpu.dot_dimension_numbers<[1], [0], [0], [1], [0, 0, 1, 1], [], []>} : vector<1x4xf32>, vector<4x8xf32>, vector<1x8xf32> -> vector<1x8xf32>
    %645 = tpu.concatenate %635, %638, %641, %644 in 1 : vector<1x8xf32>, vector<1x8xf32>, vector<1x8xf32>, vector<1x8xf32> -> vector<1x32xf32>
    %cst_327 = arith.constant dense<0.000000e+00> : vector<1x32xf32>
    %646 = tpu.matmul %645, %602, %cst_327 {dimension_numbers = #tpu.dot_dimension_numbers<[1], [0], [0], [1], [0, 0, 1, 1], [], []>} : vector<1x32xf32>, vector<32x32xf32>, vector<1x32xf32> -> vector<1x32xf32>
    %647 = arith.addf %646, %604 : vector<1x32xf32>
    %c0_328 = arith.constant 0 : index
    %c0_329 = arith.constant 0 : index
    %648 = vector.load %arg13[%c0_328, %c0_329] : memref<12x32xf32, #tpu.memory_space<vmem>>, vector<1x32xf32>
    tpu.vector_store %arg13[%c0_328, %c0_329], %647 {strides = array<i32>} : memref<12x32xf32, #tpu.memory_space<vmem>>, vector<1x32xf32>,
    %c4_330 = arith.constant 4 : index
    %c0_331 = arith.constant 0 : index
    %649 = vector.load %arg13[%c4_330, %c0_331] : memref<12x32xf32, #tpu.memory_space<vmem>>, vector<1x32xf32>
    %c5_332 = arith.constant 5 : index
    %c0_333 = arith.constant 0 : index
    %650 = vector.load %arg13[%c5_332, %c0_333] : memref<12x32xf32, #tpu.memory_space<vmem>>, vector<1x32xf32>
    %c6_334 = arith.constant 6 : index
    %c0_335 = arith.constant 0 : index
    %651 = vector.load %arg13[%c6_334, %c0_335] : memref<12x32xf32, #tpu.memory_space<vmem>>, vector<1x32xf32>
    %652 = tpu.concatenate %649, %650, %651 in 0 : vector<1x32xf32>, vector<1x32xf32>, vector<1x32xf32> -> vector<3x32xf32>
    %c0_336 = arith.constant 0 : index
    %c96_337 = arith.constant 96 : index
    %c0_338 = arith.constant 0 : index
    %653 = vector.load %arg8[%c0_336, %c96_337, %c0_338] : memref<1x128x96xf32, #tpu.memory_space<vmem>>, vector<1x32x96xf32>
    %654 = vector.shape_cast %653 : vector<1x32x96xf32> to vector<32x96xf32>
    %c0_339 = arith.constant 0 : index
    %c3_340 = arith.constant 3 : index
    %c0_341 = arith.constant 0 : index
    %655 = vector.load %arg10[%c0_339, %c3_340, %c0_341] : memref<1x4x96xf32, #tpu.memory_space<vmem>>, vector<1x1x96xf32>
    %656 = vector.shape_cast %655 : vector<1x1x96xf32> to vector<1x96xf32>
    %c0_342 = arith.constant 0 : index
    %c384_343 = arith.constant 384 : index
    %c0_344 = arith.constant 0 : index
    %657 = vector.load %arg7[%c0_342, %c384_343, %c0_344] : memref<1x544x32xf32, #tpu.memory_space<vmem>>, vector<1x32x32xf32>
    %658 = vector.shape_cast %657 : vector<1x32x32xf32> to vector<32x32xf32>
    %c0_345 = arith.constant 0 : index
    %c20_346 = arith.constant 20 : index
    %c0_347 = arith.constant 0 : index
    %659 = vector.load %arg9[%c0_345, %c20_346, %c0_347] : memref<1x25x32xf32, #tpu.memory_space<vmem>>, vector<1x1x32xf32>
    %660 = vector.shape_cast %659 : vector<1x1x32xf32> to vector<1x32xf32>
    %cst_348 = arith.constant dense<0.000000e+00> : vector<3x96xf32>
    %661 = tpu.matmul %652, %654, %cst_348 {dimension_numbers = #tpu.dot_dimension_numbers<[1], [0], [0], [1], [0, 0, 1, 1], [], []>} : vector<3x32xf32>, vector<32x96xf32>, vector<3x96xf32> -> vector<3x96xf32>
    %662 = vector.broadcast %656 : vector<1x96xf32> to vector<3x96xf32>
    %663 = arith.addf %661, %662 : vector<3x96xf32>
    %664 = vector.extract_strided_slice %663 {offsets = [0, 0], sizes = [1, 8], strides = [1, 1]} : vector<3x96xf32> to vector<1x8xf32>
    %665 = vector.extract_strided_slice %663 {offsets = [0, 32], sizes = [3, 8], strides = [1, 1]} : vector<3x96xf32> to vector<3x8xf32>
    %cst_349 = arith.constant dense<0.000000e+00> : vector<1x3xf32>
    %666 = tpu.matmul %664, %665, %cst_349 {dimension_numbers = #tpu.dot_dimension_numbers<[1], [1], [0], [0], [0, 0, 1, 0], [], []>} : vector<1x8xf32>, vector<3x8xf32>, vector<1x3xf32> -> vector<1x3xf32>
    %667 = vector.extract_strided_slice %663 {offsets = [0, 8], sizes = [1, 8], strides = [1, 1]} : vector<3x96xf32> to vector<1x8xf32>
    %668 = vector.extract_strided_slice %663 {offsets = [0, 40], sizes = [3, 8], strides = [1, 1]} : vector<3x96xf32> to vector<3x8xf32>
    %cst_350 = arith.constant dense<0.000000e+00> : vector<1x3xf32>
    %669 = tpu.matmul %667, %668, %cst_350 {dimension_numbers = #tpu.dot_dimension_numbers<[1], [1], [0], [0], [0, 0, 1, 0], [], []>} : vector<1x8xf32>, vector<3x8xf32>, vector<1x3xf32> -> vector<1x3xf32>
    %670 = vector.extract_strided_slice %663 {offsets = [0, 16], sizes = [1, 8], strides = [1, 1]} : vector<3x96xf32> to vector<1x8xf32>
    %671 = vector.extract_strided_slice %663 {offsets = [0, 48], sizes = [3, 8], strides = [1, 1]} : vector<3x96xf32> to vector<3x8xf32>
    %cst_351 = arith.constant dense<0.000000e+00> : vector<1x3xf32>
    %672 = tpu.matmul %670, %671, %cst_351 {dimension_numbers = #tpu.dot_dimension_numbers<[1], [1], [0], [0], [0, 0, 1, 0], [], []>} : vector<1x8xf32>, vector<3x8xf32>, vector<1x3xf32> -> vector<1x3xf32>
    %673 = vector.extract_strided_slice %663 {offsets = [0, 24], sizes = [1, 8], strides = [1, 1]} : vector<3x96xf32> to vector<1x8xf32>
    %674 = vector.extract_strided_slice %663 {offsets = [0, 56], sizes = [3, 8], strides = [1, 1]} : vector<3x96xf32> to vector<3x8xf32>
    %cst_352 = arith.constant dense<0.000000e+00> : vector<1x3xf32>
    %675 = tpu.matmul %673, %674, %cst_352 {dimension_numbers = #tpu.dot_dimension_numbers<[1], [1], [0], [0], [0, 0, 1, 0], [], []>} : vector<1x8xf32>, vector<3x8xf32>, vector<1x3xf32> -> vector<1x3xf32>
    %676 = tpu.concatenate %666, %669, %672, %675 in 0 : vector<1x3xf32>, vector<1x3xf32>, vector<1x3xf32>, vector<1x3xf32> -> vector<4x3xf32>
    %cst_353 = arith.constant 0.353553385 : f32
    %677 = vector.broadcast %cst_353 : f32 to vector<4x3xf32>
    %678 = arith.mulf %676, %677 : vector<4x3xf32>
    %cst_354 = arith.constant dense<0xFF800000> : vector<4xf32>
    %679 = vector.multi_reduction <maximumf>, %678, %cst_354 [1] : vector<4x3xf32> to vector<4xf32>
    %680 = vector.shape_cast %679 : vector<4xf32> to vector<4x1xf32>
    %681 = vector.broadcast %680 : vector<4x1xf32> to vector<4x3xf32>
    %682 = arith.subf %678, %681 : vector<4x3xf32>
    %683 = math.exp %682 : vector<4x3xf32>
    %cst_355 = arith.constant dense<0.000000e+00> : vector<4xf32>
    %684 = vector.multi_reduction <add>, %683, %cst_355 [1] : vector<4x3xf32> to vector<4xf32>
    %685 = vector.shape_cast %684 : vector<4xf32> to vector<4x1xf32>
    %686 = tpu.reciprocal %685 {approx = true} : vector<4x1xf32> -> vector<4x1xf32>
    %687 = vector.broadcast %686 : vector<4x1xf32> to vector<4x3xf32>
    %688 = arith.mulf %683, %687 : vector<4x3xf32>
    %689 = vector.extract_strided_slice %688 {offsets = [0, 0], sizes = [1, 3], strides = [1, 1]} : vector<4x3xf32> to vector<1x3xf32>
    %690 = vector.extract_strided_slice %663 {offsets = [0, 64], sizes = [3, 8], strides = [1, 1]} : vector<3x96xf32> to vector<3x8xf32>
    %cst_356 = arith.constant dense<0.000000e+00> : vector<1x8xf32>
    %691 = tpu.matmul %689, %690, %cst_356 {dimension_numbers = #tpu.dot_dimension_numbers<[1], [0], [0], [1], [0, 0, 1, 1], [], []>} : vector<1x3xf32>, vector<3x8xf32>, vector<1x8xf32> -> vector<1x8xf32>
    %692 = vector.extract_strided_slice %688 {offsets = [1, 0], sizes = [1, 3], strides = [1, 1]} : vector<4x3xf32> to vector<1x3xf32>
    %693 = vector.extract_strided_slice %663 {offsets = [0, 72], sizes = [3, 8], strides = [1, 1]} : vector<3x96xf32> to vector<3x8xf32>
    %cst_357 = arith.constant dense<0.000000e+00> : vector<1x8xf32>
    %694 = tpu.matmul %692, %693, %cst_357 {dimension_numbers = #tpu.dot_dimension_numbers<[1], [0], [0], [1], [0, 0, 1, 1], [], []>} : vector<1x3xf32>, vector<3x8xf32>, vector<1x8xf32> -> vector<1x8xf32>
    %695 = vector.extract_strided_slice %688 {offsets = [2, 0], sizes = [1, 3], strides = [1, 1]} : vector<4x3xf32> to vector<1x3xf32>
    %696 = vector.extract_strided_slice %663 {offsets = [0, 80], sizes = [3, 8], strides = [1, 1]} : vector<3x96xf32> to vector<3x8xf32>
    %cst_358 = arith.constant dense<0.000000e+00> : vector<1x8xf32>
    %697 = tpu.matmul %695, %696, %cst_358 {dimension_numbers = #tpu.dot_dimension_numbers<[1], [0], [0], [1], [0, 0, 1, 1], [], []>} : vector<1x3xf32>, vector<3x8xf32>, vector<1x8xf32> -> vector<1x8xf32>
    %698 = vector.extract_strided_slice %688 {offsets = [3, 0], sizes = [1, 3], strides = [1, 1]} : vector<4x3xf32> to vector<1x3xf32>
    %699 = vector.extract_strided_slice %663 {offsets = [0, 88], sizes = [3, 8], strides = [1, 1]} : vector<3x96xf32> to vector<3x8xf32>
    %cst_359 = arith.constant dense<0.000000e+00> : vector<1x8xf32>
    %700 = tpu.matmul %698, %699, %cst_359 {dimension_numbers = #tpu.dot_dimension_numbers<[1], [0], [0], [1], [0, 0, 1, 1], [], []>} : vector<1x3xf32>, vector<3x8xf32>, vector<1x8xf32> -> vector<1x8xf32>
    %701 = tpu.concatenate %691, %694, %697, %700 in 1 : vector<1x8xf32>, vector<1x8xf32>, vector<1x8xf32>, vector<1x8xf32> -> vector<1x32xf32>
    %cst_360 = arith.constant dense<0.000000e+00> : vector<1x32xf32>
    %702 = tpu.matmul %701, %658, %cst_360 {dimension_numbers = #tpu.dot_dimension_numbers<[1], [0], [0], [1], [0, 0, 1, 1], [], []>} : vector<1x32xf32>, vector<32x32xf32>, vector<1x32xf32> -> vector<1x32xf32>
    %703 = arith.addf %702, %660 : vector<1x32xf32>
    %c4_361 = arith.constant 4 : index
    %c0_362 = arith.constant 0 : index
    %704 = vector.load %arg13[%c4_361, %c0_362] : memref<12x32xf32, #tpu.memory_space<vmem>>, vector<1x32xf32>
    tpu.vector_store %arg13[%c4_361, %c0_362], %703 {strides = array<i32>} : memref<12x32xf32, #tpu.memory_space<vmem>>, vector<1x32xf32>,
    %c0_363 = arith.constant 0 : index
    %c0_364 = arith.constant 0 : index
    %705 = vector.load %arg5[%c0_363, %c0_364] : memref<8x18xf32, #tpu.memory_space<vmem>>, vector<8x18xf32>
    %cst_365 = arith.constant dense<0.000000e+00> : vector<8x18xf32>
    %706 = tpu.matmul %705, %525, %cst_365 {dimension_numbers = #tpu.dot_dimension_numbers<[1], [0], [0], [1], [0, 0, 1, 1], [], []>} : vector<8x18xf32>, vector<18x18xf32>, vector<8x18xf32> -> vector<8x18xf32>
    %c0_366 = arith.constant 0 : index
    %c0_367 = arith.constant 0 : index
    %707 = vector.load %arg6[%c0_366, %c0_367] : memref<18x8xf32, #tpu.memory_space<vmem>>, vector<18x8xf32>
    %cst_368 = arith.constant dense<0.000000e+00> : vector<8x8xf32>
    %708 = tpu.matmul %706, %707, %cst_368 {dimension_numbers = #tpu.dot_dimension_numbers<[1], [0], [0], [1], [0, 0, 1, 1], [], []>} : vector<8x18xf32>, vector<18x8xf32>, vector<8x8xf32> -> vector<8x8xf32>
    %709 = vector.extract_strided_slice %338 {offsets = [0, 0], sizes = [1, 4], strides = [1, 1]} : vector<8x8xf32> to vector<1x4xf32>
    %710 = vector.extract_strided_slice %338 {offsets = [1, 0], sizes = [1, 4], strides = [1, 1]} : vector<8x8xf32> to vector<1x4xf32>
    %711 = vector.extract_strided_slice %338 {offsets = [2, 0], sizes = [1, 4], strides = [1, 1]} : vector<8x8xf32> to vector<1x4xf32>
    %712 = vector.extract_strided_slice %338 {offsets = [3, 0], sizes = [1, 4], strides = [1, 1]} : vector<8x8xf32> to vector<1x4xf32>
    %713 = tpu.concatenate %709, %710, %711, %712 in 1 : vector<1x4xf32>, vector<1x4xf32>, vector<1x4xf32>, vector<1x4xf32> -> vector<1x16xf32>
    %714 = vector.extract_strided_slice %708 {offsets = [0, 0], sizes = [1, 4], strides = [1, 1]} : vector<8x8xf32> to vector<1x4xf32>
    %715 = vector.extract_strided_slice %708 {offsets = [1, 0], sizes = [1, 4], strides = [1, 1]} : vector<8x8xf32> to vector<1x4xf32>
    %716 = vector.extract_strided_slice %708 {offsets = [2, 0], sizes = [1, 4], strides = [1, 1]} : vector<8x8xf32> to vector<1x4xf32>
    %717 = vector.extract_strided_slice %708 {offsets = [3, 0], sizes = [1, 4], strides = [1, 1]} : vector<8x8xf32> to vector<1x4xf32>
    %718 = tpu.concatenate %714, %715, %716, %717 in 1 : vector<1x4xf32>, vector<1x4xf32>, vector<1x4xf32>, vector<1x4xf32> -> vector<1x16xf32>
    %719 = tpu.concatenate %713, %718 in 1 : vector<1x16xf32>, vector<1x16xf32> -> vector<1x32xf32>
    %720 = vector.extract_strided_slice %338 {offsets = [4, 4], sizes = [1, 4], strides = [1, 1]} : vector<8x8xf32> to vector<1x4xf32>
    %721 = vector.extract_strided_slice %338 {offsets = [5, 4], sizes = [1, 4], strides = [1, 1]} : vector<8x8xf32> to vector<1x4xf32>
    %722 = vector.extract_strided_slice %338 {offsets = [6, 4], sizes = [1, 4], strides = [1, 1]} : vector<8x8xf32> to vector<1x4xf32>
    %723 = vector.extract_strided_slice %338 {offsets = [7, 4], sizes = [1, 4], strides = [1, 1]} : vector<8x8xf32> to vector<1x4xf32>
    %724 = tpu.concatenate %720, %721, %722, %723 in 1 : vector<1x4xf32>, vector<1x4xf32>, vector<1x4xf32>, vector<1x4xf32> -> vector<1x16xf32>
    %725 = vector.extract_strided_slice %708 {offsets = [4, 4], sizes = [1, 4], strides = [1, 1]} : vector<8x8xf32> to vector<1x4xf32>
    %726 = vector.extract_strided_slice %708 {offsets = [5, 4], sizes = [1, 4], strides = [1, 1]} : vector<8x8xf32> to vector<1x4xf32>
    %727 = vector.extract_strided_slice %708 {offsets = [6, 4], sizes = [1, 4], strides = [1, 1]} : vector<8x8xf32> to vector<1x4xf32>
    %728 = vector.extract_strided_slice %708 {offsets = [7, 4], sizes = [1, 4], strides = [1, 1]} : vector<8x8xf32> to vector<1x4xf32>
    %729 = tpu.concatenate %725, %726, %727, %728 in 1 : vector<1x4xf32>, vector<1x4xf32>, vector<1x4xf32>, vector<1x4xf32> -> vector<1x16xf32>
    %730 = tpu.concatenate %724, %729 in 1 : vector<1x16xf32>, vector<1x16xf32> -> vector<1x32xf32>
    %731 = tpu.concatenate %719, %730 in 0 : vector<1x32xf32>, vector<1x32xf32> -> vector<2x32xf32>
    %c0_369 = arith.constant 0 : index
    %c480 = arith.constant 480 : index
    %c0_370 = arith.constant 0 : index
    %732 = vector.load %arg7[%c0_369, %c480, %c0_370] : memref<1x544x32xf32, #tpu.memory_space<vmem>>, vector<1x32x32xf32>
    %733 = vector.shape_cast %732 : vector<1x32x32xf32> to vector<32x32xf32>
    %cst_371 = arith.constant dense<0.000000e+00> : vector<2x32xf32>
    %734 = tpu.matmul %731, %733, %cst_371 {dimension_numbers = #tpu.dot_dimension_numbers<[1], [0], [0], [1], [0, 0, 1, 1], [], []>} : vector<2x32xf32>, vector<32x32xf32>, vector<2x32xf32> -> vector<2x32xf32>
    %c0_372 = arith.constant 0 : index
    %c23 = arith.constant 23 : index
    %c0_373 = arith.constant 0 : index
    %735 = vector.load %arg9[%c0_372, %c23, %c0_373] : memref<1x25x32xf32, #tpu.memory_space<vmem>>, vector<1x1x32xf32>
    %736 = vector.shape_cast %735 : vector<1x1x32xf32> to vector<1x32xf32>
    %737 = vector.broadcast %736 : vector<1x32xf32> to vector<2x32xf32>
    %738 = arith.addf %734, %737 : vector<2x32xf32>
    %cst_374 = arith.constant 0.000000e+00 : f32
    %739 = vector.broadcast %cst_374 : f32 to vector<2x32xf32>
    %740 = arith.cmpf oge, %738, %739 : vector<2x32xf32>
    %cst_375 = arith.constant 0.00999999977 : f32
    %741 = vector.broadcast %cst_375 : f32 to vector<2x32xf32>
    %742 = arith.mulf %741, %738 : vector<2x32xf32>
    %743 = arith.select %740, %738, %742 : vector<2x32xi1>, vector<2x32xf32>
    %c0_376 = arith.constant 0 : index
    %c512 = arith.constant 512 : index
    %c0_377 = arith.constant 0 : index
    %744 = vector.load %arg7[%c0_376, %c512, %c0_377] : memref<1x544x32xf32, #tpu.memory_space<vmem>>, vector<1x32x32xf32>
    %745 = vector.shape_cast %744 : vector<1x32x32xf32> to vector<32x32xf32>
    %cst_378 = arith.constant dense<0.000000e+00> : vector<2x32xf32>
    %746 = tpu.matmul %743, %745, %cst_378 {dimension_numbers = #tpu.dot_dimension_numbers<[1], [0], [0], [1], [0, 0, 1, 1], [], []>} : vector<2x32xf32>, vector<32x32xf32>, vector<2x32xf32> -> vector<2x32xf32>
    %c0_379 = arith.constant 0 : index
    %c24 = arith.constant 24 : index
    %c0_380 = arith.constant 0 : index
    %747 = vector.load %arg9[%c0_379, %c24, %c0_380] : memref<1x25x32xf32, #tpu.memory_space<vmem>>, vector<1x1x32xf32>
    %748 = vector.shape_cast %747 : vector<1x1x32xf32> to vector<1x32xf32>
    %749 = vector.broadcast %748 : vector<1x32xf32> to vector<2x32xf32>
    %750 = arith.addf %746, %749 : vector<2x32xf32>
    %751 = vector.extract_strided_slice %750 {offsets = [0, 0], sizes = [1, 32], strides = [1, 1]} : vector<2x32xf32> to vector<1x32xf32>
    %752 = vector.extract_strided_slice %750 {offsets = [1, 0], sizes = [1, 32], strides = [1, 1]} : vector<2x32xf32> to vector<1x32xf32>
    %753 = tpu.concatenate %751, %752 in 1 : vector<1x32xf32>, vector<1x32xf32> -> vector<1x64xf32>
    %c0_381 = arith.constant 0 : index
    %c0_382 = arith.constant 0 : index
    %c0_383 = arith.constant 0 : index
    %754 = vector.load %arg11[%c0_381, %c0_382, %c0_383] : memref<1x1x64xf32, #tpu.memory_space<vmem>>, vector<1x1x64xf32>
    %755 = vector.shape_cast %754 : vector<1x1x64xf32> to vector<1x64xf32>
    %756 = vector.shape_cast %753 : vector<1x64xf32> to vector<1x1x64xf32>
    tpu.vector_store %arg11[%c0_381, %c0_382, %c0_383], %756 {strides = array<i32>} : memref<1x1x64xf32, #tpu.memory_space<vmem>>, vector<1x1x64xf32>,
    return
  }
  func.func @transform_0(%arg0: i32) -> (i32, i32) {
    %c0_i32 = arith.constant 0 : i32
    %c0_i32_0 = arith.constant 0 : i32
    %c0_i32_1 = arith.constant 0 : i32
    return %c0_i32, %c0_i32_0 : i32, i32
  }
  func.func @transform_1(%arg0: i32) -> (i32, i32) {
    %c0_i32 = arith.constant 0 : i32
    %c0_i32_0 = arith.constant 0 : i32
    %c0_i32_1 = arith.constant 0 : i32
    return %c0_i32, %c0_i32_0 : i32, i32
  }
  func.func @transform_2(%arg0: i32) -> (i32, i32) {
    %c0_i32 = arith.constant 0 : i32
    %c0_i32_0 = arith.constant 0 : i32
    %c0_i32_1 = arith.constant 0 : i32
    return %c0_i32, %c0_i32_0 : i32, i32
  }
  func.func @transform_3(%arg0: i32) -> (i32, i32) {
    %c0_i32 = arith.constant 0 : i32
    %c0_i32_0 = arith.constant 0 : i32
    %c0_i32_1 = arith.constant 0 : i32
    return %c0_i32, %c0_i32_0 : i32, i32
  }
  func.func @transform_4(%arg0: i32) -> (i32, i32) {
    %c0_i32 = arith.constant 0 : i32
    %c0_i32_0 = arith.constant 0 : i32
    %c0_i32_1 = arith.constant 0 : i32
    return %c0_i32, %c0_i32_0 : i32, i32
  }
  func.func @transform_5(%arg0: i32) -> (i32, i32) {
    %c0_i32 = arith.constant 0 : i32
    %c0_i32_0 = arith.constant 0 : i32
    %c0_i32_1 = arith.constant 0 : i32
    return %c0_i32, %c0_i32_0 : i32, i32
  }
  func.func @transform_6(%arg0: i32) -> (i32, i32, i32) {
    %c0_i32 = arith.constant 0 : i32
    %c0_i32_0 = arith.constant 0 : i32
    %c0_i32_1 = arith.constant 0 : i32
    return %arg0, %c0_i32, %c0_i32_0 : i32, i32, i32
  }
  func.func @transform_7(%arg0: i32) -> (i32, i32, i32) {
    %c0_i32 = arith.constant 0 : i32
    %c0_i32_0 = arith.constant 0 : i32
    %c0_i32_1 = arith.constant 0 : i32
    return %arg0, %c0_i32, %c0_i32_0 : i32, i32, i32
  }
  func.func @transform_8(%arg0: i32) -> (i32, i32, i32) {
    %c0_i32 = arith.constant 0 : i32
    %c0_i32_0 = arith.constant 0 : i32
    %c0_i32_1 = arith.constant 0 : i32
    return %arg0, %c0_i32, %c0_i32_0 : i32, i32, i32
  }
  func.func @transform_9(%arg0: i32) -> (i32, i32, i32) {
    %c0_i32 = arith.constant 0 : i32
    %c0_i32_0 = arith.constant 0 : i32
    %c0_i32_1 = arith.constant 0 : i32
    return %arg0, %c0_i32, %c0_i32_0 : i32, i32, i32
  }
  func.func @transform_10(%arg0: i32) -> (i32, i32, i32) {
    %c0_i32 = arith.constant 0 : i32
    %c0_i32_0 = arith.constant 0 : i32
    %c0_i32_1 = arith.constant 0 : i32
    return %arg0, %c0_i32, %c0_i32_0 : i32, i32, i32
  }
}

</mosaic_0001>

<llo_original>
// kernel: model_forward.1
$region0: #{model_forward.1}
  #allocation0 [shape = 'u32[]', space=smem, size = 0x4, offset = 0x4, fixed_abs, tag = 'smem constant byte address 0x4 - core index']
  #allocation1 [shape = 'u32[72,128]{1,0:T(1,128)}', space=vmem, size = 0x9000, scoped, tag = 'internal scratch']
  #allocation2 [shape = 'f32[18,32]{1,0:T(8,128)}', space=vmem, size = 0x3000, scoped, tag = 'scratch operand']
  #allocation3 [shape = 'f32[12,32]{1,0:T(8,128)}', space=vmem, size = 0x2000, scoped, tag = 'scratch operand']
  %s0 = inlined_call_operand.vmem [shape: f32[12,32], index: 0, kind: input, shape index: {}]
  %s1 = inlined_call_operand.vmem [shape: f32[18,32], index: 1, kind: input, shape index: {}]
  %s2 = inlined_call_operand.vmem [shape: f32[12,12], index: 2, kind: input, shape index: {}]
  %s3 = inlined_call_operand.vmem [shape: f32[18,18], index: 3, kind: input, shape index: {}]
  %s4 = inlined_call_operand.vmem [shape: f32[8,18], index: 4, kind: input, shape index: {}]
  %s5 = inlined_call_operand.vmem [shape: f32[18,8], index: 5, kind: input, shape index: {}]
  %s6 = inlined_call_operand.vmem [shape: f32[5,544,32], index: 6, kind: input, shape index: {}]
  %s7 = inlined_call_operand.vmem [shape: f32[5,128,96], index: 7, kind: input, shape index: {}]
  %s8 = inlined_call_operand.vmem [shape: f32[5,25,32], index: 8, kind: input, shape index: {}]
  %s9 = inlined_call_operand.vmem [shape: f32[5,4,96], index: 9, kind: input, shape index: {}]
  %s10 = inlined_call_operand.vmem [shape: f32[5,1,64], index: 10, kind: output, shape index: {}]
  %s11 = sld [smem:[#allocation0]]
  $region73: #{model_forward.1} parent=0
    _
  %s13 = ssub.s32 1, %s11
  %s14 = scalar_select 0, %s13, %s11
  loop: start=0, step=1, limit=7
  $region2: #{model_forward.1} parent=0 // loop_pre_header
    _
  $region3: #{model_forward.1} parent=0 // loop_header
    %s16 = sphi 0, %s20
    %p17 = scmp.ge.s32.totalorder %s16, 7
    %s24 = sphi 0, %s24
    %s26 = sphi 0, %s24
    %s27 = sphi 0, %s26
    %s41 = sphi 0, %s27
    %s45 = sphi 0, %s45
    %s47 = sphi 0, %s45
    %s48 = sphi 0, %s47
    %s62 = sphi 0, %s48
    %s66 = sphi 0, %s66
    %s68 = sphi 0, %s66
    %s69 = sphi 0, %s68
    %s83 = sphi 0, %s69
    %s87 = sphi 0, %s87
    %s89 = sphi 0, %s87
    %s90 = sphi 0, %s89
    %s104 = sphi 0, %s90
    %s108 = sphi 0, %s108
    %s110 = sphi 0, %s108
    %s111 = sphi 0, %s110
    %s125 = sphi 0, %s111
    %s129 = sphi 0, %s129
    %s131 = sphi 0, %s129
    %s132 = sphi 0, %s131
    %s146 = sphi 0, %s132
    %s152 = sphi 0, %s154
    %s155 = sphi 0, %s152
    %s156 = sphi 0, %s155
    %s172 = sphi 0, %s156
    %s178 = sphi 0, %s180
    %s181 = sphi 0, %s178
    %s182 = sphi 0, %s181
    %s198 = sphi 0, %s182
    %s204 = sphi 0, %s206
    %s207 = sphi 0, %s204
    %s208 = sphi 0, %s207
    %s224 = sphi 0, %s208
    %s230 = sphi 0, %s232
    %s233 = sphi 0, %s230
    %s234 = sphi 0, %s233
    %s250 = sphi 0, %s234
    %s256 = sphi 0, %s258
    %s259 = sphi 0, %s256
    %s260 = sphi 0, %s259
    %s276 = sphi 0, %s260
  $region4: #{model_forward.1} parent=0 // loop_header_branch
    %19 = sbr.rel (%p17) target = $region8
  $region5: #{model_forward.1} parent=0 // loop_body
    %s21 = ssub.s32 %s16, 1
    %s22 = ssub.s32 %s16, 2
    %s23 = sadd.s32 %s16, 1
    %s25 = sadd.s32 %s24, 1
    %p28 = scmp.eq.s32.totalorder %s16, 4
    %p29 = scmp.ne.s32.totalorder %s24, %s26
    %p30 = scmp.eq.s32.totalorder %s16, 0
    %p31 = por %p29, %p30
    %p32 = scmp.ne.s32.totalorder %s24, %s26
    %p33 = scmp.eq.s32.totalorder %s21, 4
    %p34 = por %p32, %p33
    %p35 = scmp.ne.s32.totalorder %s26, %s27
    %p36 = scmp.eq.s32.totalorder %s21, 0
    %p37 = por %p35, %p36
    %p38 = scmp.ne.s32.totalorder %s26, %s27
    %p39 = scmp.eq.s32.totalorder %s22, 4
    %p40 = por %p38, %p39
    %p42 = scmp.ne.s32.totalorder %s27, %s41
    %p43 = scmp.eq.s32.totalorder %s22, 0
    %p44 = por %p42, %p43
    %s46 = sadd.s32 %s45, 1
    %p49 = scmp.eq.s32.totalorder %s16, 4
    %p50 = scmp.ne.s32.totalorder %s45, %s47
    %p51 = scmp.eq.s32.totalorder %s16, 0
    %p52 = por %p50, %p51
    %p53 = scmp.ne.s32.totalorder %s45, %s47
    %p54 = scmp.eq.s32.totalorder %s21, 4
    %p55 = por %p53, %p54
    %p56 = scmp.ne.s32.totalorder %s47, %s48
    %p57 = scmp.eq.s32.totalorder %s21, 0
    %p58 = por %p56, %p57
    %p59 = scmp.ne.s32.totalorder %s47, %s48
    %p60 = scmp.eq.s32.totalorder %s22, 4
    %p61 = por %p59, %p60
    %p63 = scmp.ne.s32.totalorder %s48, %s62
    %p64 = scmp.eq.s32.totalorder %s22, 0
    %p65 = por %p63, %p64
    %s67 = sadd.s32 %s66, 1
    %p70 = scmp.eq.s32.totalorder %s16, 4
    %p71 = scmp.ne.s32.totalorder %s66, %s68
    %p72 = scmp.eq.s32.totalorder %s16, 0
    %p73 = por %p71, %p72
    %p74 = scmp.ne.s32.totalorder %s66, %s68
    %p75 = scmp.eq.s32.totalorder %s21, 4
    %p76 = por %p74, %p75
    %p77 = scmp.ne.s32.totalorder %s68, %s69
    %p78 = scmp.eq.s32.totalorder %s21, 0
    %p79 = por %p77, %p78
    %p80 = scmp.ne.s32.totalorder %s68, %s69
    %p81 = scmp.eq.s32.totalorder %s22, 4
    %p82 = por %p80, %p81
    %p84 = scmp.ne.s32.totalorder %s69, %s83
    %p85 = scmp.eq.s32.totalorder %s22, 0
    %p86 = por %p84, %p85
    %s88 = sadd.s32 %s87, 1
    %p91 = scmp.eq.s32.totalorder %s16, 4
    %p92 = scmp.ne.s32.totalorder %s87, %s89
    %p93 = scmp.eq.s32.totalorder %s16, 0
    %p94 = por %p92, %p93
    %p95 = scmp.ne.s32.totalorder %s87, %s89
    %p96 = scmp.eq.s32.totalorder %s21, 4
    %p97 = por %p95, %p96
    %p98 = scmp.ne.s32.totalorder %s89, %s90
    %p99 = scmp.eq.s32.totalorder %s21, 0
    %p100 = por %p98, %p99
    %p101 = scmp.ne.s32.totalorder %s89, %s90
    %p102 = scmp.eq.s32.totalorder %s22, 4
    %p103 = por %p101, %p102
    %p105 = scmp.ne.s32.totalorder %s90, %s104
    %p106 = scmp.eq.s32.totalorder %s22, 0
    %p107 = por %p105, %p106
    %s109 = sadd.s32 %s108, 1
    %p112 = scmp.eq.s32.totalorder %s16, 4
    %p113 = scmp.ne.s32.totalorder %s108, %s110
    %p114 = scmp.eq.s32.totalorder %s16, 0
    %p115 = por %p113, %p114
    %p116 = scmp.ne.s32.totalorder %s108, %s110
    %p117 = scmp.eq.s32.totalorder %s21, 4
    %p118 = por %p116, %p117
    %p119 = scmp.ne.s32.totalorder %s110, %s111
    %p120 = scmp.eq.s32.totalorder %s21, 0
    %p121 = por %p119, %p120
    %p122 = scmp.ne.s32.totalorder %s110, %s111
    %p123 = scmp.eq.s32.totalorder %s22, 4
    %p124 = por %p122, %p123
    %p126 = scmp.ne.s32.totalorder %s111, %s125
    %p127 = scmp.eq.s32.totalorder %s22, 0
    %p128 = por %p126, %p127
    %s130 = sadd.s32 %s129, 1
    %p133 = scmp.eq.s32.totalorder %s16, 4
    %p134 = scmp.ne.s32.totalorder %s129, %s131
    %p135 = scmp.eq.s32.totalorder %s16, 0
    %p136 = por %p134, %p135
    %p137 = scmp.ne.s32.totalorder %s129, %s131
    %p138 = scmp.eq.s32.totalorder %s21, 4
    %p139 = por %p137, %p138
    %p140 = scmp.ne.s32.totalorder %s131, %s132
    %p141 = scmp.eq.s32.totalorder %s21, 0
    %p142 = por %p140, %p141
    %p143 = scmp.ne.s32.totalorder %s131, %s132
    %p144 = scmp.eq.s32.totalorder %s22, 4
    %p145 = por %p143, %p144
    %p147 = scmp.ne.s32.totalorder %s132, %s146
    %p148 = scmp.eq.s32.totalorder %s22, 0
    %p149 = por %p147, %p148
    %s150 = ssub.s32 %s16, %s23
    %p151 = scmp.eq.s32.totalorder %s150, 0
    %s153 = sadd.s32 %s152, 1
    %s154 = scalar_select %p151, %s152, %s153
    %p157 = pneg %p151
    %p158 = scmp.eq.s32.totalorder %s16, 4
    %p159 = por %p157, %p158
    %p160 = scmp.ne.s32.totalorder %s152, %s155
    %p161 = scmp.eq.s32.totalorder %s16, 0
    %p162 = por %p160, %p161
    %p163 = scmp.ne.s32.totalorder %s152, %s155
    %p164 = scmp.eq.s32.totalorder %s21, 4
    %p165 = por %p163, %p164
    %p166 = scmp.ne.s32.totalorder %s155, %s156
    %p167 = scmp.eq.s32.totalorder %s21, 0
    %p168 = por %p166, %p167
    %p169 = scmp.ne.s32.totalorder %s155, %s156
    %p170 = scmp.eq.s32.totalorder %s22, 4
    %p171 = por %p169, %p170
    %p173 = scmp.ne.s32.totalorder %s156, %s172
    %p174 = scmp.eq.s32.totalorder %s22, 0
    %p175 = por %p173, %p174
    %s176 = ssub.s32 %s16, %s23
    %p177 = scmp.eq.s32.totalorder %s176, 0
    %s179 = sadd.s32 %s178, 1
    %s180 = scalar_select %p177, %s178, %s179
    %p183 = pneg %p177
    %p184 = scmp.eq.s32.totalorder %s16, 4
    %p185 = por %p183, %p184
    %p186 = scmp.ne.s32.totalorder %s178, %s181
    %p187 = scmp.eq.s32.totalorder %s16, 0
    %p188 = por %p186, %p187
    %p189 = scmp.ne.s32.totalorder %s178, %s181
    %p190 = scmp.eq.s32.totalorder %s21, 4
    %p191 = por %p189, %p190
    %p192 = scmp.ne.s32.totalorder %s181, %s182
    %p193 = scmp.eq.s32.totalorder %s21, 0
    %p194 = por %p192, %p193
    %p195 = scmp.ne.s32.totalorder %s181, %s182
    %p196 = scmp.eq.s32.totalorder %s22, 4
    %p197 = por %p195, %p196
    %p199 = scmp.ne.s32.totalorder %s182, %s198
    %p200 = scmp.eq.s32.totalorder %s22, 0
    %p201 = por %p199, %p200
    %s202 = ssub.s32 %s16, %s23
    %p203 = scmp.eq.s32.totalorder %s202, 0
    %s205 = sadd.s32 %s204, 1
    %s206 = scalar_select %p203, %s204, %s205
    %p209 = pneg %p203
    %p210 = scmp.eq.s32.totalorder %s16, 4
    %p211 = por %p209, %p210
    %p212 = scmp.ne.s32.totalorder %s204, %s207
    %p213 = scmp.eq.s32.totalorder %s16, 0
    %p214 = por %p212, %p213
    %p215 = scmp.ne.s32.totalorder %s204, %s207
    %p216 = scmp.eq.s32.totalorder %s21, 4
    %p217 = por %p215, %p216
    %p218 = scmp.ne.s32.totalorder %s207, %s208
    %p219 = scmp.eq.s32.totalorder %s21, 0
    %p220 = por %p218, %p219
    %p221 = scmp.ne.s32.totalorder %s207, %s208
    %p222 = scmp.eq.s32.totalorder %s22, 4
    %p223 = por %p221, %p222
    %p225 = scmp.ne.s32.totalorder %s208, %s224
    %p226 = scmp.eq.s32.totalorder %s22, 0
    %p227 = por %p225, %p226
    %s228 = ssub.s32 %s16, %s23
    %p229 = scmp.eq.s32.totalorder %s228, 0
    %s231 = sadd.s32 %s230, 1
    %s232 = scalar_select %p229, %s230, %s231
    %p235 = pneg %p229
    %p236 = scmp.eq.s32.totalorder %s16, 4
    %p237 = por %p235, %p236
    %p238 = scmp.ne.s32.totalorder %s230, %s233
    %p239 = scmp.eq.s32.totalorder %s16, 0
    %p240 = por %p238, %p239
    %p241 = scmp.ne.s32.totalorder %s230, %s233
    %p242 = scmp.eq.s32.totalorder %s21, 4
    %p243 = por %p241, %p242
    %p244 = scmp.ne.s32.totalorder %s233, %s234
    %p245 = scmp.eq.s32.totalorder %s21, 0
    %p246 = por %p244, %p245
    %p247 = scmp.ne.s32.totalorder %s233, %s234
    %p248 = scmp.eq.s32.totalorder %s22, 4
    %p249 = por %p247, %p248
    %p251 = scmp.ne.s32.totalorder %s234, %s250
    %p252 = scmp.eq.s32.totalorder %s22, 0
    %p253 = por %p251, %p252
    %s254 = ssub.s32 %s16, %s23
    %p255 = scmp.eq.s32.totalorder %s254, 0
    %s257 = sadd.s32 %s256, 1
    %s258 = scalar_select %p255, %s256, %s257
    %p261 = pneg %p255
    %p262 = scmp.eq.s32.totalorder %s16, 4
    %p263 = por %p261, %p262
    %p264 = scmp.ne.s32.totalorder %s256, %s259
    %p265 = scmp.eq.s32.totalorder %s16, 0
    %p266 = por %p264, %p265
    %p267 = scmp.ne.s32.totalorder %s256, %s259
    %p268 = scmp.eq.s32.totalorder %s21, 4
    %p269 = por %p267, %p268
    %p270 = scmp.ne.s32.totalorder %s259, %s260
    %p271 = scmp.eq.s32.totalorder %s21, 0
    %p272 = por %p270, %p271
    %p273 = scmp.ne.s32.totalorder %s259, %s260
    %p274 = scmp.eq.s32.totalorder %s22, 4
    %p275 = por %p273, %p274
    %p277 = scmp.ne.s32.totalorder %s260, %s276
    %p278 = scmp.eq.s32.totalorder %s22, 0
    %p279 = por %p277, %p278
    %p280 = scmp.le.s32.totalorder 1, %s16
    %p281 = scmp.lt.s32.totalorder %s16, 6
    %p282 = pnand %p280, %p281
    %p283 = pneg %p282
    // Predicated region
    $region9: #{model_forward.1} parent=5 // pred_check
      _
    $region10: #{model_forward.1} parent=5 // pred_check_branch
      %285 = sbr.rel (%p282) target = $region12
    $region11: #{model_forward.1} parent=5 // pred_region
      %s286 = ssub.s32 %s16, 1
      // Predicated region
      $region13: #{model_forward.1} parent=11 // pred_check
        %p287 = pneg %p37
      $region14: #{model_forward.1} parent=11 // pred_check_branch
        %289 = sbr.rel (%p287) target = $region16
      $region15: #{model_forward.1} parent=11 // pred_region
        _
      $region16: #{model_forward.1} parent=11 // pred_fallthru
        _
      // Predicated region
      $region17: #{model_forward.1} parent=11 // pred_check
        %p290 = pneg %p58
      $region18: #{model_forward.1} parent=11 // pred_check_branch
        %292 = sbr.rel (%p290) target = $region20
      $region19: #{model_forward.1} parent=11 // pred_region
        _
      $region20: #{model_forward.1} parent=11 // pred_fallthru
        _
      // Predicated region
      $region21: #{model_forward.1} parent=11 // pred_check
        %p293 = pneg %p79
      $region22: #{model_forward.1} parent=11 // pred_check_branch
        %295 = sbr.rel (%p293) target = $region24
      $region23: #{model_forward.1} parent=11 // pred_region
        _
      $region24: #{model_forward.1} parent=11 // pred_fallthru
        _
      // Predicated region
      $region25: #{model_forward.1} parent=11 // pred_check
        %p296 = pneg %p100
      $region26: #{model_forward.1} parent=11 // pred_check_branch
        %298 = sbr.rel (%p296) target = $region28
      $region27: #{model_forward.1} parent=11 // pred_region
        _
      $region28: #{model_forward.1} parent=11 // pred_fallthru
        _
      // Predicated region
      $region29: #{model_forward.1} parent=11 // pred_check
        %p299 = pneg %p121
      $region30: #{model_forward.1} parent=11 // pred_check_branch
        %301 = sbr.rel (%p299) target = $region32
      $region31: #{model_forward.1} parent=11 // pred_region
        _
      $region32: #{model_forward.1} parent=11 // pred_fallthru
        _
      // Predicated region
      $region33: #{model_forward.1} parent=11 // pred_check
        %p302 = pneg %p142
      $region34: #{model_forward.1} parent=11 // pred_check_branch
        %304 = sbr.rel (%p302) target = $region36
      $region35: #{model_forward.1} parent=11 // pred_region
        _
      $region36: #{model_forward.1} parent=11 // pred_fallthru
        _
    $region12: #{model_forward.1} parent=5 // pred_fallthru
      _
    %p305 = scmp.lt.s32.totalorder %s16, 5
    // Predicated region
    $region37: #{model_forward.1} parent=5 // pred_check
      %p306 = pneg %p305
    $region38: #{model_forward.1} parent=5 // pred_check_branch
      %308 = sbr.rel (%p306) target = $region40
    $region39: #{model_forward.1} parent=5 // pred_region
      // Predicated region
      $region41: #{model_forward.1} parent=39 // pred_check
        %p309 = pneg %p162
      $region42: #{model_forward.1} parent=39 // pred_check_branch
        %311 = sbr.rel (%p309) target = $region44
      $region43: #{model_forward.1} parent=39 // pred_region
        %p312 = scmp.lt.s32.totalorder %s16, 4
        %s313 = scalar_select %p312, %s16, 4
        %s314 = smul.addr %s313, 68
        %s315 = smul.addr %s314, 8
        %s316 = scalar_lea.vmem %s6, %s315
      $region44: #{model_forward.1} parent=39 // pred_fallthru
        _
      // Predicated region
      $region45: #{model_forward.1} parent=39 // pred_check
        %p317 = pneg %p188
      $region46: #{model_forward.1} parent=39 // pred_check_branch
        %319 = sbr.rel (%p317) target = $region48
      $region47: #{model_forward.1} parent=39 // pred_region
        %p320 = scmp.lt.s32.totalorder %s16, 4
        %s321 = scalar_select %p320, %s16, 4
        %s322 = smul.addr %s321, 16
        %s323 = smul.addr %s322, 8
        %s324 = scalar_lea.vmem %s7, %s323
      $region48: #{model_forward.1} parent=39 // pred_fallthru
        _
      // Predicated region
      $region49: #{model_forward.1} parent=39 // pred_check
        %p325 = pneg %p214
      $region50: #{model_forward.1} parent=39 // pred_check_branch
        %327 = sbr.rel (%p325) target = $region52
      $region51: #{model_forward.1} parent=39 // pred_region
        %p328 = scmp.lt.s32.totalorder %s16, 4
        %s329 = scalar_select %p328, %s16, 4
        %s330 = smul.addr %s329, 4
        %s331 = smul.addr %s330, 8
        %s332 = scalar_lea.vmem %s8, %s331
      $region52: #{model_forward.1} parent=39 // pred_fallthru
        _
      // Predicated region
      $region53: #{model_forward.1} parent=39 // pred_check
        %p333 = pneg %p240
      $region54: #{model_forward.1} parent=39 // pred_check_branch
        %335 = sbr.rel (%p333) target = $region56
      $region55: #{model_forward.1} parent=39 // pred_region
        %p336 = scmp.lt.s32.totalorder %s16, 4
        %s337 = scalar_select %p336, %s16, 4
        %s338 = smul.addr %s337, 4
        %s339 = scalar_lea.vmem %s9, %s338
      $region56: #{model_forward.1} parent=39 // pred_fallthru
        _
    $region40: #{model_forward.1} parent=5 // pred_fallthru
      _
    %p340 = scmp.le.s32.totalorder 1, %s16
    %p341 = scmp.lt.s32.totalorder %s16, 6
    %p342 = pnand %p340, %p341
    %p343 = pneg %p342
    // Predicated region
    $region57: #{model_forward.1} parent=5 // pred_check
      _
    $region58: #{model_forward.1} parent=5 // pred_check_branch
      %345 = sbr.rel (%p342) target = $region60
    $region59: #{model_forward.1} parent=5 // pred_region
      %s346 = ssub.s32 %s16, 1
      %p347 = pneg %p37
      %p348 = pneg %p34
      %p349 = pneg %p58
      %p350 = pneg %p55
      %p351 = pneg %p79
      %p352 = pneg %p76
      %p353 = pneg %p100
      %p354 = pneg %p97
      %p355 = pneg %p121
      %p356 = pneg %p118
      %p357 = pneg %p142
      %p358 = pneg %p139
      %p359 = scmp.lt.s32.totalorder %s21, 4
      %s360 = scalar_select %p359, %s21, 4
      %s361 = smul.addr %s360, 68
      %s362 = smul.addr %s361, 8
      %s363 = scalar_lea.vmem %s6, %s362
      %p364 = pneg %p168
      %p365 = pneg %p165
      %p366 = scmp.lt.s32.totalorder %s21, 4
      %s367 = scalar_select %p366, %s21, 4
      %s368 = smul.addr %s367, 16
      %s369 = smul.addr %s368, 8
      %s370 = scalar_lea.vmem %s7, %s369
      %p371 = pneg %p194
      %p372 = pneg %p191
      %p373 = scmp.lt.s32.totalorder %s21, 4
      %s374 = scalar_select %p373, %s21, 4
      %s375 = smul.addr %s374, 4
      %s376 = smul.addr %s375, 8
      %s377 = scalar_lea.vmem %s8, %s376
      %p378 = pneg %p220
      %p379 = pneg %p217
      %p380 = scmp.lt.s32.totalorder %s21, 4
      %s381 = scalar_select %p380, %s21, 4
      %s382 = smul.addr %s381, 4
      %s383 = scalar_lea.vmem %s9, %s382
      %p384 = pneg %p246
      %p385 = pneg %p243
      %p386 = pneg %p272
      %p387 = pneg %p269
      %p388 = scmp.lt.s32.totalorder %s21, 4
      %s389 = scalar_select %p388, %s21, 4
      %s390 = scalar_lea.vmem %s10, %s389
      %p391 = scmp.lt.s32.totalorder %s21, 4
      %s392 = scalar_select %p391, %s21, 4
      %s393 = smul.addr %s392, 68
      %s394 = smul.addr %s393, 8
      %s395 = scalar_lea.vmem %s6, %s394
      %p396 = scmp.lt.s32.totalorder %s21, 4
      %s397 = scalar_select %p396, %s21, 4
      %s398 = smul.addr %s397, 16
      %s399 = smul.addr %s398, 8
      %s400 = scalar_lea.vmem %s7, %s399
      %p401 = scmp.lt.s32.totalorder %s21, 4
      %s402 = scalar_select %p401, %s21, 4
      %s403 = smul.addr %s402, 4
      %s404 = smul.addr %s403, 8
      %s405 = scalar_lea.vmem %s8, %s404
      %p406 = scmp.lt.s32.totalorder %s21, 4
      %s407 = scalar_select %p406, %s21, 4
      %s408 = smul.addr %s407, 4
      %s409 = scalar_lea.vmem %s9, %s408
      %p410 = scmp.lt.s32.totalorder %s21, 4
      %s411 = scalar_select %p410, %s21, 4
      %s412 = scalar_lea.vmem %s10, %s411
      %v413 = vld [vmem:[%s2] sm:$0xff]
      %v414 = vld [vmem:[%s2 + $0x8] sm:$0xf]
      %v415 = vld [vmem:[%s3] sm:$0xff]
      %v416 = vld [vmem:[%s3 + $0x8] sm:$0xff]
      %v417 = vld [vmem:[%s3 + $0x10] sm:$0x3]
      %v418 = vld [vmem:[%s0] sm:$0xff]
      %v419 = vld [vmem:[%s0 + $0x8] sm:$0xf]
      %v420 = vld [vmem:[%s395] sm:$0xff]
      %v421 = vld [vmem:[%s395 + $0x8] sm:$0xff]
      %v422 = vld [vmem:[%s395 + $0x10] sm:$0xff]
      %v423 = vld [vmem:[%s395 + $0x18] sm:$0xff]
      %v424 = vld [vmem:[%s405] sm:$0x1]
      %v425 = vperm.slane %v424, 0
      %vm426 = vcmask 261120
      %v428 = vsel %vm426, %v418, 0
      %v431 = vsel %vm426, %v419, 0
      %433 = vmatpush.msra.mxu0 0.0
      %434 = vmatpush.msra.mxu0 0.0
      %435 = vmatpush.msra.mxu0 0.0
      %436 = vmatpush.msra.mxu0 0.0
      %437 = vmatpush.msra.mxu0 0.0
      %438 = vmatpush.msra.mxu0 0.0
      %439 = vmatpush.msra.mxu0 0.0
      %440 = vmatpush.msra.mxu0 0.0
      %441 = vmatpush.msra.mxu0 0.0
      %442 = vmatpush.msra.mxu0 0.0
      %443 = vmatpush.msra.mxu0 0.0
      %444 = vmatpush.msra.mxu0 0.0
      %445 = vmatpush.msra.mxu0 %v423
      %446 = vmatpush.msra.mxu0 %v422
      %447 = vmatpush.msra.mxu0 %v421
      %448 = vmatpush.msra.mxu0 %v420
      %449 = vmatmul.f32.gmra.mxu0 %v428
      %v450 = vpop.f32.mrf.mxu0
      %v451 = vadd.f32 %v425, %v450
      %452 = vmatmul.f32.gmra.mxu0 %v431
      %v453 = vpop.f32.mrf.mxu0
      %v454 = vadd.f32 %v425, %v453
      %455 = vdwg.mxu0
      %vm456 = vcmp.ge.f32.partialorder %v451, 0.0
      %vm457 = vcmp.ge.f32.partialorder %v454, 0.0
      %v458 = vmul.f32 %v451, 0.01
      %v459 = vmul.f32 %v454, 0.01
      %v460 = vsel %vm456, %v451, %v458
      %v461 = vsel %vm457, %v454, %v459
      %v462 = vld [vmem:[%s395 + $0x20] sm:$0xff]
      %v463 = vld [vmem:[%s395 + $0x28] sm:$0xff]
      %v464 = vld [vmem:[%s395 + $0x30] sm:$0xff]
      %v465 = vld [vmem:[%s395 + $0x38] sm:$0xff]
      %v466 = vld [vmem:[%s405 + $0x1] sm:$0x1]
      %v467 = vperm.slane %v466, 0
      %v469 = vsel %vm426, %v460, 0
      %v472 = vsel %vm426, %v461, 0
      %474 = vmatpush.msra.mxu0 0.0
      %475 = vmatpush.msra.mxu0 0.0
      %476 = vmatpush.msra.mxu0 0.0
      %477 = vmatpush.msra.mxu0 0.0
      %478 = vmatpush.msra.mxu0 0.0
      %479 = vmatpush.msra.mxu0 0.0
      %480 = vmatpush.msra.mxu0 0.0
      %481 = vmatpush.msra.mxu0 0.0
      %482 = vmatpush.msra.mxu0 0.0
      %483 = vmatpush.msra.mxu0 0.0
      %484 = vmatpush.msra.mxu0 0.0
      %485 = vmatpush.msra.mxu0 0.0
      %486 = vmatpush.msra.mxu0 %v465
      %487 = vmatpush.msra.mxu0 %v464
      %488 = vmatpush.msra.mxu0 %v463
      %489 = vmatpush.msra.mxu0 %v462
      %490 = vmatmul.f32.gmra.mxu0 %v469
      %v491 = vpop.f32.mrf.mxu0
      %v492 = vadd.f32 %v467, %v491
      %493 = vmatmul.f32.gmra.mxu0 %v472
      %v494 = vpop.f32.mrf.mxu0
      %v495 = vadd.f32 %v467, %v494
      %496 = vdwg.mxu0
      %vm497 = vcmp.ge.f32.partialorder %v492, 0.0
      %vm498 = vcmp.ge.f32.partialorder %v495, 0.0
      %v499 = vmul.f32 %v492, 0.01
      %v500 = vmul.f32 %v495, 0.01
      %v501 = vsel %vm497, %v492, %v499
      %v502 = vsel %vm498, %v495, %v500
      %503 = vst.msk [vmem:[#allocation3] sm:$0xff] %vm426, %v501
      %vm504 = vcmask 257024
      %505 = vst.msk [vmem:[#allocation3 + $0x8] sm:$0xf] %vm504, %v502
      %v506 = vld [vmem:[%s1] sm:$0xff]
      %v507 = vld [vmem:[%s1 + $0x8] sm:$0xff]
      %v508 = vld [vmem:[%s1 + $0x10] sm:$0x3]
      %v509 = vld [vmem:[%s395 + $0x40] sm:$0xff]
      %v510 = vld [vmem:[%s395 + $0x48] sm:$0xff]
      %v511 = vld [vmem:[%s395 + $0x50] sm:$0xff]
      %v512 = vld [vmem:[%s395 + $0x58] sm:$0xff]
      %v513 = vld [vmem:[%s405 + $0x2] sm:$0x1]
      %v514 = vperm.slane %v513, 0
      %v516 = vsel %vm426, %v506, 0
      %v519 = vsel %vm426, %v507, 0
      %v522 = vsel %vm426, %v508, 0
      %524 = vmatpush.msra.mxu0 0.0
      %525 = vmatpush.msra.mxu0 0.0
      %526 = vmatpush.msra.mxu0 0.0
      %527 = vmatpush.msra.mxu0 0.0
      %528 = vmatpush.msra.mxu0 0.0
      %529 = vmatpush.msra.mxu0 0.0
      %530 = vmatpush.msra.mxu0 0.0
      %531 = vmatpush.msra.mxu0 0.0
      %532 = vmatpush.msra.mxu0 0.0
      %533 = vmatpush.msra.mxu0 0.0
      %534 = vmatpush.msra.mxu0 0.0
      %535 = vmatpush.msra.mxu0 0.0
      %536 = vmatpush.msra.mxu0 %v512
      %537 = vmatpush.msra.mxu0 %v511
      %538 = vmatpush.msra.mxu0 %v510
      %539 = vmatpush.msra.mxu0 %v509
      %540 = vmatmul.f32.gmra.mxu0 %v516
      %v541 = vpop.f32.mrf.mxu0
      %v542 = vadd.f32 %v514, %v541
      %543 = vmatmul.f32.gmra.mxu0 %v519
      %v544 = vpop.f32.mrf.mxu0
      %v545 = vadd.f32 %v514, %v544
      %546 = vmatmul.f32.gmra.mxu0 %v522
      %v547 = vpop.f32.mrf.mxu0
      %v548 = vadd.f32 %v514, %v547
      %549 = vdwg.mxu0
      %550 = vst.msk [vmem:[#allocation2] sm:$0xff] %vm426, %v542
      %551 = vst.msk [vmem:[#allocation2 + $0x8] sm:$0xff] %vm426, %v545
      %vm552 = vcmask 254976
      %553 = vst.msk [vmem:[#allocation2 + $0x10] sm:$0x3] %vm552, %v548
      %v554 = vld [vmem:[#allocation2] sm:$0xff]
      %v555 = vld [vmem:[#allocation2 + $0x8] sm:$0xff]
      %v556 = vld [vmem:[#allocation2 + $0x10] sm:$0x3]
      %v557 = vld [vmem:[%s405 + $0x3] sm:$0x1]
      %v558 = vld [vmem:[%s405 + $0x4] sm:$0x1]
      %v559 = vsel %vm426, %v554, 0.0
      %560 = vadd.xlane.f32.xlu0 %v559
      %v561 = vpop.xlane.xlu0 %560
      %v562 = vsel %vm426, %v555, 0.0
      %563 = vadd.xlane.f32.xlu0 %v562
      %v564 = vpop.xlane.xlu0 %563
      %v565 = vsel %vm552, %v556, 0.0
      %566 = vadd.xlane.f32.xlu0 %v565
      %v567 = vpop.xlane.xlu0 %566
      %v568 = vrcp.pop 32.0
      %v569 = vmul.f32 32.0, %v568
      %v570 = vsub.f32 1.0, %v569
      %v571 = vmul.f32 %v568, %v570
      %v572 = vadd.f32 %v568, %v571
      %vm573 = vweird.f32 %v568
      %v574 = vsel %vm573, %v568, %v572
      %v575 = vmul.f32 %v561, %v574
      %v576 = vmul.f32 %v564, %v574
      %v577 = vmul.f32 %v567, %v574
      %v578 = vsub.f32 %v554, %v575
      %v579 = vsub.f32 %v555, %v576
      %v580 = vsub.f32 %v556, %v577
      %v581 = vmul.f32 %v578, %v578
      %v582 = vmul.f32 %v579, %v579
      %v583 = vmul.f32 %v580, %v580
      %v584 = vsel %vm426, %v581, 0.0
      %585 = vadd.xlane.f32.xlu0 %v584
      %v586 = vpop.xlane.xlu0 %585
      %v587 = vsel %vm426, %v582, 0.0
      %588 = vadd.xlane.f32.xlu0 %v587
      %v589 = vpop.xlane.xlu0 %588
      %v590 = vsel %vm552, %v583, 0.0
      %591 = vadd.xlane.f32.xlu0 %v590
      %v592 = vpop.xlane.xlu0 %591
      %v593 = vmul.f32 %v586, %v574
      %v594 = vmul.f32 %v589, %v574
      %v595 = vmul.f32 %v592, %v574
      %v596 = vadd.f32 %v593, 1e-05
      %v597 = vadd.f32 %v594, 1e-05
      %v598 = vadd.f32 %v595, 1e-05
      %v599 = vrsqrt.pop %v596
      %v600 = vmul.f32 %v599, %v596
      %v601 = vmul.f32 %v600, %v599
      %v602 = vmul.f32 0.5, %v601
      %v603 = vsub.f32 1.5, %v602
      %v604 = vmul.f32 %v599, %v603
      %vm605 = vweird.f32 %v596
      %vm606 = vweird.f32 %v599
      %vm607 = vmor %vm605, %vm606
      %v608 = vsel %vm607, %v599, %v604
      %v609 = vrsqrt.pop %v597
      %v610 = vmul.f32 %v609, %v597
      %v611 = vmul.f32 %v610, %v609
      %v612 = vmul.f32 0.5, %v611
      %v613 = vsub.f32 1.5, %v612
      %v614 = vmul.f32 %v609, %v613
      %vm615 = vweird.f32 %v597
      %vm616 = vweird.f32 %v609
      %vm617 = vmor %vm615, %vm616
      %v618 = vsel %vm617, %v609, %v614
      %v619 = vrsqrt.pop %v598
      %v620 = vmul.f32 %v619, %v598
      %v621 = vmul.f32 %v620, %v619
      %v622 = vmul.f32 0.5, %v621
      %v623 = vsub.f32 1.5, %v622
      %v624 = vmul.f32 %v619, %v623
      %vm625 = vweird.f32 %v598
      %vm626 = vweird.f32 %v619
      %vm627 = vmor %vm625, %vm626
      %v628 = vsel %vm627, %v619, %v624
      %v629 = vmul.f32 %v578, %v608
      %v630 = vmul.f32 %v579, %v618
      %v631 = vmul.f32 %v580, %v628
      %v632 = vperm.slane %v557, 0
      %v633 = vmul.f32 %v629, %v632
      %v634 = vmul.f32 %v630, %v632
      %v635 = vmul.f32 %v631, %v632
      %v636 = vperm.slane %v558, 0
      %v637 = vadd.f32 %v633, %v636
      %v638 = vadd.f32 %v634, %v636
      %v639 = vadd.f32 %v635, %v636
      %v640 = vld [vmem:[%s400] sm:$0xff]
      %v641 = vld [vmem:[%s400 + $0x8] sm:$0xff]
      %v642 = vld [vmem:[%s400 + $0x10] sm:$0xff]
      %v643 = vld [vmem:[%s400 + $0x18] sm:$0xff]
      %v644 = vld [vmem:[%s409] sm:$0x1]
      %v645 = vld [vmem:[%s395 + $0x60] sm:$0xff]
      %v646 = vld [vmem:[%s395 + $0x68] sm:$0xff]
      %v647 = vld [vmem:[%s395 + $0x70] sm:$0xff]
      %v648 = vld [vmem:[%s395 + $0x78] sm:$0xff]
      %v649 = vld [vmem:[%s405 + $0x7] sm:$0x1]
      %v650 = vperm.slane %v644, 0
      %v652 = vsel %vm426, %v637, 0
      %v655 = vsel %vm426, %v638, 0
      %v658 = vsel %vm426, %v639, 0
      %660 = vmatpush.msra.mxu0 0.0
      %661 = vmatpush.msra.mxu0 0.0
      %662 = vmatpush.msra.mxu0 0.0
      %663 = vmatpush.msra.mxu0 0.0
      %664 = vmatpush.msra.mxu0 0.0
      %665 = vmatpush.msra.mxu0 0.0
      %666 = vmatpush.msra.mxu0 0.0
      %667 = vmatpush.msra.mxu0 0.0
      %668 = vmatpush.msra.mxu0 0.0
      %669 = vmatpush.msra.mxu0 0.0
      %670 = vmatpush.msra.mxu0 0.0
      %671 = vmatpush.msra.mxu0 0.0
      %672 = vmatpush.msra.mxu0 %v643
      %673 = vmatpush.msra.mxu0 %v642
      %674 = vmatpush.msra.mxu0 %v641
      %675 = vmatpush.msra.mxu0 %v640
      %676 = vmatmul.f32.gmra.mxu0 %v652
      %v677 = vpop.f32.mrf.mxu0
      %v678 = vadd.f32 %v650, %v677
      %679 = vmatmul.f32.gmra.mxu0 %v655
      %v680 = vpop.f32.mrf.mxu0
      %v681 = vadd.f32 %v650, %v680
      %682 = vmatmul.f32.gmra.mxu0 %v658
      %v683 = vpop.f32.mrf.mxu0
      %v684 = vadd.f32 %v650, %v683
      %685 = vdwg.mxu0
      %689 = vrot.lane.b32.xlu0 %v678, 96
      %v690 = vpop.permute.xlu0 %689
      %691 = vrot.lane.b32.xlu0 %v681, 96
      %v692 = vpop.permute.xlu0 %691
      %693 = vrot.lane.b32.xlu0 %v684, 96
      %v694 = vpop.permute.xlu0 %693
      %vm695 = vcmask 64512
      %v696 = vsel %vm695, %v678, 0
      %v698 = vsel %vm695, %v681, 0
      %v700 = vsel %vm695, %v684, 0
      %v702 = vsel %vm695, %v690, 0
      %v704 = vsel %vm695, %v692, 0
      %v706 = vsel %vm695, %v694, 0
      %708 = vmatpush.xpose.msra.mxu0 0.0
      %709 = vmatpush.xpose.msra.mxu0 0.0
      %710 = vmatpush.xpose.msra.mxu0 0.0
      %711 = vmatpush.xpose.msra.mxu0 0.0
      %712 = vmatpush.xpose.msra.mxu0 0.0
      %713 = vmatpush.xpose.msra.mxu0 0.0
      %714 = vmatpush.xpose.msra.mxu0 0.0
      %715 = vmatpush.xpose.msra.mxu0 0.0
      %716 = vmatpush.xpose.msra.mxu0 0.0
      %717 = vmatpush.xpose.msra.mxu0 0.0
      %718 = vmatpush.xpose.msra.mxu0 0.0
      %719 = vmatpush.xpose.msra.mxu0 0.0
      %720 = vmatpush.xpose.msra.mxu0 0.0
      %721 = vmatpush.xpose.msra.mxu0 %v706
      %722 = vmatpush.xpose.msra.mxu0 %v704
      %723 = vmatpush.xpose.msra.mxu0 %v702
      %724 = vmatmul.f32.gmra.mxu0 %v696
      %v725 = vpop.f32.mrf.mxu0
      %v726 = vadd.f32 0.0, %v725
      %727 = vmatmul.f32.gmra.mxu0 %v698
      %v728 = vpop.f32.mrf.mxu0
      %v729 = vadd.f32 0.0, %v728
      %730 = vmatmul.f32.gmra.mxu0 %v700
      %v731 = vpop.f32.mrf.mxu0
      %v732 = vadd.f32 0.0, %v731
      %733 = vdwg.mxu0
      %v734 = vmul.f32 %v726, 0.35355338
      %v735 = vmul.f32 %v729, 0.35355338
      %v736 = vmul.f32 %v732, 0.35355338
      %v737 = vadd.f32 %v734, %v415
      %v738 = vadd.f32 %v735, %v416
      %v739 = vadd.f32 %v736, %v417
      %vm740 = vcmask 146432
      %v741 = vsel %vm740, %v737, -inf
      %742 = vmax.xlane.f32.xlu0 %v741
      %v743 = vpop.xlane.xlu0 %742
      %v744 = vsel %vm740, %v738, -inf
      %745 = vmax.xlane.f32.xlu0 %v744
      %v746 = vpop.xlane.xlu0 %745
      %vm747 = vcmask 140288
      %v748 = vsel %vm747, %v739, -inf
      %749 = vmax.xlane.f32.xlu0 %v748
      %v750 = vpop.xlane.xlu0 %749
      %v751 = vsub.f32 %v737, %v743
      %v752 = vsub.f32 %v738, %v746
      %v753 = vsub.f32 %v739, %v750
      %v754 = vmul.f32 %v751, 1.442695
      %v755 = vpow.pop %v754
      %v756 = vmul.f32 %v752, 1.442695
      %v757 = vpow.pop %v756
      %v758 = vmul.f32 %v753, 1.442695
      %v759 = vpow.pop %v758
      %v760 = vsel %vm740, %v755, 0.0
      %761 = vadd.xlane.f32.xlu0 %v760
      %v762 = vpop.xlane.xlu0 %761
      %v763 = vsel %vm740, %v757, 0.0
      %764 = vadd.xlane.f32.xlu0 %v763
      %v765 = vpop.xlane.xlu0 %764
      %v766 = vsel %vm747, %v759, 0.0
      %767 = vadd.xlane.f32.xlu0 %v766
      %v768 = vpop.xlane.xlu0 %767
      %v769 = vrcp.pop %v762
      %v770 = vrcp.pop %v765
      %v771 = vrcp.pop %v768
      %v772 = vmul.f32 %v755, %v769
      %v773 = vmul.f32 %v757, %v770
      %v774 = vmul.f32 %v759, %v771
      %v775 = vadd.f32 %v772, 0.0
      %v776 = vadd.f32 %v773, 0.0
      %v777 = vadd.f32 %v774, 0.0
      %778 = vrot.lane.b32.xlu0 %v678, 64
      %v779 = vpop.permute.xlu0 %778
      %780 = vrot.lane.b32.xlu0 %v681, 64
      %v781 = vpop.permute.xlu0 %780
      %782 = vrot.lane.b32.xlu0 %v684, 64
      %v783 = vpop.permute.xlu0 %782
      %v787 = vsel %vm740, %v772, 0
      %v790 = vsel %vm740, %v773, 0
      %v793 = vsel %vm740, %v774, 0
      %vm795 = vcmask 1041408
      %v796 = vsel %vm795, %v783, 0
      %798 = vmatpush.msra.mxu0 0.0
      %799 = vmatpush.msra.mxu0 0.0
      %800 = vmatpush.msra.mxu0 0.0
      %801 = vmatpush.msra.mxu0 0.0
      %802 = vmatpush.msra.mxu0 0.0
      %803 = vmatpush.msra.mxu0 0.0
      %804 = vmatpush.msra.mxu0 0.0
      %805 = vmatpush.msra.mxu0 0.0
      %806 = vmatpush.msra.mxu0 0.0
      %807 = vmatpush.msra.mxu0 0.0
      %808 = vmatpush.msra.mxu0 0.0
      %809 = vmatpush.msra.mxu0 0.0
      %810 = vmatpush.msra.mxu0 0.0
      %811 = vmatpush.msra.mxu0 %v796
      %812 = vmatpush.msra.mxu0 %v781
      %813 = vmatpush.msra.mxu0 %v779
      %814 = vmatmul.f32.gmra.mxu0 %v787
      %v815 = vpop.f32.mrf.mxu0
      %v816 = vadd.f32 0.0, %v815
      %817 = vmatmul.f32.gmra.mxu0 %v790
      %v818 = vpop.f32.mrf.mxu0
      %v819 = vadd.f32 0.0, %v818
      %820 = vmatmul.f32.gmra.mxu0 %v793
      %v821 = vpop.f32.mrf.mxu0
      %v822 = vadd.f32 0.0, %v821
      %823 = vdwg.mxu0
      %824 = vrot.lane.b32.xlu0 %v678, 120
      %v825 = vpop.permute.xlu0 %824
      %826 = vrot.lane.b32.xlu0 %v681, 120
      %v827 = vpop.permute.xlu0 %826
      %828 = vrot.lane.b32.xlu0 %v684, 120
      %v829 = vpop.permute.xlu0 %828
      %830 = vrot.lane.b32.xlu0 %v678, 88
      %v831 = vpop.permute.xlu0 %830
      %832 = vrot.lane.b32.xlu0 %v681, 88
      %v833 = vpop.permute.xlu0 %832
      %834 = vrot.lane.b32.xlu0 %v684, 88
      %v835 = vpop.permute.xlu0 %834
      %v836 = vsel %vm695, %v825, 0
      %v838 = vsel %vm695, %v827, 0
      %v840 = vsel %vm695, %v829, 0
      %v842 = vsel %vm695, %v831, 0
      %v844 = vsel %vm695, %v833, 0
      %v846 = vsel %vm695, %v835, 0
      %848 = vmatpush.xpose.msra.mxu0 0.0
      %849 = vmatpush.xpose.msra.mxu0 0.0
      %850 = vmatpush.xpose.msra.mxu0 0.0
      %851 = vmatpush.xpose.msra.mxu0 0.0
      %852 = vmatpush.xpose.msra.mxu0 0.0
      %853 = vmatpush.xpose.msra.mxu0 0.0
      %854 = vmatpush.xpose.msra.mxu0 0.0
      %855 = vmatpush.xpose.msra.mxu0 0.0
      %856 = vmatpush.xpose.msra.mxu0 0.0
      %857 = vmatpush.xpose.msra.mxu0 0.0
      %858 = vmatpush.xpose.msra.mxu0 0.0
      %859 = vmatpush.xpose.msra.mxu0 0.0
      %860 = vmatpush.xpose.msra.mxu0 0.0
      %861 = vmatpush.xpose.msra.mxu0 %v846
      %862 = vmatpush.xpose.msra.mxu0 %v844
      %863 = vmatpush.xpose.msra.mxu0 %v842
      %864 = vmatmul.f32.gmra.mxu0 %v836
      %v865 = vpop.f32.mrf.mxu0
      %v866 = vadd.f32 0.0, %v865
      %867 = vmatmul.f32.gmra.mxu0 %v838
      %v868 = vpop.f32.mrf.mxu0
      %v869 = vadd.f32 0.0, %v868
      %870 = vmatmul.f32.gmra.mxu0 %v840
      %v871 = vpop.f32.mrf.mxu0
      %v872 = vadd.f32 0.0, %v871
      %873 = vdwg.mxu0
      %v874 = vmul.f32 %v866, 0.35355338
      %v875 = vmul.f32 %v869, 0.35355338
      %v876 = vmul.f32 %v872, 0.35355338
      %v877 = vadd.f32 %v874, %v415
      %v878 = vadd.f32 %v875, %v416
      %v879 = vadd.f32 %v876, %v417
      %v880 = vsel %vm740, %v877, -inf
      %881 = vmax.xlane.f32.xlu0 %v880
      %v882 = vpop.xlane.xlu0 %881
      %v883 = vsel %vm740, %v878, -inf
      %884 = vmax.xlane.f32.xlu0 %v883
      %v885 = vpop.xlane.xlu0 %884
      %v886 = vsel %vm747, %v879, -inf
      %887 = vmax.xlane.f32.xlu0 %v886
      %v888 = vpop.xlane.xlu0 %887
      %v889 = vsub.f32 %v877, %v882
      %v890 = vsub.f32 %v878, %v885
      %v891 = vsub.f32 %v879, %v888
      %v892 = vmul.f32 %v889, 1.442695
      %v893 = vpow.pop %v892
      %v894 = vmul.f32 %v890, 1.442695
      %v895 = vpow.pop %v894
      %v896 = vmul.f32 %v891, 1.442695
      %v897 = vpow.pop %v896
      %v898 = vsel %vm740, %v893, 0.0
      %899 = vadd.xlane.f32.xlu0 %v898
      %v900 = vpop.xlane.xlu0 %899
      %v901 = vsel %vm740, %v895, 0.0
      %902 = vadd.xlane.f32.xlu0 %v901
      %v903 = vpop.xlane.xlu0 %902
      %v904 = vsel %vm747, %v897, 0.0
      %905 = vadd.xlane.f32.xlu0 %v904
      %v906 = vpop.xlane.xlu0 %905
      %v907 = vrcp.pop %v900
      %v908 = vrcp.pop %v903
      %v909 = vrcp.pop %v906
      %v910 = vmul.f32 %v893, %v907
      %v911 = vmul.f32 %v895, %v908
      %v912 = vmul.f32 %v897, %v909
      %v913 = vadd.f32 %v775, %v910
      %v914 = vadd.f32 %v776, %v911
      %v915 = vadd.f32 %v777, %v912
      %916 = vrot.lane.b32.xlu0 %v678, 56
      %v917 = vpop.permute.xlu0 %916
      %918 = vrot.lane.b32.xlu0 %v681, 56
      %v919 = vpop.permute.xlu0 %918
      %920 = vrot.lane.b32.xlu0 %v684, 56
      %v921 = vpop.permute.xlu0 %920
      %v925 = vsel %vm740, %v910, 0
      %v928 = vsel %vm740, %v911, 0
      %v931 = vsel %vm740, %v912, 0
      %v933 = vsel %vm795, %v921, 0
      %935 = vmatpush.msra.mxu0 0.0
      %936 = vmatpush.msra.mxu0 0.0
      %937 = vmatpush.msra.mxu0 0.0
      %938 = vmatpush.msra.mxu0 0.0
      %939 = vmatpush.msra.mxu0 0.0
      %940 = vmatpush.msra.mxu0 0.0
      %941 = vmatpush.msra.mxu0 0.0
      %942 = vmatpush.msra.mxu0 0.0
      %943 = vmatpush.msra.mxu0 0.0
      %944 = vmatpush.msra.mxu0 0.0
      %945 = vmatpush.msra.mxu0 0.0
      %946 = vmatpush.msra.mxu0 0.0
      %947 = vmatpush.msra.mxu0 0.0
      %948 = vmatpush.msra.mxu0 %v933
      %949 = vmatpush.msra.mxu0 %v919
      %950 = vmatpush.msra.mxu0 %v917
      %951 = vmatmul.f32.gmra.mxu0 %v925
      %v952 = vpop.f32.mrf.mxu0
      %v953 = vadd.f32 0.0, %v952
      %954 = vmatmul.f32.gmra.mxu0 %v928
      %v955 = vpop.f32.mrf.mxu0
      %v956 = vadd.f32 0.0, %v955
      %957 = vmatmul.f32.gmra.mxu0 %v931
      %v958 = vpop.f32.mrf.mxu0
      %v959 = vadd.f32 0.0, %v958
      %960 = vdwg.mxu0
      %961 = vrot.lane.b32.xlu0 %v678, 112
      %v962 = vpop.permute.xlu0 %961
      %963 = vrot.lane.b32.xlu0 %v681, 112
      %v964 = vpop.permute.xlu0 %963
      %965 = vrot.lane.b32.xlu0 %v684, 112
      %v966 = vpop.permute.xlu0 %965
      %967 = vrot.lane.b32.xlu0 %v678, 80
      %v968 = vpop.permute.xlu0 %967
      %969 = vrot.lane.b32.xlu0 %v681, 80
      %v970 = vpop.permute.xlu0 %969
      %971 = vrot.lane.b32.xlu0 %v684, 80
      %v972 = vpop.permute.xlu0 %971
      %v973 = vsel %vm695, %v962, 0
      %v975 = vsel %vm695, %v964, 0
      %v977 = vsel %vm695, %v966, 0
      %v979 = vsel %vm695, %v968, 0
      %v981 = vsel %vm695, %v970, 0
      %v983 = vsel %vm695, %v972, 0
      %985 = vmatpush.xpose.msra.mxu0 0.0
      %986 = vmatpush.xpose.msra.mxu0 0.0
      %987 = vmatpush.xpose.msra.mxu0 0.0
      %988 = vmatpush.xpose.msra.mxu0 0.0
      %989 = vmatpush.xpose.msra.mxu0 0.0
      %990 = vmatpush.xpose.msra.mxu0 0.0
      %991 = vmatpush.xpose.msra.mxu0 0.0
      %992 = vmatpush.xpose.msra.mxu0 0.0
      %993 = vmatpush.xpose.msra.mxu0 0.0
      %994 = vmatpush.xpose.msra.mxu0 0.0
      %995 = vmatpush.xpose.msra.mxu0 0.0
      %996 = vmatpush.xpose.msra.mxu0 0.0
      %997 = vmatpush.xpose.msra.mxu0 0.0
      %998 = vmatpush.xpose.msra.mxu0 %v983
      %999 = vmatpush.xpose.msra.mxu0 %v981
      %1000 = vmatpush.xpose.msra.mxu0 %v979
      %1001 = vmatmul.f32.gmra.mxu0 %v973
      %v1002 = vpop.f32.mrf.mxu0
      %v1003 = vadd.f32 0.0, %v1002
      %1004 = vmatmul.f32.gmra.mxu0 %v975
      %v1005 = vpop.f32.mrf.mxu0
      %v1006 = vadd.f32 0.0, %v1005
      %1007 = vmatmul.f32.gmra.mxu0 %v977
      %v1008 = vpop.f32.mrf.mxu0
      %v1009 = vadd.f32 0.0, %v1008
      %1010 = vdwg.mxu0
      %v1011 = vmul.f32 %v1003, 0.35355338
      %v1012 = vmul.f32 %v1006, 0.35355338
      %v1013 = vmul.f32 %v1009, 0.35355338
      %v1014 = vadd.f32 %v1011, %v415
      %v1015 = vadd.f32 %v1012, %v416
      %v1016 = vadd.f32 %v1013, %v417
      %v1017 = vsel %vm740, %v1014, -inf
      %1018 = vmax.xlane.f32.xlu0 %v1017
      %v1019 = vpop.xlane.xlu0 %1018
      %v1020 = vsel %vm740, %v1015, -inf
      %1021 = vmax.xlane.f32.xlu0 %v1020
      %v1022 = vpop.xlane.xlu0 %1021
      %v1023 = vsel %vm747, %v1016, -inf
      %1024 = vmax.xlane.f32.xlu0 %v1023
      %v1025 = vpop.xlane.xlu0 %1024
      %v1026 = vsub.f32 %v1014, %v1019
      %v1027 = vsub.f32 %v1015, %v1022
      %v1028 = vsub.f32 %v1016, %v1025
      %v1029 = vmul.f32 %v1026, 1.442695
      %v1030 = vpow.pop %v1029
      %v1031 = vmul.f32 %v1027, 1.442695
      %v1032 = vpow.pop %v1031
      %v1033 = vmul.f32 %v1028, 1.442695
      %v1034 = vpow.pop %v1033
      %v1035 = vsel %vm740, %v1030, 0.0
      %1036 = vadd.xlane.f32.xlu0 %v1035
      %v1037 = vpop.xlane.xlu0 %1036
      %v1038 = vsel %vm740, %v1032, 0.0
      %1039 = vadd.xlane.f32.xlu0 %v1038
      %v1040 = vpop.xlane.xlu0 %1039
      %v1041 = vsel %vm747, %v1034, 0.0
      %1042 = vadd.xlane.f32.xlu0 %v1041
      %v1043 = vpop.xlane.xlu0 %1042
      %v1044 = vrcp.pop %v1037
      %v1045 = vrcp.pop %v1040
      %v1046 = vrcp.pop %v1043
      %v1047 = vmul.f32 %v1030, %v1044
      %v1048 = vmul.f32 %v1032, %v1045
      %v1049 = vmul.f32 %v1034, %v1046
      %v1050 = vadd.f32 %v913, %v1047
      %v1051 = vadd.f32 %v914, %v1048
      %v1052 = vadd.f32 %v915, %v1049
      %1053 = vrot.lane.b32.xlu0 %v678, 48
      %v1054 = vpop.permute.xlu0 %1053
      %1055 = vrot.lane.b32.xlu0 %v681, 48
      %v1056 = vpop.permute.xlu0 %1055
      %1057 = vrot.lane.b32.xlu0 %v684, 48
      %v1058 = vpop.permute.xlu0 %1057
      %v1062 = vsel %vm740, %v1047, 0
      %v1065 = vsel %vm740, %v1048, 0
      %v1068 = vsel %vm740, %v1049, 0
      %v1070 = vsel %vm795, %v1058, 0
      %1072 = vmatpush.msra.mxu0 0.0
      %1073 = vmatpush.msra.mxu0 0.0
      %1074 = vmatpush.msra.mxu0 0.0
      %1075 = vmatpush.msra.mxu0 0.0
      %1076 = vmatpush.msra.mxu0 0.0
      %1077 = vmatpush.msra.mxu0 0.0
      %1078 = vmatpush.msra.mxu0 0.0
      %1079 = vmatpush.msra.mxu0 0.0
      %1080 = vmatpush.msra.mxu0 0.0
      %1081 = vmatpush.msra.mxu0 0.0
      %1082 = vmatpush.msra.mxu0 0.0
      %1083 = vmatpush.msra.mxu0 0.0
      %1084 = vmatpush.msra.mxu0 0.0
      %1085 = vmatpush.msra.mxu0 %v1070
      %1086 = vmatpush.msra.mxu0 %v1056
      %1087 = vmatpush.msra.mxu0 %v1054
      %1088 = vmatmul.f32.gmra.mxu0 %v1062
      %v1089 = vpop.f32.mrf.mxu0
      %v1090 = vadd.f32 0.0, %v1089
      %1091 = vmatmul.f32.gmra.mxu0 %v1065
      %v1092 = vpop.f32.mrf.mxu0
      %v1093 = vadd.f32 0.0, %v1092
      %1094 = vmatmul.f32.gmra.mxu0 %v1068
      %v1095 = vpop.f32.mrf.mxu0
      %v1096 = vadd.f32 0.0, %v1095
      %1097 = vdwg.mxu0
      %1098 = vrot.lane.b32.xlu0 %v678, 104
      %v1099 = vpop.permute.xlu0 %1098
      %1100 = vrot.lane.b32.xlu0 %v681, 104
      %v1101 = vpop.permute.xlu0 %1100
      %1102 = vrot.lane.b32.xlu0 %v684, 104
      %v1103 = vpop.permute.xlu0 %1102
      %1104 = vrot.lane.b32.xlu0 %v678, 72
      %v1105 = vpop.permute.xlu0 %1104
      %1106 = vrot.lane.b32.xlu0 %v681, 72
      %v1107 = vpop.permute.xlu0 %1106
      %1108 = vrot.lane.b32.xlu0 %v684, 72
      %v1109 = vpop.permute.xlu0 %1108
      %v1110 = vsel %vm695, %v1099, 0
      %v1112 = vsel %vm695, %v1101, 0
      %v1114 = vsel %vm695, %v1103, 0
      %v1116 = vsel %vm695, %v1105, 0
      %v1118 = vsel %vm695, %v1107, 0
      %v1120 = vsel %vm695, %v1109, 0
      %1122 = vmatpush.xpose.msra.mxu0 0.0
      %1123 = vmatpush.xpose.msra.mxu0 0.0
      %1124 = vmatpush.xpose.msra.mxu0 0.0
      %1125 = vmatpush.xpose.msra.mxu0 0.0
      %1126 = vmatpush.xpose.msra.mxu0 0.0
      %1127 = vmatpush.xpose.msra.mxu0 0.0
      %1128 = vmatpush.xpose.msra.mxu0 0.0
      %1129 = vmatpush.xpose.msra.mxu0 0.0
      %1130 = vmatpush.xpose.msra.mxu0 0.0
      %1131 = vmatpush.xpose.msra.mxu0 0.0
      %1132 = vmatpush.xpose.msra.mxu0 0.0
      %1133 = vmatpush.xpose.msra.mxu0 0.0
      %1134 = vmatpush.xpose.msra.mxu0 0.0
      %1135 = vmatpush.xpose.msra.mxu0 %v1120
      %1136 = vmatpush.xpose.msra.mxu0 %v1118
      %1137 = vmatpush.xpose.msra.mxu0 %v1116
      %1138 = vmatmul.f32.gmra.mxu0 %v1110
      %v1139 = vpop.f32.mrf.mxu0
      %v1140 = vadd.f32 0.0, %v1139
      %1141 = vmatmul.f32.gmra.mxu0 %v1112
      %v1142 = vpop.f32.mrf.mxu0
      %v1143 = vadd.f32 0.0, %v1142
      %1144 = vmatmul.f32.gmra.mxu0 %v1114
      %v1145 = vpop.f32.mrf.mxu0
      %v1146 = vadd.f32 0.0, %v1145
      %1147 = vdwg.mxu0
      %v1148 = vmul.f32 %v1140, 0.35355338
      %v1149 = vmul.f32 %v1143, 0.35355338
      %v1150 = vmul.f32 %v1146, 0.35355338
      %v1151 = vadd.f32 %v1148, %v415
      %v1152 = vadd.f32 %v1149, %v416
      %v1153 = vadd.f32 %v1150, %v417
      %v1154 = vsel %vm740, %v1151, -inf
      %1155 = vmax.xlane.f32.xlu0 %v1154
      %v1156 = vpop.xlane.xlu0 %1155
      %v1157 = vsel %vm740, %v1152, -inf
      %1158 = vmax.xlane.f32.xlu0 %v1157
      %v1159 = vpop.xlane.xlu0 %1158
      %v1160 = vsel %vm747, %v1153, -inf
      %1161 = vmax.xlane.f32.xlu0 %v1160
      %v1162 = vpop.xlane.xlu0 %1161
      %v1163 = vsub.f32 %v1151, %v1156
      %v1164 = vsub.f32 %v1152, %v1159
      %v1165 = vsub.f32 %v1153, %v1162
      %v1166 = vmul.f32 %v1163, 1.442695
      %v1167 = vpow.pop %v1166
      %v1168 = vmul.f32 %v1164, 1.442695
      %v1169 = vpow.pop %v1168
      %v1170 = vmul.f32 %v1165, 1.442695
      %v1171 = vpow.pop %v1170
      %v1172 = vsel %vm740, %v1167, 0.0
      %1173 = vadd.xlane.f32.xlu0 %v1172
      %v1174 = vpop.xlane.xlu0 %1173
      %v1175 = vsel %vm740, %v1169, 0.0
      %1176 = vadd.xlane.f32.xlu0 %v1175
      %v1177 = vpop.xlane.xlu0 %1176
      %v1178 = vsel %vm747, %v1171, 0.0
      %1179 = vadd.xlane.f32.xlu0 %v1178
      %v1180 = vpop.xlane.xlu0 %1179
      %v1181 = vrcp.pop %v1174
      %v1182 = vrcp.pop %v1177
      %v1183 = vrcp.pop %v1180
      %v1184 = vmul.f32 %v1167, %v1181
      %v1185 = vmul.f32 %v1169, %v1182
      %v1186 = vmul.f32 %v1171, %v1183
      %v1187 = vadd.f32 %v1050, %v1184
      %v1188 = vadd.f32 %v1051, %v1185
      %v1189 = vadd.f32 %v1052, %v1186
      %1190 = vrot.lane.b32.xlu0 %v678, 40
      %v1191 = vpop.permute.xlu0 %1190
      %1192 = vrot.lane.b32.xlu0 %v681, 40
      %v1193 = vpop.permute.xlu0 %1192
      %1194 = vrot.lane.b32.xlu0 %v684, 40
      %v1195 = vpop.permute.xlu0 %1194
      %v1199 = vsel %vm740, %v1184, 0
      %v1202 = vsel %vm740, %v1185, 0
      %v1205 = vsel %vm740, %v1186, 0
      %v1207 = vsel %vm795, %v1195, 0
      %1209 = vmatpush.msra.mxu0 0.0
      %1210 = vmatpush.msra.mxu0 0.0
      %1211 = vmatpush.msra.mxu0 0.0
      %1212 = vmatpush.msra.mxu0 0.0
      %1213 = vmatpush.msra.mxu0 0.0
      %1214 = vmatpush.msra.mxu0 0.0
      %1215 = vmatpush.msra.mxu0 0.0
      %1216 = vmatpush.msra.mxu0 0.0
      %1217 = vmatpush.msra.mxu0 0.0
      %1218 = vmatpush.msra.mxu0 0.0
      %1219 = vmatpush.msra.mxu0 0.0
      %1220 = vmatpush.msra.mxu0 0.0
      %1221 = vmatpush.msra.mxu0 0.0
      %1222 = vmatpush.msra.mxu0 %v1207
      %1223 = vmatpush.msra.mxu0 %v1193
      %1224 = vmatpush.msra.mxu0 %v1191
      %1225 = vmatmul.f32.gmra.mxu0 %v1199
      %v1226 = vpop.f32.mrf.mxu0
      %v1227 = vadd.f32 0.0, %v1226
      %1228 = vmatmul.f32.gmra.mxu0 %v1202
      %v1229 = vpop.f32.mrf.mxu0
      %v1230 = vadd.f32 0.0, %v1229
      %1231 = vmatmul.f32.gmra.mxu0 %v1205
      %v1232 = vpop.f32.mrf.mxu0
      %v1233 = vadd.f32 0.0, %v1232
      %1234 = vdwg.mxu0
      %1238 = vrot.lane.b32.xlu0 %v953, 8
      %v1239 = vpop.permute.xlu0 %1238
      %1240 = vrot.lane.b32.xlu0 %v956, 8
      %v1241 = vpop.permute.xlu0 %1240
      %1242 = vrot.lane.b32.xlu0 %v959, 8
      %v1243 = vpop.permute.xlu0 %1242
      %1250 = vrot.lane.b32.xlu0 %v1090, 16
      %v1251 = vpop.permute.xlu0 %1250
      %1252 = vrot.lane.b32.xlu0 %v1093, 16
      %v1253 = vpop.permute.xlu0 %1252
      %1254 = vrot.lane.b32.xlu0 %v1096, 16
      %v1255 = vpop.permute.xlu0 %1254
      %1262 = vrot.lane.b32.xlu0 %v1227, 24
      %v1263 = vpop.permute.xlu0 %1262
      %1264 = vrot.lane.b32.xlu0 %v1230, 24
      %v1265 = vpop.permute.xlu0 %1264
      %1266 = vrot.lane.b32.xlu0 %v1233, 24
      %v1267 = vpop.permute.xlu0 %1266
      %v1271 = vsel %vm695, %v816, %v1239
      %v1272 = vsel %vm695, %v819, %v1241
      %v1273 = vsel %vm695, %v822, %v1243
      %vm1274 = vcmask 130048
      %v1275 = vsel %vm1274, %v1271, %v1251
      %v1276 = vsel %vm1274, %v1272, %v1253
      %v1277 = vsel %vm1274, %v1273, %v1255
      %vm1278 = vcmask 195584
      %v1279 = vsel %vm1278, %v1275, %v1263
      %v1280 = vsel %vm1278, %v1276, %v1265
      %v1281 = vsel %vm1278, %v1277, %v1267
      %v1282 = vperm.slane %v649, 0
      %v1284 = vsel %vm426, %v1279, 0
      %v1287 = vsel %vm426, %v1280, 0
      %v1290 = vsel %vm426, %v1281, 0
      %1292 = vmatpush.msra.mxu0 0.0
      %1293 = vmatpush.msra.mxu0 0.0
      %1294 = vmatpush.msra.mxu0 0.0
      %1295 = vmatpush.msra.mxu0 0.0
      %1296 = vmatpush.msra.mxu0 0.0
      %1297 = vmatpush.msra.mxu0 0.0
      %1298 = vmatpush.msra.mxu0 0.0
      %1299 = vmatpush.msra.mxu0 0.0
      %1300 = vmatpush.msra.mxu0 0.0
      %1301 = vmatpush.msra.mxu0 0.0
      %1302 = vmatpush.msra.mxu0 0.0
      %1303 = vmatpush.msra.mxu0 0.0
      %1304 = vmatpush.msra.mxu0 %v648
      %1305 = vmatpush.msra.mxu0 %v647
      %1306 = vmatpush.msra.mxu0 %v646
      %1307 = vmatpush.msra.mxu0 %v645
      %1308 = vmatmul.f32.gmra.mxu0 %v1284
      %v1309 = vpop.f32.mrf.mxu0
      %v1310 = vadd.f32 %v1282, %v1309
      %1311 = vmatmul.f32.gmra.mxu0 %v1287
      %v1312 = vpop.f32.mrf.mxu0
      %v1313 = vadd.f32 %v1282, %v1312
      %1314 = vmatmul.f32.gmra.mxu0 %v1290
      %v1315 = vpop.f32.mrf.mxu0
      %v1316 = vadd.f32 %v1282, %v1315
      %1317 = vdwg.mxu0
      %v1318 = vmul.f32 %v1187, 0.25
      %v1319 = vmul.f32 %v1188, 0.25
      %v1320 = vmul.f32 %v1189, 0.25
      %v1321 = vadd.f32 %v554, %v1310
      %v1322 = vadd.f32 %v555, %v1313
      %v1323 = vadd.f32 %v556, %v1316
      %v1324 = vld [vmem:[%s405 + $0x5] sm:$0x1]
      %v1325 = vld [vmem:[%s405 + $0x6] sm:$0x1]
      %v1326 = vsel %vm426, %v1321, 0.0
      %1327 = vadd.xlane.f32.xlu0 %v1326
      %v1328 = vpop.xlane.xlu0 %1327
      %v1329 = vsel %vm426, %v1322, 0.0
      %1330 = vadd.xlane.f32.xlu0 %v1329
      %v1331 = vpop.xlane.xlu0 %1330
      %v1332 = vsel %vm552, %v1323, 0.0
      %1333 = vadd.xlane.f32.xlu0 %v1332
      %v1334 = vpop.xlane.xlu0 %1333
      %v1335 = vmul.f32 %v1328, %v574
      %v1336 = vmul.f32 %v1331, %v574
      %v1337 = vmul.f32 %v1334, %v574
      %v1338 = vsub.f32 %v1321, %v1335
      %v1339 = vsub.f32 %v1322, %v1336
      %v1340 = vsub.f32 %v1323, %v1337
      %v1341 = vmul.f32 %v1338, %v1338
      %v1342 = vmul.f32 %v1339, %v1339
      %v1343 = vmul.f32 %v1340, %v1340
      %v1344 = vsel %vm426, %v1341, 0.0
      %1345 = vadd.xlane.f32.xlu0 %v1344
      %v1346 = vpop.xlane.xlu0 %1345
      %v1347 = vsel %vm426, %v1342, 0.0
      %1348 = vadd.xlane.f32.xlu0 %v1347
      %v1349 = vpop.xlane.xlu0 %1348
      %v1350 = vsel %vm552, %v1343, 0.0
      %1351 = vadd.xlane.f32.xlu0 %v1350
      %v1352 = vpop.xlane.xlu0 %1351
      %v1353 = vmul.f32 %v1346, %v574
      %v1354 = vmul.f32 %v1349, %v574
      %v1355 = vmul.f32 %v1352, %v574
      %v1356 = vadd.f32 %v1353, 1e-05
      %v1357 = vadd.f32 %v1354, 1e-05
      %v1358 = vadd.f32 %v1355, 1e-05
      %v1359 = vrsqrt.pop %v1356
      %v1360 = vmul.f32 %v1359, %v1356
      %v1361 = vmul.f32 %v1360, %v1359
      %v1362 = vmul.f32 0.5, %v1361
      %v1363 = vsub.f32 1.5, %v1362
      %v1364 = vmul.f32 %v1359, %v1363
      %vm1365 = vweird.f32 %v1356
      %vm1366 = vweird.f32 %v1359
      %vm1367 = vmor %vm1365, %vm1366
      %v1368 = vsel %vm1367, %v1359, %v1364
      %v1369 = vrsqrt.pop %v1357
      %v1370 = vmul.f32 %v1369, %v1357
      %v1371 = vmul.f32 %v1370, %v1369
      %v1372 = vmul.f32 0.5, %v1371
      %v1373 = vsub.f32 1.5, %v1372
      %v1374 = vmul.f32 %v1369, %v1373
      %vm1375 = vweird.f32 %v1357
      %vm1376 = vweird.f32 %v1369
      %vm1377 = vmor %vm1375, %vm1376
      %v1378 = vsel %vm1377, %v1369, %v1374
      %v1379 = vrsqrt.pop %v1358
      %v1380 = vmul.f32 %v1379, %v1358
      %v1381 = vmul.f32 %v1380, %v1379
      %v1382 = vmul.f32 0.5, %v1381
      %v1383 = vsub.f32 1.5, %v1382
      %v1384 = vmul.f32 %v1379, %v1383
      %vm1385 = vweird.f32 %v1358
      %vm1386 = vweird.f32 %v1379
      %vm1387 = vmor %vm1385, %vm1386
      %v1388 = vsel %vm1387, %v1379, %v1384
      %v1389 = vmul.f32 %v1338, %v1368
      %v1390 = vmul.f32 %v1339, %v1378
      %v1391 = vmul.f32 %v1340, %v1388
      %v1392 = vperm.slane %v1324, 0
      %v1393 = vmul.f32 %v1389, %v1392
      %v1394 = vmul.f32 %v1390, %v1392
      %v1395 = vmul.f32 %v1391, %v1392
      %v1396 = vperm.slane %v1325, 0
      %v1397 = vadd.f32 %v1393, %v1396
      %v1398 = vadd.f32 %v1394, %v1396
      %v1399 = vadd.f32 %v1395, %v1396
      %v1400 = vld [vmem:[%s395 + $0x80] sm:$0xff]
      %v1401 = vld [vmem:[%s395 + $0x88] sm:$0xff]
      %v1402 = vld [vmem:[%s395 + $0x90] sm:$0xff]
      %v1403 = vld [vmem:[%s395 + $0x98] sm:$0xff]
      %v1404 = vld [vmem:[%s405 + $0x8] sm:$0x1]
      %v1405 = vperm.slane %v1404, 0
      %v1407 = vsel %vm426, %v1397, 0
      %v1410 = vsel %vm426, %v1398, 0
      %v1413 = vsel %vm426, %v1399, 0
      %1415 = vmatpush.msra.mxu0 0.0
      %1416 = vmatpush.msra.mxu0 0.0
      %1417 = vmatpush.msra.mxu0 0.0
      %1418 = vmatpush.msra.mxu0 0.0
      %1419 = vmatpush.msra.mxu0 0.0
      %1420 = vmatpush.msra.mxu0 0.0
      %1421 = vmatpush.msra.mxu0 0.0
      %1422 = vmatpush.msra.mxu0 0.0
      %1423 = vmatpush.msra.mxu0 0.0
      %1424 = vmatpush.msra.mxu0 0.0
      %1425 = vmatpush.msra.mxu0 0.0
      %1426 = vmatpush.msra.mxu0 0.0
      %1427 = vmatpush.msra.mxu0 %v1403
      %1428 = vmatpush.msra.mxu0 %v1402
      %1429 = vmatpush.msra.mxu0 %v1401
      %1430 = vmatpush.msra.mxu0 %v1400
      %1431 = vmatmul.f32.gmra.mxu0 %v1407
      %v1432 = vpop.f32.mrf.mxu0
      %v1433 = vadd.f32 %v1405, %v1432
      %1434 = vmatmul.f32.gmra.mxu0 %v1410
      %v1435 = vpop.f32.mrf.mxu0
      %v1436 = vadd.f32 %v1405, %v1435
      %1437 = vmatmul.f32.gmra.mxu0 %v1413
      %v1438 = vpop.f32.mrf.mxu0
      %v1439 = vadd.f32 %v1405, %v1438
      %1440 = vdwg.mxu0
      %vm1441 = vcmp.gt.f32.partialorder %v1433, 0.0
      %vm1442 = vcmp.gt.f32.partialorder %v1436, 0.0
      %vm1443 = vcmp.gt.f32.partialorder %v1439, 0.0
      %v1444 = vmul.f32 %v1433, 1.442695
      %v1445 = vpow.pop %v1444
      %v1446 = vmul.f32 %v1436, 1.442695
      %v1447 = vpow.pop %v1446
      %v1448 = vmul.f32 %v1439, 1.442695
      %v1449 = vpow.pop %v1448
      %v1450 = vsub.f32 %v1445, 1.0
      %v1451 = vsub.f32 %v1447, 1.0
      %v1452 = vsub.f32 %v1449, 1.0
      %v1453 = vmul.f32 %v1450, 1.6732632
      %v1454 = vmul.f32 %v1451, 1.6732632
      %v1455 = vmul.f32 %v1452, 1.6732632
      %v1456 = vsel %vm1441, %v1433, %v1453
      %v1457 = vsel %vm1442, %v1436, %v1454
      %v1458 = vsel %vm1443, %v1439, %v1455
      %v1459 = vmul.f32 %v1456, 1.050701
      %v1460 = vmul.f32 %v1457, 1.050701
      %v1461 = vmul.f32 %v1458, 1.050701
      %v1462 = vld [vmem:[%s395 + $0xa0] sm:$0xff]
      %v1463 = vld [vmem:[%s395 + $0xa8] sm:$0xff]
      %v1464 = vld [vmem:[%s395 + $0xb0] sm:$0xff]
      %v1465 = vld [vmem:[%s395 + $0xb8] sm:$0xff]
      %v1467 = vsel %vm426, %v1459, 0
      %v1470 = vsel %vm426, %v1460, 0
      %v1473 = vsel %vm426, %v1461, 0
      %1475 = vmatpush.msra.mxu0 0.0
      %1476 = vmatpush.msra.mxu0 0.0
      %1477 = vmatpush.msra.mxu0 0.0
      %1478 = vmatpush.msra.mxu0 0.0
      %1479 = vmatpush.msra.mxu0 0.0
      %1480 = vmatpush.msra.mxu0 0.0
      %1481 = vmatpush.msra.mxu0 0.0
      %1482 = vmatpush.msra.mxu0 0.0
      %1483 = vmatpush.msra.mxu0 0.0
      %1484 = vmatpush.msra.mxu0 0.0
      %1485 = vmatpush.msra.mxu0 0.0
      %1486 = vmatpush.msra.mxu0 0.0
      %1487 = vmatpush.msra.mxu0 %v1465
      %1488 = vmatpush.msra.mxu0 %v1464
      %1489 = vmatpush.msra.mxu0 %v1463
      %1490 = vmatpush.msra.mxu0 %v1462
      %1491 = vmatmul.f32.gmra.mxu0 %v1467
      %v1492 = vpop.f32.mrf.mxu0
      %v1493 = vadd.f32 0.0, %v1492
      %1494 = vmatmul.f32.gmra.mxu0 %v1470
      %v1495 = vpop.f32.mrf.mxu0
      %v1496 = vadd.f32 0.0, %v1495
      %1497 = vmatmul.f32.gmra.mxu0 %v1473
      %v1498 = vpop.f32.mrf.mxu0
      %v1499 = vadd.f32 0.0, %v1498
      %1500 = vdwg.mxu0
      %v1501 = vadd.f32 %v1321, %v1493
      %v1502 = vadd.f32 %v1322, %v1496
      %v1503 = vadd.f32 %v1323, %v1499
      %v1504 = vld [vmem:[%s405 + $0x9] sm:$0x1]
      %v1505 = vperm.slane %v1504, 0
      %v1506 = vadd.f32 %v1501, %v1505
      %v1507 = vadd.f32 %v1502, %v1505
      %v1508 = vadd.f32 %v1503, %v1505
      %1509 = vst.msk [vmem:[#allocation2] sm:$0xff] %vm426, %v1506
      %1510 = vst.msk [vmem:[#allocation2 + $0x8] sm:$0xff] %vm426, %v1507
      %1511 = vst.msk [vmem:[#allocation2 + $0x10] sm:$0x3] %vm552, %v1508
      %v1512 = vld [vmem:[#allocation3] sm:$0xff]
      %v1513 = vld [vmem:[#allocation3 + $0x8] sm:$0xf]
      %v1514 = vld [vmem:[%s395 + $0xc0] sm:$0xff]
      %v1515 = vld [vmem:[%s395 + $0xc8] sm:$0xff]
      %v1516 = vld [vmem:[%s395 + $0xd0] sm:$0xff]
      %v1517 = vld [vmem:[%s395 + $0xd8] sm:$0xff]
      %v1519 = vsel %vm426, %v1512, 0
      %v1522 = vsel %vm426, %v1513, 0
      %1524 = vmatpush.msra.mxu0 0.0
      %1525 = vmatpush.msra.mxu0 0.0
      %1526 = vmatpush.msra.mxu0 0.0
      %1527 = vmatpush.msra.mxu0 0.0
      %1528 = vmatpush.msra.mxu0 0.0
      %1529 = vmatpush.msra.mxu0 0.0
      %1530 = vmatpush.msra.mxu0 0.0
      %1531 = vmatpush.msra.mxu0 0.0
      %1532 = vmatpush.msra.mxu0 0.0
      %1533 = vmatpush.msra.mxu0 0.0
      %1534 = vmatpush.msra.mxu0 0.0
      %1535 = vmatpush.msra.mxu0 0.0
      %1536 = vmatpush.msra.mxu0 %v1517
      %1537 = vmatpush.msra.mxu0 %v1516
      %1538 = vmatpush.msra.mxu0 %v1515
      %1539 = vmatpush.msra.mxu0 %v1514
      %1540 = vmatmul.f32.gmra.mxu0 %v1519
      %v1541 = vpop.f32.mrf.mxu0
      %v1542 = vadd.f32 0.0, %v1541
      %1543 = vmatmul.f32.gmra.mxu0 %v1522
      %v1544 = vpop.f32.mrf.mxu0
      %v1545 = vadd.f32 0.0, %v1544
      %1546 = vdwg.mxu0
      %v1547 = vld [vmem:[%s405 + $0xa] sm:$0x1]
      %v1548 = vperm.slane %v1547, 0
      %vm1549 = vcmask 97280
      %v1551 = vsel %vm1549, %v413, 0
      %v1554 = vsel %vm1549, %v414, 0
      %vm1556 = vcmask 1043456
      %v1558 = vsel %vm1556, %v1545, 0
      %1560 = vmatpush.msra.mxu0 0.0
      %1561 = vmatpush.msra.mxu0 0.0
      %1562 = vmatpush.msra.mxu0 0.0
      %1563 = vmatpush.msra.mxu0 0.0
      %1564 = vmatpush.msra.mxu0 0.0
      %1565 = vmatpush.msra.mxu0 0.0
      %1566 = vmatpush.msra.mxu0 0.0
      %1567 = vmatpush.msra.mxu0 0.0
      %1568 = vmatpush.msra.mxu0 0.0
      %1569 = vmatpush.msra.mxu0 0.0
      %1570 = vmatpush.msra.mxu0 0.0
      %1571 = vmatpush.msra.mxu0 0.0
      %1572 = vmatpush.msra.mxu0 0.0
      %1573 = vmatpush.msra.mxu0 0.0
      %1574 = vmatpush.msra.mxu0 %v1558
      %1575 = vmatpush.msra.mxu0 %v1542
      %1576 = vmatmul.f32.gmra.mxu0 %v1551
      %v1577 = vpop.f32.mrf.mxu0
      %v1578 = vadd.f32 %v1548, %v1577
      %1579 = vmatmul.f32.gmra.mxu0 %v1554
      %v1580 = vpop.f32.mrf.mxu0
      %v1581 = vadd.f32 %v1548, %v1580
      %1582 = vdwg.mxu0
      %vm1583 = vcmp.ge.f32.partialorder %v1578, 0.0
      %vm1584 = vcmp.ge.f32.partialorder %v1581, 0.0
      %v1585 = vmul.f32 %v1578, 0.01
      %v1586 = vmul.f32 %v1581, 0.01
      %v1587 = vsel %vm1583, %v1578, %v1585
      %v1588 = vsel %vm1584, %v1581, %v1586
      %1589 = vst.msk [vmem:[#allocation3] sm:$0xff] %vm426, %v1587
      %1590 = vst.msk [vmem:[#allocation3 + $0x8] sm:$0xf] %vm504, %v1588
      %v1591 = vld [vmem:[#allocation3] sm:$0x1]
      %v1592 = vld [vmem:[#allocation3 + $0x1] sm:$0x1]
      %v1593 = vld [vmem:[#allocation3 + $0x2] sm:$0x1]
      %v1594 = vld [vmem:[#allocation3 + $0x3] sm:$0x1]
      %v1596 = vrot.slane %v1592, 7
      %v1599 = vrot.slane %v1593, 6
      %v1602 = vrot.slane %v1594, 5
      %vm1604 = vcmask 1040384
      %v1605 = vsel %vm1604, %v1591, %v1596
      %v1606 = vsel %vm795, %v1605, %v1599
      %vm1607 = vcmask 1042432
      %v1608 = vsel %vm1607, %v1606, %v1602
      %v1609 = vld [vmem:[%s400 + $0x20] sm:$0xff]
      %v1610 = vld [vmem:[%s400 + $0x28] sm:$0xff]
      %v1611 = vld [vmem:[%s400 + $0x30] sm:$0xff]
      %v1612 = vld [vmem:[%s400 + $0x38] sm:$0xff]
      %v1613 = vld [vmem:[%s409 + $0x1] sm:$0x1]
      %v1614 = vld [vmem:[%s395 + $0xe0] sm:$0xff]
      %v1615 = vld [vmem:[%s395 + $0xe8] sm:$0xff]
      %v1616 = vld [vmem:[%s395 + $0xf0] sm:$0xff]
      %v1617 = vld [vmem:[%s395 + $0xf8] sm:$0xff]
      %v1618 = vld [vmem:[%s405 + $0xb] sm:$0x1]
      %v1619 = vperm.slane %v1613, 0
      %v1621 = vsel %vm426, %v1608, 0
      %1623 = vmatpush.msra.mxu0 0.0
      %1624 = vmatpush.msra.mxu0 0.0
      %1625 = vmatpush.msra.mxu0 0.0
      %1626 = vmatpush.msra.mxu0 0.0
      %1627 = vmatpush.msra.mxu0 0.0
      %1628 = vmatpush.msra.mxu0 0.0
      %1629 = vmatpush.msra.mxu0 0.0
      %1630 = vmatpush.msra.mxu0 0.0
      %1631 = vmatpush.msra.mxu0 0.0
      %1632 = vmatpush.msra.mxu0 0.0
      %1633 = vmatpush.msra.mxu0 0.0
      %1634 = vmatpush.msra.mxu0 0.0
      %1635 = vmatpush.msra.mxu0 %v1612
      %1636 = vmatpush.msra.mxu0 %v1611
      %1637 = vmatpush.msra.mxu0 %v1610
      %1638 = vmatpush.msra.mxu0 %v1609
      %1639 = vmatmul.f32.gmra.mxu0 %v1621
      %v1640 = vpop.f32.mrf.mxu0
      %v1641 = vadd.f32 %v1619, %v1640
      %1642 = vdwg.mxu0
      %1644 = vrot.lane.b32.xlu0 %v1641, 96
      %v1645 = vpop.permute.xlu0 %1644
      %v1646 = vsel %vm695, %v1641, 0
      %v1648 = vsel %vm695, %v1645, 0
      %1650 = vmatpush.xpose.msra.mxu0 0.0
      %1651 = vmatpush.xpose.msra.mxu0 0.0
      %1652 = vmatpush.xpose.msra.mxu0 0.0
      %1653 = vmatpush.xpose.msra.mxu0 0.0
      %1654 = vmatpush.xpose.msra.mxu0 0.0
      %1655 = vmatpush.xpose.msra.mxu0 0.0
      %1656 = vmatpush.xpose.msra.mxu0 0.0
      %1657 = vmatpush.xpose.msra.mxu0 0.0
      %1658 = vmatpush.xpose.msra.mxu0 0.0
      %1659 = vmatpush.xpose.msra.mxu0 0.0
      %1660 = vmatpush.xpose.msra.mxu0 0.0
      %1661 = vmatpush.xpose.msra.mxu0 0.0
      %1662 = vmatpush.xpose.msra.mxu0 0.0
      %1663 = vmatpush.xpose.msra.mxu0 0.0
      %1664 = vmatpush.xpose.msra.mxu0 0.0
      %1665 = vmatpush.xpose.msra.mxu0 %v1648
      %1666 = vmatmul.f32.gmra.mxu0 %v1646
      %v1667 = vpop.f32.mrf.mxu0
      %v1668 = vadd.f32 0.0, %v1667
      %1669 = vdwg.mxu0
      %1670 = vrot.lane.b32.xlu0 %v1641, 120
      %v1671 = vpop.permute.xlu0 %1670
      %1672 = vrot.lane.b32.xlu0 %v1641, 88
      %v1673 = vpop.permute.xlu0 %1672
      %v1674 = vsel %vm695, %v1671, 0
      %v1676 = vsel %vm695, %v1673, 0
      %1678 = vmatpush.xpose.msra.mxu0 0.0
      %1679 = vmatpush.xpose.msra.mxu0 0.0
      %1680 = vmatpush.xpose.msra.mxu0 0.0
      %1681 = vmatpush.xpose.msra.mxu0 0.0
      %1682 = vmatpush.xpose.msra.mxu0 0.0
      %1683 = vmatpush.xpose.msra.mxu0 0.0
      %1684 = vmatpush.xpose.msra.mxu0 0.0
      %1685 = vmatpush.xpose.msra.mxu0 0.0
      %1686 = vmatpush.xpose.msra.mxu0 0.0
      %1687 = vmatpush.xpose.msra.mxu0 0.0
      %1688 = vmatpush.xpose.msra.mxu0 0.0
      %1689 = vmatpush.xpose.msra.mxu0 0.0
      %1690 = vmatpush.xpose.msra.mxu0 0.0
      %1691 = vmatpush.xpose.msra.mxu0 0.0
      %1692 = vmatpush.xpose.msra.mxu0 0.0
      %1693 = vmatpush.xpose.msra.mxu0 %v1676
      %1694 = vmatmul.f32.gmra.mxu0 %v1674
      %v1695 = vpop.f32.mrf.mxu0
      %v1696 = vadd.f32 0.0, %v1695
      %1697 = vdwg.mxu0
      %1698 = vrot.lane.b32.xlu0 %v1641, 112
      %v1699 = vpop.permute.xlu0 %1698
      %1700 = vrot.lane.b32.xlu0 %v1641, 80
      %v1701 = vpop.permute.xlu0 %1700
      %v1702 = vsel %vm695, %v1699, 0
      %v1704 = vsel %vm695, %v1701, 0
      %1706 = vmatpush.xpose.msra.mxu0 0.0
      %1707 = vmatpush.xpose.msra.mxu0 0.0
      %1708 = vmatpush.xpose.msra.mxu0 0.0
      %1709 = vmatpush.xpose.msra.mxu0 0.0
      %1710 = vmatpush.xpose.msra.mxu0 0.0
      %1711 = vmatpush.xpose.msra.mxu0 0.0
      %1712 = vmatpush.xpose.msra.mxu0 0.0
      %1713 = vmatpush.xpose.msra.mxu0 0.0
      %1714 = vmatpush.xpose.msra.mxu0 0.0
      %1715 = vmatpush.xpose.msra.mxu0 0.0
      %1716 = vmatpush.xpose.msra.mxu0 0.0
      %1717 = vmatpush.xpose.msra.mxu0 0.0
      %1718 = vmatpush.xpose.msra.mxu0 0.0
      %1719 = vmatpush.xpose.msra.mxu0 0.0
      %1720 = vmatpush.xpose.msra.mxu0 0.0
      %1721 = vmatpush.xpose.msra.mxu0 %v1704
      %1722 = vmatmul.f32.gmra.mxu0 %v1702
      %v1723 = vpop.f32.mrf.mxu0
      %v1724 = vadd.f32 0.0, %v1723
      %1725 = vdwg.mxu0
      %1726 = vrot.lane.b32.xlu0 %v1641, 104
      %v1727 = vpop.permute.xlu0 %1726
      %1728 = vrot.lane.b32.xlu0 %v1641, 72
      %v1729 = vpop.permute.xlu0 %1728
      %v1730 = vsel %vm695, %v1727, 0
      %v1732 = vsel %vm695, %v1729, 0
      %1734 = vmatpush.xpose.msra.mxu0 0.0
      %1735 = vmatpush.xpose.msra.mxu0 0.0
      %1736 = vmatpush.xpose.msra.mxu0 0.0
      %1737 = vmatpush.xpose.msra.mxu0 0.0
      %1738 = vmatpush.xpose.msra.mxu0 0.0
      %1739 = vmatpush.xpose.msra.mxu0 0.0
      %1740 = vmatpush.xpose.msra.mxu0 0.0
      %1741 = vmatpush.xpose.msra.mxu0 0.0
      %1742 = vmatpush.xpose.msra.mxu0 0.0
      %1743 = vmatpush.xpose.msra.mxu0 0.0
      %1744 = vmatpush.xpose.msra.mxu0 0.0
      %1745 = vmatpush.xpose.msra.mxu0 0.0
      %1746 = vmatpush.xpose.msra.mxu0 0.0
      %1747 = vmatpush.xpose.msra.mxu0 0.0
      %1748 = vmatpush.xpose.msra.mxu0 0.0
      %1749 = vmatpush.xpose.msra.mxu0 %v1732
      %1750 = vmatmul.f32.gmra.mxu0 %v1730
      %v1751 = vpop.f32.mrf.mxu0
      %v1752 = vadd.f32 0.0, %v1751
      %1753 = vdwg.mxu0
      %v1755 = vrot.slane %v1696, 7
      %v1758 = vrot.slane %v1724, 6
      %v1761 = vrot.slane %v1752, 5
      %v1763 = vsel %vm1604, %v1668, %v1755
      %v1764 = vsel %vm795, %v1763, %v1758
      %v1765 = vsel %vm1607, %v1764, %v1761
      %v1766 = vmul.f32 %v1765, 0.35355338
      %vm1767 = vcmask 27648
      %v1768 = vsel %vm1767, %v1766, -inf
      %1769 = vmax.xlane.f32.xlu0 %v1768
      %v1770 = vpop.xlane.xlu0 %1769
      %v1771 = vsub.f32 %v1766, %v1770
      %v1772 = vmul.f32 %v1771, 1.442695
      %v1773 = vpow.pop %v1772
      %v1774 = vsel %vm1767, %v1773, 0.0
      %1775 = vadd.xlane.f32.xlu0 %v1774
      %v1776 = vpop.xlane.xlu0 %1775
      %v1777 = vrcp.pop %v1776
      %v1778 = vmul.f32 %v1773, %v1777
      %1779 = vrot.lane.b32.xlu0 %v1641, 64
      %v1780 = vpop.permute.xlu0 %1779
      %vm1781 = vcmask 31744
      %v1783 = vsel %vm1781, %v1778, 0
      %v1785 = vsel %vm1556, %v1780, 0
      %1787 = vmatpush.msra.mxu0 0.0
      %1788 = vmatpush.msra.mxu0 0.0
      %1789 = vmatpush.msra.mxu0 0.0
      %1790 = vmatpush.msra.mxu0 0.0
      %1791 = vmatpush.msra.mxu0 0.0
      %1792 = vmatpush.msra.mxu0 0.0
      %1793 = vmatpush.msra.mxu0 0.0
      %1794 = vmatpush.msra.mxu0 0.0
      %1795 = vmatpush.msra.mxu0 0.0
      %1796 = vmatpush.msra.mxu0 0.0
      %1797 = vmatpush.msra.mxu0 0.0
      %1798 = vmatpush.msra.mxu0 0.0
      %1799 = vmatpush.msra.mxu0 0.0
      %1800 = vmatpush.msra.mxu0 0.0
      %1801 = vmatpush.msra.mxu0 0.0
      %1802 = vmatpush.msra.mxu0 %v1785
      %1803 = vmatmul.f32.gmra.mxu0 %v1783
      %v1804 = vpop.f32.mrf.mxu0
      %v1805 = vadd.f32 0.0, %v1804
      %1806 = vdwg.mxu0
      %v1807 = vrot.slane %v1778, 1
      %1808 = vrot.lane.b32.xlu0 %v1641, 56
      %v1809 = vpop.permute.xlu0 %1808
      %v1810 = vsel %vm1781, %v1807, 0
      %v1812 = vsel %vm1556, %v1809, 0
      %1814 = vmatpush.msra.mxu0 0.0
      %1815 = vmatpush.msra.mxu0 0.0
      %1816 = vmatpush.msra.mxu0 0.0
      %1817 = vmatpush.msra.mxu0 0.0
      %1818 = vmatpush.msra.mxu0 0.0
      %1819 = vmatpush.msra.mxu0 0.0
      %1820 = vmatpush.msra.mxu0 0.0
      %1821 = vmatpush.msra.mxu0 0.0
      %1822 = vmatpush.msra.mxu0 0.0
      %1823 = vmatpush.msra.mxu0 0.0
      %1824 = vmatpush.msra.mxu0 0.0
      %1825 = vmatpush.msra.mxu0 0.0
      %1826 = vmatpush.msra.mxu0 0.0
      %1827 = vmatpush.msra.mxu0 0.0
      %1828 = vmatpush.msra.mxu0 0.0
      %1829 = vmatpush.msra.mxu0 %v1812
      %1830 = vmatmul.f32.gmra.mxu0 %v1810
      %v1831 = vpop.f32.mrf.mxu0
      %v1832 = vadd.f32 0.0, %v1831
      %1833 = vdwg.mxu0
      %v1834 = vrot.slane %v1778, 2
      %1835 = vrot.lane.b32.xlu0 %v1641, 48
      %v1836 = vpop.permute.xlu0 %1835
      %v1837 = vsel %vm1781, %v1834, 0
      %v1839 = vsel %vm1556, %v1836, 0
      %1841 = vmatpush.msra.mxu0 0.0
      %1842 = vmatpush.msra.mxu0 0.0
      %1843 = vmatpush.msra.mxu0 0.0
      %1844 = vmatpush.msra.mxu0 0.0
      %1845 = vmatpush.msra.mxu0 0.0
      %1846 = vmatpush.msra.mxu0 0.0
      %1847 = vmatpush.msra.mxu0 0.0
      %1848 = vmatpush.msra.mxu0 0.0
      %1849 = vmatpush.msra.mxu0 0.0
      %1850 = vmatpush.msra.mxu0 0.0
      %1851 = vmatpush.msra.mxu0 0.0
      %1852 = vmatpush.msra.mxu0 0.0
      %1853 = vmatpush.msra.mxu0 0.0
      %1854 = vmatpush.msra.mxu0 0.0
      %1855 = vmatpush.msra.mxu0 0.0
      %1856 = vmatpush.msra.mxu0 %v1839
      %1857 = vmatmul.f32.gmra.mxu0 %v1837
      %v1858 = vpop.f32.mrf.mxu0
      %v1859 = vadd.f32 0.0, %v1858
      %1860 = vdwg.mxu0
      %v1861 = vrot.slane %v1778, 3
      %1862 = vrot.lane.b32.xlu0 %v1641, 40
      %v1863 = vpop.permute.xlu0 %1862
      %v1864 = vsel %vm1781, %v1861, 0
      %v1866 = vsel %vm1556, %v1863, 0
      %1868 = vmatpush.msra.mxu0 0.0
      %1869 = vmatpush.msra.mxu0 0.0
      %1870 = vmatpush.msra.mxu0 0.0
      %1871 = vmatpush.msra.mxu0 0.0
      %1872 = vmatpush.msra.mxu0 0.0
      %1873 = vmatpush.msra.mxu0 0.0
      %1874 = vmatpush.msra.mxu0 0.0
      %1875 = vmatpush.msra.mxu0 0.0
      %1876 = vmatpush.msra.mxu0 0.0
      %1877 = vmatpush.msra.mxu0 0.0
      %1878 = vmatpush.msra.mxu0 0.0
      %1879 = vmatpush.msra.mxu0 0.0
      %1880 = vmatpush.msra.mxu0 0.0
      %1881 = vmatpush.msra.mxu0 0.0
      %1882 = vmatpush.msra.mxu0 0.0
      %1883 = vmatpush.msra.mxu0 %v1866
      %1884 = vmatmul.f32.gmra.mxu0 %v1864
      %v1885 = vpop.f32.mrf.mxu0
      %v1886 = vadd.f32 0.0, %v1885
      %1887 = vdwg.mxu0
      %1889 = vrot.lane.b32.xlu0 %v1832, 8
      %v1890 = vpop.permute.xlu0 %1889
      %1893 = vrot.lane.b32.xlu0 %v1859, 16
      %v1894 = vpop.permute.xlu0 %1893
      %1897 = vrot.lane.b32.xlu0 %v1886, 24
      %v1898 = vpop.permute.xlu0 %1897
      %v1900 = vsel %vm695, %v1805, %v1890
      %v1901 = vsel %vm1274, %v1900, %v1894
      %v1902 = vsel %vm1278, %v1901, %v1898
      %v1904 = vsel %vm426, %v1902, 0
      %1906 = vmatpush.msra.mxu0 0.0
      %1907 = vmatpush.msra.mxu0 0.0
      %1908 = vmatpush.msra.mxu0 0.0
      %1909 = vmatpush.msra.mxu0 0.0
      %1910 = vmatpush.msra.mxu0 0.0
      %1911 = vmatpush.msra.mxu0 0.0
      %1912 = vmatpush.msra.mxu0 0.0
      %1913 = vmatpush.msra.mxu0 0.0
      %1914 = vmatpush.msra.mxu0 0.0
      %1915 = vmatpush.msra.mxu0 0.0
      %1916 = vmatpush.msra.mxu0 0.0
      %1917 = vmatpush.msra.mxu0 0.0
      %1918 = vmatpush.msra.mxu0 %v1617
      %1919 = vmatpush.msra.mxu0 %v1616
      %1920 = vmatpush.msra.mxu0 %v1615
      %1921 = vmatpush.msra.mxu0 %v1614
      %1922 = vmatmul.f32.gmra.mxu0 %v1904
      %v1923 = vpop.f32.mrf.mxu0
      %v1924 = vadd.f32 %v1618, %v1923
      %1925 = vdwg.mxu0
      %vm1926 = vcmask 253952
      %1927 = vst.msk [vmem:[#allocation3] sm:$0x1] %vm1926, %v1924
      %v1928 = vld [vmem:[#allocation3 + $0x4] sm:$0x1]
      %v1929 = vld [vmem:[#allocation3 + $0x5] sm:$0x1]
      %v1930 = vld [vmem:[#allocation3 + $0x6] sm:$0x1]
      %v1932 = vrot.slane %v1929, 7
      %v1935 = vrot.slane %v1930, 6
      %v1937 = vsel %vm1604, %v1928, %v1932
      %v1938 = vsel %vm795, %v1937, %v1935
      %v1939 = vld [vmem:[%s400 + $0x20] sm:$0xff]
      %v1940 = vld [vmem:[%s400 + $0x28] sm:$0xff]
      %v1941 = vld [vmem:[%s400 + $0x30] sm:$0xff]
      %v1942 = vld [vmem:[%s400 + $0x38] sm:$0xff]
      %v1943 = vld [vmem:[%s409 + $0x1] sm:$0x1]
      %v1944 = vld [vmem:[%s395 + $0xe0] sm:$0xff]
      %v1945 = vld [vmem:[%s395 + $0xe8] sm:$0xff]
      %v1946 = vld [vmem:[%s395 + $0xf0] sm:$0xff]
      %v1947 = vld [vmem:[%s395 + $0xf8] sm:$0xff]
      %v1948 = vld [vmem:[%s405 + $0xb] sm:$0x1]
      %v1949 = vperm.slane %v1943, 0
      %v1951 = vsel %vm426, %v1938, 0
      %1953 = vmatpush.msra.mxu0 0.0
      %1954 = vmatpush.msra.mxu0 0.0
      %1955 = vmatpush.msra.mxu0 0.0
      %1956 = vmatpush.msra.mxu0 0.0
      %1957 = vmatpush.msra.mxu0 0.0
      %1958 = vmatpush.msra.mxu0 0.0
      %1959 = vmatpush.msra.mxu0 0.0
      %1960 = vmatpush.msra.mxu0 0.0
      %1961 = vmatpush.msra.mxu0 0.0
      %1962 = vmatpush.msra.mxu0 0.0
      %1963 = vmatpush.msra.mxu0 0.0
      %1964 = vmatpush.msra.mxu0 0.0
      %1965 = vmatpush.msra.mxu0 %v1942
      %1966 = vmatpush.msra.mxu0 %v1941
      %1967 = vmatpush.msra.mxu0 %v1940
      %1968 = vmatpush.msra.mxu0 %v1939
      %1969 = vmatmul.f32.gmra.mxu0 %v1951
      %v1970 = vpop.f32.mrf.mxu0
      %v1971 = vadd.f32 %v1949, %v1970
      %1972 = vdwg.mxu0
      %1974 = vrot.lane.b32.xlu0 %v1971, 96
      %v1975 = vpop.permute.xlu0 %1974
      %v1976 = vsel %vm695, %v1971, 0
      %v1978 = vsel %vm695, %v1975, 0
      %1980 = vmatpush.xpose.msra.mxu0 0.0
      %1981 = vmatpush.xpose.msra.mxu0 0.0
      %1982 = vmatpush.xpose.msra.mxu0 0.0
      %1983 = vmatpush.xpose.msra.mxu0 0.0
      %1984 = vmatpush.xpose.msra.mxu0 0.0
      %1985 = vmatpush.xpose.msra.mxu0 0.0
      %1986 = vmatpush.xpose.msra.mxu0 0.0
      %1987 = vmatpush.xpose.msra.mxu0 0.0
      %1988 = vmatpush.xpose.msra.mxu0 0.0
      %1989 = vmatpush.xpose.msra.mxu0 0.0
      %1990 = vmatpush.xpose.msra.mxu0 0.0
      %1991 = vmatpush.xpose.msra.mxu0 0.0
      %1992 = vmatpush.xpose.msra.mxu0 0.0
      %1993 = vmatpush.xpose.msra.mxu0 0.0
      %1994 = vmatpush.xpose.msra.mxu0 0.0
      %1995 = vmatpush.xpose.msra.mxu0 %v1978
      %1996 = vmatmul.f32.gmra.mxu0 %v1976
      %v1997 = vpop.f32.mrf.mxu0
      %v1998 = vadd.f32 0.0, %v1997
      %1999 = vdwg.mxu0
      %2000 = vrot.lane.b32.xlu0 %v1971, 120
      %v2001 = vpop.permute.xlu0 %2000
      %2002 = vrot.lane.b32.xlu0 %v1971, 88
      %v2003 = vpop.permute.xlu0 %2002
      %v2004 = vsel %vm695, %v2001, 0
      %v2006 = vsel %vm695, %v2003, 0
      %2008 = vmatpush.xpose.msra.mxu0 0.0
      %2009 = vmatpush.xpose.msra.mxu0 0.0
      %2010 = vmatpush.xpose.msra.mxu0 0.0
      %2011 = vmatpush.xpose.msra.mxu0 0.0
      %2012 = vmatpush.xpose.msra.mxu0 0.0
      %2013 = vmatpush.xpose.msra.mxu0 0.0
      %2014 = vmatpush.xpose.msra.mxu0 0.0
      %2015 = vmatpush.xpose.msra.mxu0 0.0
      %2016 = vmatpush.xpose.msra.mxu0 0.0
      %2017 = vmatpush.xpose.msra.mxu0 0.0
      %2018 = vmatpush.xpose.msra.mxu0 0.0
      %2019 = vmatpush.xpose.msra.mxu0 0.0
      %2020 = vmatpush.xpose.msra.mxu0 0.0
      %2021 = vmatpush.xpose.msra.mxu0 0.0
      %2022 = vmatpush.xpose.msra.mxu0 0.0
      %2023 = vmatpush.xpose.msra.mxu0 %v2006
      %2024 = vmatmul.f32.gmra.mxu0 %v2004
      %v2025 = vpop.f32.mrf.mxu0
      %v2026 = vadd.f32 0.0, %v2025
      %2027 = vdwg.mxu0
      %2028 = vrot.lane.b32.xlu0 %v1971, 112
      %v2029 = vpop.permute.xlu0 %2028
      %2030 = vrot.lane.b32.xlu0 %v1971, 80
      %v2031 = vpop.permute.xlu0 %2030
      %v2032 = vsel %vm695, %v2029, 0
      %v2034 = vsel %vm695, %v2031, 0
      %2036 = vmatpush.xpose.msra.mxu0 0.0
      %2037 = vmatpush.xpose.msra.mxu0 0.0
      %2038 = vmatpush.xpose.msra.mxu0 0.0
      %2039 = vmatpush.xpose.msra.mxu0 0.0
      %2040 = vmatpush.xpose.msra.mxu0 0.0
      %2041 = vmatpush.xpose.msra.mxu0 0.0
      %2042 = vmatpush.xpose.msra.mxu0 0.0
      %2043 = vmatpush.xpose.msra.mxu0 0.0
      %2044 = vmatpush.xpose.msra.mxu0 0.0
      %2045 = vmatpush.xpose.msra.mxu0 0.0
      %2046 = vmatpush.xpose.msra.mxu0 0.0
      %2047 = vmatpush.xpose.msra.mxu0 0.0
      %2048 = vmatpush.xpose.msra.mxu0 0.0
      %2049 = vmatpush.xpose.msra.mxu0 0.0
      %2050 = vmatpush.xpose.msra.mxu0 0.0
      %2051 = vmatpush.xpose.msra.mxu0 %v2034
      %2052 = vmatmul.f32.gmra.mxu0 %v2032
      %v2053 = vpop.f32.mrf.mxu0
      %v2054 = vadd.f32 0.0, %v2053
      %2055 = vdwg.mxu0
      %2056 = vrot.lane.b32.xlu0 %v1971, 104
      %v2057 = vpop.permute.xlu0 %2056
      %2058 = vrot.lane.b32.xlu0 %v1971, 72
      %v2059 = vpop.permute.xlu0 %2058
      %v2060 = vsel %vm695, %v2057, 0
      %v2062 = vsel %vm695, %v2059, 0
      %2064 = vmatpush.xpose.msra.mxu0 0.0
      %2065 = vmatpush.xpose.msra.mxu0 0.0
      %2066 = vmatpush.xpose.msra.mxu0 0.0
      %2067 = vmatpush.xpose.msra.mxu0 0.0
      %2068 = vmatpush.xpose.msra.mxu0 0.0
      %2069 = vmatpush.xpose.msra.mxu0 0.0
      %2070 = vmatpush.xpose.msra.mxu0 0.0
      %2071 = vmatpush.xpose.msra.mxu0 0.0
      %2072 = vmatpush.xpose.msra.mxu0 0.0
      %2073 = vmatpush.xpose.msra.mxu0 0.0
      %2074 = vmatpush.xpose.msra.mxu0 0.0
      %2075 = vmatpush.xpose.msra.mxu0 0.0
      %2076 = vmatpush.xpose.msra.mxu0 0.0
      %2077 = vmatpush.xpose.msra.mxu0 0.0
      %2078 = vmatpush.xpose.msra.mxu0 0.0
      %2079 = vmatpush.xpose.msra.mxu0 %v2062
      %2080 = vmatmul.f32.gmra.mxu0 %v2060
      %v2081 = vpop.f32.mrf.mxu0
      %v2082 = vadd.f32 0.0, %v2081
      %2083 = vdwg.mxu0
      %v2085 = vrot.slane %v2026, 7
      %v2088 = vrot.slane %v2054, 6
      %v2091 = vrot.slane %v2082, 5
      %v2093 = vsel %vm1604, %v1998, %v2085
      %v2094 = vsel %vm795, %v2093, %v2088
      %v2095 = vsel %vm1607, %v2094, %v2091
      %v2096 = vmul.f32 %v2095, 0.35355338
      %vm2097 = vcmask 19456
      %v2098 = vsel %vm2097, %v2096, -inf
      %2099 = vmax.xlane.f32.xlu0 %v2098
      %v2100 = vpop.xlane.xlu0 %2099
      %v2101 = vsub.f32 %v2096, %v2100
      %v2102 = vmul.f32 %v2101, 1.442695
      %v2103 = vpow.pop %v2102
      %v2104 = vsel %vm2097, %v2103, 0.0
      %2105 = vadd.xlane.f32.xlu0 %v2104
      %v2106 = vpop.xlane.xlu0 %2105
      %v2107 = vrcp.pop %v2106
      %v2108 = vmul.f32 %v2103, %v2107
      %2109 = vrot.lane.b32.xlu0 %v1971, 64
      %v2110 = vpop.permute.xlu0 %2109
      %vm2111 = vcmask 23552
      %v2113 = vsel %vm2111, %v2108, 0
      %v2115 = vsel %vm1607, %v2110, 0
      %2117 = vmatpush.msra.mxu0 0.0
      %2118 = vmatpush.msra.mxu0 0.0
      %2119 = vmatpush.msra.mxu0 0.0
      %2120 = vmatpush.msra.mxu0 0.0
      %2121 = vmatpush.msra.mxu0 0.0
      %2122 = vmatpush.msra.mxu0 0.0
      %2123 = vmatpush.msra.mxu0 0.0
      %2124 = vmatpush.msra.mxu0 0.0
      %2125 = vmatpush.msra.mxu0 0.0
      %2126 = vmatpush.msra.mxu0 0.0
      %2127 = vmatpush.msra.mxu0 0.0
      %2128 = vmatpush.msra.mxu0 0.0
      %2129 = vmatpush.msra.mxu0 0.0
      %2130 = vmatpush.msra.mxu0 0.0
      %2131 = vmatpush.msra.mxu0 0.0
      %2132 = vmatpush.msra.mxu0 %v2115
      %2133 = vmatmul.f32.gmra.mxu0 %v2113
      %v2134 = vpop.f32.mrf.mxu0
      %v2135 = vadd.f32 0.0, %v2134
      %2136 = vdwg.mxu0
      %v2137 = vrot.slane %v2108, 1
      %2138 = vrot.lane.b32.xlu0 %v1971, 56
      %v2139 = vpop.permute.xlu0 %2138
      %v2140 = vsel %vm2111, %v2137, 0
      %v2142 = vsel %vm1607, %v2139, 0
      %2144 = vmatpush.msra.mxu0 0.0
      %2145 = vmatpush.msra.mxu0 0.0
      %2146 = vmatpush.msra.mxu0 0.0
      %2147 = vmatpush.msra.mxu0 0.0
      %2148 = vmatpush.msra.mxu0 0.0
      %2149 = vmatpush.msra.mxu0 0.0
      %2150 = vmatpush.msra.mxu0 0.0
      %2151 = vmatpush.msra.mxu0 0.0
      %2152 = vmatpush.msra.mxu0 0.0
      %2153 = vmatpush.msra.mxu0 0.0
      %2154 = vmatpush.msra.mxu0 0.0
      %2155 = vmatpush.msra.mxu0 0.0
      %2156 = vmatpush.msra.mxu0 0.0
      %2157 = vmatpush.msra.mxu0 0.0
      %2158 = vmatpush.msra.mxu0 0.0
      %2159 = vmatpush.msra.mxu0 %v2142
      %2160 = vmatmul.f32.gmra.mxu0 %v2140
      %v2161 = vpop.f32.mrf.mxu0
      %v2162 = vadd.f32 0.0, %v2161
      %2163 = vdwg.mxu0
      %v2164 = vrot.slane %v2108, 2
      %2165 = vrot.lane.b32.xlu0 %v1971, 48
      %v2166 = vpop.permute.xlu0 %2165
      %v2167 = vsel %vm2111, %v2164, 0
      %v2169 = vsel %vm1607, %v2166, 0
      %2171 = vmatpush.msra.mxu0 0.0
      %2172 = vmatpush.msra.mxu0 0.0
      %2173 = vmatpush.msra.mxu0 0.0
      %2174 = vmatpush.msra.mxu0 0.0
      %2175 = vmatpush.msra.mxu0 0.0
      %2176 = vmatpush.msra.mxu0 0.0
      %2177 = vmatpush.msra.mxu0 0.0
      %2178 = vmatpush.msra.mxu0 0.0
      %2179 = vmatpush.msra.mxu0 0.0
      %2180 = vmatpush.msra.mxu0 0.0
      %2181 = vmatpush.msra.mxu0 0.0
      %2182 = vmatpush.msra.mxu0 0.0
      %2183 = vmatpush.msra.mxu0 0.0
      %2184 = vmatpush.msra.mxu0 0.0
      %2185 = vmatpush.msra.mxu0 0.0
      %2186 = vmatpush.msra.mxu0 %v2169
      %2187 = vmatmul.f32.gmra.mxu0 %v2167
      %v2188 = vpop.f32.mrf.mxu0
      %v2189 = vadd.f32 0.0, %v2188
      %2190 = vdwg.mxu0
      %v2191 = vrot.slane %v2108, 3
      %2192 = vrot.lane.b32.xlu0 %v1971, 40
      %v2193 = vpop.permute.xlu0 %2192
      %v2194 = vsel %vm2111, %v2191, 0
      %v2196 = vsel %vm1607, %v2193, 0
      %2198 = vmatpush.msra.mxu0 0.0
      %2199 = vmatpush.msra.mxu0 0.0
      %2200 = vmatpush.msra.mxu0 0.0
      %2201 = vmatpush.msra.mxu0 0.0
      %2202 = vmatpush.msra.mxu0 0.0
      %2203 = vmatpush.msra.mxu0 0.0
      %2204 = vmatpush.msra.mxu0 0.0
      %2205 = vmatpush.msra.mxu0 0.0
      %2206 = vmatpush.msra.mxu0 0.0
      %2207 = vmatpush.msra.mxu0 0.0
      %2208 = vmatpush.msra.mxu0 0.0
      %2209 = vmatpush.msra.mxu0 0.0
      %2210 = vmatpush.msra.mxu0 0.0
      %2211 = vmatpush.msra.mxu0 0.0
      %2212 = vmatpush.msra.mxu0 0.0
      %2213 = vmatpush.msra.mxu0 %v2196
      %2214 = vmatmul.f32.gmra.mxu0 %v2194
      %v2215 = vpop.f32.mrf.mxu0
      %v2216 = vadd.f32 0.0, %v2215
      %2217 = vdwg.mxu0
      %2219 = vrot.lane.b32.xlu0 %v2162, 8
      %v2220 = vpop.permute.xlu0 %2219
      %2223 = vrot.lane.b32.xlu0 %v2189, 16
      %v2224 = vpop.permute.xlu0 %2223
      %2227 = vrot.lane.b32.xlu0 %v2216, 24
      %v2228 = vpop.permute.xlu0 %2227
      %v2230 = vsel %vm695, %v2135, %v2220
      %v2231 = vsel %vm1274, %v2230, %v2224
      %v2232 = vsel %vm1278, %v2231, %v2228
      %v2234 = vsel %vm426, %v2232, 0
      %2236 = vmatpush.msra.mxu0 0.0
      %2237 = vmatpush.msra.mxu0 0.0
      %2238 = vmatpush.msra.mxu0 0.0
      %2239 = vmatpush.msra.mxu0 0.0
      %2240 = vmatpush.msra.mxu0 0.0
      %2241 = vmatpush.msra.mxu0 0.0
      %2242 = vmatpush.msra.mxu0 0.0
      %2243 = vmatpush.msra.mxu0 0.0
      %2244 = vmatpush.msra.mxu0 0.0
      %2245 = vmatpush.msra.mxu0 0.0
      %2246 = vmatpush.msra.mxu0 0.0
      %2247 = vmatpush.msra.mxu0 0.0
      %2248 = vmatpush.msra.mxu0 %v1947
      %2249 = vmatpush.msra.mxu0 %v1946
      %2250 = vmatpush.msra.mxu0 %v1945
      %2251 = vmatpush.msra.mxu0 %v1944
      %2252 = vmatmul.f32.gmra.mxu0 %v2234
      %v2253 = vpop.f32.mrf.mxu0
      %v2254 = vadd.f32 %v1948, %v2253
      %2255 = vdwg.mxu0
      %2256 = vst.msk [vmem:[#allocation3 + $0x4] sm:$0x1] %vm1926, %v2254
      %v2257 = vld [vmem:[%s4] sm:$0xff]
      %v2259 = vsel %vm740, %v2257, 0
      %v2262 = vsel %vm795, %v1320, 0
      %2264 = vmatpush.msra.mxu0 0.0
      %2265 = vmatpush.msra.mxu0 0.0
      %2266 = vmatpush.msra.mxu0 0.0
      %2267 = vmatpush.msra.mxu0 0.0
      %2268 = vmatpush.msra.mxu0 0.0
      %2269 = vmatpush.msra.mxu0 0.0
      %2270 = vmatpush.msra.mxu0 0.0
      %2271 = vmatpush.msra.mxu0 0.0
      %2272 = vmatpush.msra.mxu0 0.0
      %2273 = vmatpush.msra.mxu0 0.0
      %2274 = vmatpush.msra.mxu0 0.0
      %2275 = vmatpush.msra.mxu0 0.0
      %2276 = vmatpush.msra.mxu0 0.0
      %2277 = vmatpush.msra.mxu0 %v2262
      %2278 = vmatpush.msra.mxu0 %v1319
      %2279 = vmatpush.msra.mxu0 %v1318
      %2280 = vmatmul.f32.gmra.mxu0 %v2259
      %v2281 = vpop.f32.mrf.mxu0
      %v2282 = vadd.f32 0.0, %v2281
      %2283 = vdwg.mxu0
      %v2284 = vld [vmem:[%s5] sm:$0xff]
      %v2285 = vld [vmem:[%s5 + $0x8] sm:$0xff]
      %v2286 = vld [vmem:[%s5 + $0x10] sm:$0x3]
      %v2288 = vsel %vm740, %v2282, 0
      %v2291 = vsel %vm795, %v2286, 0
      %2293 = vmatpush.msra.mxu0 0.0
      %2294 = vmatpush.msra.mxu0 0.0
      %2295 = vmatpush.msra.mxu0 0.0
      %2296 = vmatpush.msra.mxu0 0.0
      %2297 = vmatpush.msra.mxu0 0.0
      %2298 = vmatpush.msra.mxu0 0.0
      %2299 = vmatpush.msra.mxu0 0.0
      %2300 = vmatpush.msra.mxu0 0.0
      %2301 = vmatpush.msra.mxu0 0.0
      %2302 = vmatpush.msra.mxu0 0.0
      %2303 = vmatpush.msra.mxu0 0.0
      %2304 = vmatpush.msra.mxu0 0.0
      %2305 = vmatpush.msra.mxu0 0.0
      %2306 = vmatpush.msra.mxu0 %v2291
      %2307 = vmatpush.msra.mxu0 %v2285
      %2308 = vmatpush.msra.mxu0 %v2284
      %2309 = vmatmul.f32.gmra.mxu0 %v2288
      %v2310 = vpop.f32.mrf.mxu0
      %v2311 = vadd.f32 0.0, %v2310
      %2312 = vdwg.mxu0
      %v2313 = vld [vmem:[#allocation3] sm:$0x1]
      %v2314 = vld [vmem:[#allocation3 + $0x4] sm:$0x1]
      %v2316 = vrot.slane %v2314, 7
      %v2318 = vsel %vm1604, %v2313, %v2316
      %v2319 = vld [vmem:[#allocation2] sm:$0x1]
      %v2320 = vld [vmem:[#allocation2 + $0x9] sm:$0x1]
      %v2322 = vrot.slane %v2320, 7
      %v2324 = vsel %vm1604, %v2319, %v2322
      %v2325 = vld [vmem:[%s395 + $0x1a0] sm:$0xff]
      %v2326 = vld [vmem:[%s395 + $0x1a8] sm:$0xff]
      %v2327 = vld [vmem:[%s395 + $0x1b0] sm:$0xff]
      %v2328 = vld [vmem:[%s395 + $0x1b8] sm:$0xff]
      %v2329 = vld [vmem:[%s405 + $0x15] sm:$0x1]
      %v2330 = vperm.slane %v2329, 0
      %v2332 = vsel %vm426, %v2324, 0
      %2334 = vmatpush.msra.mxu0 0.0
      %2335 = vmatpush.msra.mxu0 0.0
      %2336 = vmatpush.msra.mxu0 0.0
      %2337 = vmatpush.msra.mxu0 0.0
      %2338 = vmatpush.msra.mxu0 0.0
      %2339 = vmatpush.msra.mxu0 0.0
      %2340 = vmatpush.msra.mxu0 0.0
      %2341 = vmatpush.msra.mxu0 0.0
      %2342 = vmatpush.msra.mxu0 0.0
      %2343 = vmatpush.msra.mxu0 0.0
      %2344 = vmatpush.msra.mxu0 0.0
      %2345 = vmatpush.msra.mxu0 0.0
      %2346 = vmatpush.msra.mxu0 %v2328
      %2347 = vmatpush.msra.mxu0 %v2327
      %2348 = vmatpush.msra.mxu0 %v2326
      %2349 = vmatpush.msra.mxu0 %v2325
      %2350 = vmatmul.f32.gmra.mxu0 %v2332
      %v2351 = vpop.f32.mrf.mxu0
      %v2352 = vadd.f32 %v2330, %v2351
      %2353 = vdwg.mxu0
      %v2354 = vmul.f32 %v2324, %v2352
      %v2355 = vsel %vm552, %v2354, 0.0
      %2356 = vadd.xlane.f32.xlu0 %v2355
      %v2357 = vpop.xlane.xlu0 %2356
      %v2358 = vmul.f32 %v2318, %v2324
      %v2359 = vsel %vm552, %v2358, 0.0
      %2360 = vadd.xlane.f32.xlu0 %v2359
      %v2361 = vpop.xlane.xlu0 %2360
      %v2362 = vmax.f32 %v2357, %v2361
      %v2363 = vsub.f32 %v2357, %v2362
      %v2364 = vmul.f32 %v2363, 1.442695
      %v2365 = vpow.pop %v2364
      %v2366 = vsub.f32 %v2361, %v2362
      %v2367 = vmul.f32 %v2366, 1.442695
      %v2368 = vpow.pop %v2367
      %v2369 = vadd.f32 %v2365, %v2368
      %v2370 = vrcp.pop %v2369
      %v2371 = vmul.f32 %v2365, %v2370
      %v2372 = vmul.f32 %v2371, %v2324
      %v2373 = vmul.f32 %v2368, %v2370
      %v2374 = vmul.f32 %v2373, %v2318
      %v2375 = vadd.f32 %v2372, %v2374
      %v2376 = vld [vmem:[%s395 + $0x1c0] sm:$0xff]
      %v2377 = vld [vmem:[%s395 + $0x1c8] sm:$0xff]
      %v2378 = vld [vmem:[%s395 + $0x1d0] sm:$0xff]
      %v2379 = vld [vmem:[%s395 + $0x1d8] sm:$0xff]
      %v2380 = vld [vmem:[%s405 + $0x16] sm:$0x1]
      %v2381 = vperm.slane %v2380, 0
      %v2383 = vsel %vm426, %v2318, 0
      %2385 = vmatpush.msra.mxu0 0.0
      %2386 = vmatpush.msra.mxu0 0.0
      %2387 = vmatpush.msra.mxu0 0.0
      %2388 = vmatpush.msra.mxu0 0.0
      %2389 = vmatpush.msra.mxu0 0.0
      %2390 = vmatpush.msra.mxu0 0.0
      %2391 = vmatpush.msra.mxu0 0.0
      %2392 = vmatpush.msra.mxu0 0.0
      %2393 = vmatpush.msra.mxu0 0.0
      %2394 = vmatpush.msra.mxu0 0.0
      %2395 = vmatpush.msra.mxu0 0.0
      %2396 = vmatpush.msra.mxu0 0.0
      %2397 = vmatpush.msra.mxu0 %v2379
      %2398 = vmatpush.msra.mxu0 %v2378
      %2399 = vmatpush.msra.mxu0 %v2377
      %2400 = vmatpush.msra.mxu0 %v2376
      %2401 = vmatmul.f32.gmra.mxu0 %v2383
      %v2402 = vpop.f32.mrf.mxu0
      %v2403 = vadd.f32 %v2381, %v2402
      %2404 = vdwg.mxu0
      %v2405 = vmul.f32 %v2403, %v2318
      %v2406 = vsel %vm552, %v2405, 0.0
      %2407 = vadd.xlane.f32.xlu0 %v2406
      %v2408 = vpop.xlane.xlu0 %2407
      %v2409 = vmax.f32 %v2408, %v2361
      %v2410 = vsub.f32 %v2408, %v2409
      %v2411 = vmul.f32 %v2410, 1.442695
      %v2412 = vpow.pop %v2411
      %v2413 = vsub.f32 %v2361, %v2409
      %v2414 = vmul.f32 %v2413, 1.442695
      %v2415 = vpow.pop %v2414
      %v2416 = vadd.f32 %v2412, %v2415
      %v2417 = vrcp.pop %v2416
      %v2418 = vmul.f32 %v2412, %v2417
      %v2419 = vmul.f32 %v2418, %v2318
      %v2420 = vmul.f32 %v2415, %v2417
      %v2421 = vmul.f32 %v2420, %v2324
      %v2422 = vadd.f32 %v2419, %v2421
      %2423 = vst.msk [vmem:[#allocation2] sm:$0x1] %vm1926, %v2375
      %2424 = vst.msk [vmem:[#allocation3] sm:$0x1] %vm1926, %v2422
      %vm2425 = vcmask 254977
      %2426 = vst.msk [vmem:[#allocation2 + $0x8] sm:$0x2] %vm2425, %v2375
      %2427 = vst.msk [vmem:[#allocation3 + $0x3] sm:$0x2] %vm2425, %v2422
      %v2428 = vld [vmem:[#allocation2] sm:$0xff]
      %v2429 = vld [vmem:[#allocation2 + $0x8] sm:$0xff]
      %v2430 = vld [vmem:[#allocation2 + $0x10] sm:$0x3]
      %v2431 = vld [vmem:[%s405 + $0xc] sm:$0x1]
      %v2432 = vld [vmem:[%s405 + $0xd] sm:$0x1]
      %v2433 = vsel %vm426, %v2428, 0.0
      %2434 = vadd.xlane.f32.xlu0 %v2433
      %v2435 = vpop.xlane.xlu0 %2434
      %v2436 = vsel %vm426, %v2429, 0.0
      %2437 = vadd.xlane.f32.xlu0 %v2436
      %v2438 = vpop.xlane.xlu0 %2437
      %v2439 = vsel %vm552, %v2430, 0.0
      %2440 = vadd.xlane.f32.xlu0 %v2439
      %v2441 = vpop.xlane.xlu0 %2440
      %v2442 = vmul.f32 %v2435, %v574
      %v2443 = vmul.f32 %v2438, %v574
      %v2444 = vmul.f32 %v2441, %v574
      %v2445 = vsub.f32 %v2428, %v2442
      %v2446 = vsub.f32 %v2429, %v2443
      %v2447 = vsub.f32 %v2430, %v2444
      %v2448 = vmul.f32 %v2445, %v2445
      %v2449 = vmul.f32 %v2446, %v2446
      %v2450 = vmul.f32 %v2447, %v2447
      %v2451 = vsel %vm426, %v2448, 0.0
      %2452 = vadd.xlane.f32.xlu0 %v2451
      %v2453 = vpop.xlane.xlu0 %2452
      %v2454 = vsel %vm426, %v2449, 0.0
      %2455 = vadd.xlane.f32.xlu0 %v2454
      %v2456 = vpop.xlane.xlu0 %2455
      %v2457 = vsel %vm552, %v2450, 0.0
      %2458 = vadd.xlane.f32.xlu0 %v2457
      %v2459 = vpop.xlane.xlu0 %2458
      %v2460 = vmul.f32 %v2453, %v574
      %v2461 = vmul.f32 %v2456, %v574
      %v2462 = vmul.f32 %v2459, %v574
      %v2463 = vadd.f32 %v2460, 1e-05
      %v2464 = vadd.f32 %v2461, 1e-05
      %v2465 = vadd.f32 %v2462, 1e-05
      %v2466 = vrsqrt.pop %v2463
      %v2467 = vmul.f32 %v2466, %v2463
      %v2468 = vmul.f32 %v2467, %v2466
      %v2469 = vmul.f32 0.5, %v2468
      %v2470 = vsub.f32 1.5, %v2469
      %v2471 = vmul.f32 %v2466, %v2470
      %vm2472 = vweird.f32 %v2463
      %vm2473 = vweird.f32 %v2466
      %vm2474 = vmor %vm2472, %vm2473
      %v2475 = vsel %vm2474, %v2466, %v2471
      %v2476 = vrsqrt.pop %v2464
      %v2477 = vmul.f32 %v2476, %v2464
      %v2478 = vmul.f32 %v2477, %v2476
      %v2479 = vmul.f32 0.5, %v2478
      %v2480 = vsub.f32 1.5, %v2479
      %v2481 = vmul.f32 %v2476, %v2480
      %vm2482 = vweird.f32 %v2464
      %vm2483 = vweird.f32 %v2476
      %vm2484 = vmor %vm2482, %vm2483
      %v2485 = vsel %vm2484, %v2476, %v2481
      %v2486 = vrsqrt.pop %v2465
      %v2487 = vmul.f32 %v2486, %v2465
      %v2488 = vmul.f32 %v2487, %v2486
      %v2489 = vmul.f32 0.5, %v2488
      %v2490 = vsub.f32 1.5, %v2489
      %v2491 = vmul.f32 %v2486, %v2490
      %vm2492 = vweird.f32 %v2465
      %vm2493 = vweird.f32 %v2486
      %vm2494 = vmor %vm2492, %vm2493
      %v2495 = vsel %vm2494, %v2486, %v2491
      %v2496 = vmul.f32 %v2445, %v2475
      %v2497 = vmul.f32 %v2446, %v2485
      %v2498 = vmul.f32 %v2447, %v2495
      %v2499 = vperm.slane %v2431, 0
      %v2500 = vmul.f32 %v2496, %v2499
      %v2501 = vmul.f32 %v2497, %v2499
      %v2502 = vmul.f32 %v2498, %v2499
      %v2503 = vperm.slane %v2432, 0
      %v2504 = vadd.f32 %v2500, %v2503
      %v2505 = vadd.f32 %v2501, %v2503
      %v2506 = vadd.f32 %v2502, %v2503
      %v2507 = vld [vmem:[%s400 + $0x40] sm:$0xff]
      %v2508 = vld [vmem:[%s400 + $0x48] sm:$0xff]
      %v2509 = vld [vmem:[%s400 + $0x50] sm:$0xff]
      %v2510 = vld [vmem:[%s400 + $0x58] sm:$0xff]
      %v2511 = vld [vmem:[%s409 + $0x2] sm:$0x1]
      %v2512 = vld [vmem:[%s395 + $0x100] sm:$0xff]
      %v2513 = vld [vmem:[%s395 + $0x108] sm:$0xff]
      %v2514 = vld [vmem:[%s395 + $0x110] sm:$0xff]
      %v2515 = vld [vmem:[%s395 + $0x118] sm:$0xff]
      %v2516 = vld [vmem:[%s405 + $0x10] sm:$0x1]
      %v2517 = vperm.slane %v2511, 0
      %v2519 = vsel %vm426, %v2504, 0
      %v2522 = vsel %vm426, %v2505, 0
      %v2525 = vsel %vm426, %v2506, 0
      %2527 = vmatpush.msra.mxu0 0.0
      %2528 = vmatpush.msra.mxu0 0.0
      %2529 = vmatpush.msra.mxu0 0.0
      %2530 = vmatpush.msra.mxu0 0.0
      %2531 = vmatpush.msra.mxu0 0.0
      %2532 = vmatpush.msra.mxu0 0.0
      %2533 = vmatpush.msra.mxu0 0.0
      %2534 = vmatpush.msra.mxu0 0.0
      %2535 = vmatpush.msra.mxu0 0.0
      %2536 = vmatpush.msra.mxu0 0.0
      %2537 = vmatpush.msra.mxu0 0.0
      %2538 = vmatpush.msra.mxu0 0.0
      %2539 = vmatpush.msra.mxu0 %v2510
      %2540 = vmatpush.msra.mxu0 %v2509
      %2541 = vmatpush.msra.mxu0 %v2508
      %2542 = vmatpush.msra.mxu0 %v2507
      %2543 = vmatmul.f32.gmra.mxu0 %v2519
      %v2544 = vpop.f32.mrf.mxu0
      %v2545 = vadd.f32 %v2517, %v2544
      %2546 = vmatmul.f32.gmra.mxu0 %v2522
      %v2547 = vpop.f32.mrf.mxu0
      %v2548 = vadd.f32 %v2517, %v2547
      %2549 = vmatmul.f32.gmra.mxu0 %v2525
      %v2550 = vpop.f32.mrf.mxu0
      %v2551 = vadd.f32 %v2517, %v2550
      %2552 = vdwg.mxu0
      %2556 = vrot.lane.b32.xlu0 %v2545, 96
      %v2557 = vpop.permute.xlu0 %2556
      %2558 = vrot.lane.b32.xlu0 %v2548, 96
      %v2559 = vpop.permute.xlu0 %2558
      %2560 = vrot.lane.b32.xlu0 %v2551, 96
      %v2561 = vpop.permute.xlu0 %2560
      %v2562 = vsel %vm695, %v2545, 0
      %v2564 = vsel %vm695, %v2548, 0
      %v2566 = vsel %vm695, %v2551, 0
      %v2568 = vsel %vm695, %v2557, 0
      %v2570 = vsel %vm695, %v2559, 0
      %v2572 = vsel %vm695, %v2561, 0
      %2574 = vmatpush.xpose.msra.mxu0 0.0
      %2575 = vmatpush.xpose.msra.mxu0 0.0
      %2576 = vmatpush.xpose.msra.mxu0 0.0
      %2577 = vmatpush.xpose.msra.mxu0 0.0
      %2578 = vmatpush.xpose.msra.mxu0 0.0
      %2579 = vmatpush.xpose.msra.mxu0 0.0
      %2580 = vmatpush.xpose.msra.mxu0 0.0
      %2581 = vmatpush.xpose.msra.mxu0 0.0
      %2582 = vmatpush.xpose.msra.mxu0 0.0
      %2583 = vmatpush.xpose.msra.mxu0 0.0
      %2584 = vmatpush.xpose.msra.mxu0 0.0
      %2585 = vmatpush.xpose.msra.mxu0 0.0
      %2586 = vmatpush.xpose.msra.mxu0 0.0
      %2587 = vmatpush.xpose.msra.mxu0 %v2572
      %2588 = vmatpush.xpose.msra.mxu0 %v2570
      %2589 = vmatpush.xpose.msra.mxu0 %v2568
      %2590 = vmatmul.f32.gmra.mxu0 %v2562
      %v2591 = vpop.f32.mrf.mxu0
      %v2592 = vadd.f32 0.0, %v2591
      %2593 = vmatmul.f32.gmra.mxu0 %v2564
      %v2594 = vpop.f32.mrf.mxu0
      %v2595 = vadd.f32 0.0, %v2594
      %2596 = vmatmul.f32.gmra.mxu0 %v2566
      %v2597 = vpop.f32.mrf.mxu0
      %v2598 = vadd.f32 0.0, %v2597
      %2599 = vdwg.mxu0
      %v2600 = vmul.f32 %v2592, 0.35355338
      %v2601 = vmul.f32 %v2595, 0.35355338
      %v2602 = vmul.f32 %v2598, 0.35355338
      %v2603 = vadd.f32 %v2600, %v415
      %v2604 = vadd.f32 %v2601, %v416
      %v2605 = vadd.f32 %v2602, %v417
      %v2606 = vsel %vm740, %v2603, -inf
      %2607 = vmax.xlane.f32.xlu0 %v2606
      %v2608 = vpop.xlane.xlu0 %2607
      %v2609 = vsel %vm740, %v2604, -inf
      %2610 = vmax.xlane.f32.xlu0 %v2609
      %v2611 = vpop.xlane.xlu0 %2610
      %v2612 = vsel %vm747, %v2605, -inf
      %2613 = vmax.xlane.f32.xlu0 %v2612
      %v2614 = vpop.xlane.xlu0 %2613
      %v2615 = vsub.f32 %v2603, %v2608
      %v2616 = vsub.f32 %v2604, %v2611
      %v2617 = vsub.f32 %v2605, %v2614
      %v2618 = vmul.f32 %v2615, 1.442695
      %v2619 = vpow.pop %v2618
      %v2620 = vmul.f32 %v2616, 1.442695
      %v2621 = vpow.pop %v2620
      %v2622 = vmul.f32 %v2617, 1.442695
      %v2623 = vpow.pop %v2622
      %v2624 = vsel %vm740, %v2619, 0.0
      %2625 = vadd.xlane.f32.xlu0 %v2624
      %v2626 = vpop.xlane.xlu0 %2625
      %v2627 = vsel %vm740, %v2621, 0.0
      %2628 = vadd.xlane.f32.xlu0 %v2627
      %v2629 = vpop.xlane.xlu0 %2628
      %v2630 = vsel %vm747, %v2623, 0.0
      %2631 = vadd.xlane.f32.xlu0 %v2630
      %v2632 = vpop.xlane.xlu0 %2631
      %v2633 = vrcp.pop %v2626
      %v2634 = vrcp.pop %v2629
      %v2635 = vrcp.pop %v2632
      %v2636 = vmul.f32 %v2619, %v2633
      %v2637 = vmul.f32 %v2621, %v2634
      %v2638 = vmul.f32 %v2623, %v2635
      %v2639 = vadd.f32 %v2636, 0.0
      %v2640 = vadd.f32 %v2637, 0.0
      %v2641 = vadd.f32 %v2638, 0.0
      %2642 = vrot.lane.b32.xlu0 %v2545, 64
      %v2643 = vpop.permute.xlu0 %2642
      %2644 = vrot.lane.b32.xlu0 %v2548, 64
      %v2645 = vpop.permute.xlu0 %2644
      %2646 = vrot.lane.b32.xlu0 %v2551, 64
      %v2647 = vpop.permute.xlu0 %2646
      %v2651 = vsel %vm740, %v2636, 0
      %v2654 = vsel %vm740, %v2637, 0
      %v2657 = vsel %vm740, %v2638, 0
      %v2659 = vsel %vm795, %v2647, 0
      %2661 = vmatpush.msra.mxu0 0.0
      %2662 = vmatpush.msra.mxu0 0.0
      %2663 = vmatpush.msra.mxu0 0.0
      %2664 = vmatpush.msra.mxu0 0.0
      %2665 = vmatpush.msra.mxu0 0.0
      %2666 = vmatpush.msra.mxu0 0.0
      %2667 = vmatpush.msra.mxu0 0.0
      %2668 = vmatpush.msra.mxu0 0.0
      %2669 = vmatpush.msra.mxu0 0.0
      %2670 = vmatpush.msra.mxu0 0.0
      %2671 = vmatpush.msra.mxu0 0.0
      %2672 = vmatpush.msra.mxu0 0.0
      %2673 = vmatpush.msra.mxu0 0.0
      %2674 = vmatpush.msra.mxu0 %v2659
      %2675 = vmatpush.msra.mxu0 %v2645
      %2676 = vmatpush.msra.mxu0 %v2643
      %2677 = vmatmul.f32.gmra.mxu0 %v2651
      %v2678 = vpop.f32.mrf.mxu0
      %v2679 = vadd.f32 0.0, %v2678
      %2680 = vmatmul.f32.gmra.mxu0 %v2654
      %v2681 = vpop.f32.mrf.mxu0
      %v2682 = vadd.f32 0.0, %v2681
      %2683 = vmatmul.f32.gmra.mxu0 %v2657
      %v2684 = vpop.f32.mrf.mxu0
      %v2685 = vadd.f32 0.0, %v2684
      %2686 = vdwg.mxu0
      %2687 = vrot.lane.b32.xlu0 %v2545, 120
      %v2688 = vpop.permute.xlu0 %2687
      %2689 = vrot.lane.b32.xlu0 %v2548, 120
      %v2690 = vpop.permute.xlu0 %2689
      %2691 = vrot.lane.b32.xlu0 %v2551, 120
      %v2692 = vpop.permute.xlu0 %2691
      %2693 = vrot.lane.b32.xlu0 %v2545, 88
      %v2694 = vpop.permute.xlu0 %2693
      %2695 = vrot.lane.b32.xlu0 %v2548, 88
      %v2696 = vpop.permute.xlu0 %2695
      %2697 = vrot.lane.b32.xlu0 %v2551, 88
      %v2698 = vpop.permute.xlu0 %2697
      %v2699 = vsel %vm695, %v2688, 0
      %v2701 = vsel %vm695, %v2690, 0
      %v2703 = vsel %vm695, %v2692, 0
      %v2705 = vsel %vm695, %v2694, 0
      %v2707 = vsel %vm695, %v2696, 0
      %v2709 = vsel %vm695, %v2698, 0
      %2711 = vmatpush.xpose.msra.mxu0 0.0
      %2712 = vmatpush.xpose.msra.mxu0 0.0
      %2713 = vmatpush.xpose.msra.mxu0 0.0
      %2714 = vmatpush.xpose.msra.mxu0 0.0
      %2715 = vmatpush.xpose.msra.mxu0 0.0
      %2716 = vmatpush.xpose.msra.mxu0 0.0
      %2717 = vmatpush.xpose.msra.mxu0 0.0
      %2718 = vmatpush.xpose.msra.mxu0 0.0
      %2719 = vmatpush.xpose.msra.mxu0 0.0
      %2720 = vmatpush.xpose.msra.mxu0 0.0
      %2721 = vmatpush.xpose.msra.mxu0 0.0
      %2722 = vmatpush.xpose.msra.mxu0 0.0
      %2723 = vmatpush.xpose.msra.mxu0 0.0
      %2724 = vmatpush.xpose.msra.mxu0 %v2709
      %2725 = vmatpush.xpose.msra.mxu0 %v2707
      %2726 = vmatpush.xpose.msra.mxu0 %v2705
      %2727 = vmatmul.f32.gmra.mxu0 %v2699
      %v2728 = vpop.f32.mrf.mxu0
      %v2729 = vadd.f32 0.0, %v2728
      %2730 = vmatmul.f32.gmra.mxu0 %v2701
      %v2731 = vpop.f32.mrf.mxu0
      %v2732 = vadd.f32 0.0, %v2731
      %2733 = vmatmul.f32.gmra.mxu0 %v2703
      %v2734 = vpop.f32.mrf.mxu0
      %v2735 = vadd.f32 0.0, %v2734
      %2736 = vdwg.mxu0
      %v2737 = vmul.f32 %v2729, 0.35355338
      %v2738 = vmul.f32 %v2732, 0.35355338
      %v2739 = vmul.f32 %v2735, 0.35355338
      %v2740 = vadd.f32 %v2737, %v415
      %v2741 = vadd.f32 %v2738, %v416
      %v2742 = vadd.f32 %v2739, %v417
      %v2743 = vsel %vm740, %v2740, -inf
      %2744 = vmax.xlane.f32.xlu0 %v2743
      %v2745 = vpop.xlane.xlu0 %2744
      %v2746 = vsel %vm740, %v2741, -inf
      %2747 = vmax.xlane.f32.xlu0 %v2746
      %v2748 = vpop.xlane.xlu0 %2747
      %v2749 = vsel %vm747, %v2742, -inf
      %2750 = vmax.xlane.f32.xlu0 %v2749
      %v2751 = vpop.xlane.xlu0 %2750
      %v2752 = vsub.f32 %v2740, %v2745
      %v2753 = vsub.f32 %v2741, %v2748
      %v2754 = vsub.f32 %v2742, %v2751
      %v2755 = vmul.f32 %v2752, 1.442695
      %v2756 = vpow.pop %v2755
      %v2757 = vmul.f32 %v2753, 1.442695
      %v2758 = vpow.pop %v2757
      %v2759 = vmul.f32 %v2754, 1.442695
      %v2760 = vpow.pop %v2759
      %v2761 = vsel %vm740, %v2756, 0.0
      %2762 = vadd.xlane.f32.xlu0 %v2761
      %v2763 = vpop.xlane.xlu0 %2762
      %v2764 = vsel %vm740, %v2758, 0.0
      %2765 = vadd.xlane.f32.xlu0 %v2764
      %v2766 = vpop.xlane.xlu0 %2765
      %v2767 = vsel %vm747, %v2760, 0.0
      %2768 = vadd.xlane.f32.xlu0 %v2767
      %v2769 = vpop.xlane.xlu0 %2768
      %v2770 = vrcp.pop %v2763
      %v2771 = vrcp.pop %v2766
      %v2772 = vrcp.pop %v2769
      %v2773 = vmul.f32 %v2756, %v2770
      %v2774 = vmul.f32 %v2758, %v2771
      %v2775 = vmul.f32 %v2760, %v2772
      %v2776 = vadd.f32 %v2639, %v2773
      %v2777 = vadd.f32 %v2640, %v2774
      %v2778 = vadd.f32 %v2641, %v2775
      %2779 = vrot.lane.b32.xlu0 %v2545, 56
      %v2780 = vpop.permute.xlu0 %2779
      %2781 = vrot.lane.b32.xlu0 %v2548, 56
      %v2782 = vpop.permute.xlu0 %2781
      %2783 = vrot.lane.b32.xlu0 %v2551, 56
      %v2784 = vpop.permute.xlu0 %2783
      %v2788 = vsel %vm740, %v2773, 0
      %v2791 = vsel %vm740, %v2774, 0
      %v2794 = vsel %vm740, %v2775, 0
      %v2796 = vsel %vm795, %v2784, 0
      %2798 = vmatpush.msra.mxu0 0.0
      %2799 = vmatpush.msra.mxu0 0.0
      %2800 = vmatpush.msra.mxu0 0.0
      %2801 = vmatpush.msra.mxu0 0.0
      %2802 = vmatpush.msra.mxu0 0.0
      %2803 = vmatpush.msra.mxu0 0.0
      %2804 = vmatpush.msra.mxu0 0.0
      %2805 = vmatpush.msra.mxu0 0.0
      %2806 = vmatpush.msra.mxu0 0.0
      %2807 = vmatpush.msra.mxu0 0.0
      %2808 = vmatpush.msra.mxu0 0.0
      %2809 = vmatpush.msra.mxu0 0.0
      %2810 = vmatpush.msra.mxu0 0.0
      %2811 = vmatpush.msra.mxu0 %v2796
      %2812 = vmatpush.msra.mxu0 %v2782
      %2813 = vmatpush.msra.mxu0 %v2780
      %2814 = vmatmul.f32.gmra.mxu0 %v2788
      %v2815 = vpop.f32.mrf.mxu0
      %v2816 = vadd.f32 0.0, %v2815
      %2817 = vmatmul.f32.gmra.mxu0 %v2791
      %v2818 = vpop.f32.mrf.mxu0
      %v2819 = vadd.f32 0.0, %v2818
      %2820 = vmatmul.f32.gmra.mxu0 %v2794
      %v2821 = vpop.f32.mrf.mxu0
      %v2822 = vadd.f32 0.0, %v2821
      %2823 = vdwg.mxu0
      %2824 = vrot.lane.b32.xlu0 %v2545, 112
      %v2825 = vpop.permute.xlu0 %2824
      %2826 = vrot.lane.b32.xlu0 %v2548, 112
      %v2827 = vpop.permute.xlu0 %2826
      %2828 = vrot.lane.b32.xlu0 %v2551, 112
      %v2829 = vpop.permute.xlu0 %2828
      %2830 = vrot.lane.b32.xlu0 %v2545, 80
      %v2831 = vpop.permute.xlu0 %2830
      %2832 = vrot.lane.b32.xlu0 %v2548, 80
      %v2833 = vpop.permute.xlu0 %2832
      %2834 = vrot.lane.b32.xlu0 %v2551, 80
      %v2835 = vpop.permute.xlu0 %2834
      %v2836 = vsel %vm695, %v2825, 0
      %v2838 = vsel %vm695, %v2827, 0
      %v2840 = vsel %vm695, %v2829, 0
      %v2842 = vsel %vm695, %v2831, 0
      %v2844 = vsel %vm695, %v2833, 0
      %v2846 = vsel %vm695, %v2835, 0
      %2848 = vmatpush.xpose.msra.mxu0 0.0
      %2849 = vmatpush.xpose.msra.mxu0 0.0
      %2850 = vmatpush.xpose.msra.mxu0 0.0
      %2851 = vmatpush.xpose.msra.mxu0 0.0
      %2852 = vmatpush.xpose.msra.mxu0 0.0
      %2853 = vmatpush.xpose.msra.mxu0 0.0
      %2854 = vmatpush.xpose.msra.mxu0 0.0
      %2855 = vmatpush.xpose.msra.mxu0 0.0
      %2856 = vmatpush.xpose.msra.mxu0 0.0
      %2857 = vmatpush.xpose.msra.mxu0 0.0
      %2858 = vmatpush.xpose.msra.mxu0 0.0
      %2859 = vmatpush.xpose.msra.mxu0 0.0
      %2860 = vmatpush.xpose.msra.mxu0 0.0
      %2861 = vmatpush.xpose.msra.mxu0 %v2846
      %2862 = vmatpush.xpose.msra.mxu0 %v2844
      %2863 = vmatpush.xpose.msra.mxu0 %v2842
      %2864 = vmatmul.f32.gmra.mxu0 %v2836
      %v2865 = vpop.f32.mrf.mxu0
      %v2866 = vadd.f32 0.0, %v2865
      %2867 = vmatmul.f32.gmra.mxu0 %v2838
      %v2868 = vpop.f32.mrf.mxu0
      %v2869 = vadd.f32 0.0, %v2868
      %2870 = vmatmul.f32.gmra.mxu0 %v2840
      %v2871 = vpop.f32.mrf.mxu0
      %v2872 = vadd.f32 0.0, %v2871
      %2873 = vdwg.mxu0
      %v2874 = vmul.f32 %v2866, 0.35355338
      %v2875 = vmul.f32 %v2869, 0.35355338
      %v2876 = vmul.f32 %v2872, 0.35355338
      %v2877 = vadd.f32 %v2874, %v415
      %v2878 = vadd.f32 %v2875, %v416
      %v2879 = vadd.f32 %v2876, %v417
      %v2880 = vsel %vm740, %v2877, -inf
      %2881 = vmax.xlane.f32.xlu0 %v2880
      %v2882 = vpop.xlane.xlu0 %2881
      %v2883 = vsel %vm740, %v2878, -inf
      %2884 = vmax.xlane.f32.xlu0 %v2883
      %v2885 = vpop.xlane.xlu0 %2884
      %v2886 = vsel %vm747, %v2879, -inf
      %2887 = vmax.xlane.f32.xlu0 %v2886
      %v2888 = vpop.xlane.xlu0 %2887
      %v2889 = vsub.f32 %v2877, %v2882
      %v2890 = vsub.f32 %v2878, %v2885
      %v2891 = vsub.f32 %v2879, %v2888
      %v2892 = vmul.f32 %v2889, 1.442695
      %v2893 = vpow.pop %v2892
      %v2894 = vmul.f32 %v2890, 1.442695
      %v2895 = vpow.pop %v2894
      %v2896 = vmul.f32 %v2891, 1.442695
      %v2897 = vpow.pop %v2896
      %v2898 = vsel %vm740, %v2893, 0.0
      %2899 = vadd.xlane.f32.xlu0 %v2898
      %v2900 = vpop.xlane.xlu0 %2899
      %v2901 = vsel %vm740, %v2895, 0.0
      %2902 = vadd.xlane.f32.xlu0 %v2901
      %v2903 = vpop.xlane.xlu0 %2902
      %v2904 = vsel %vm747, %v2897, 0.0
      %2905 = vadd.xlane.f32.xlu0 %v2904
      %v2906 = vpop.xlane.xlu0 %2905
      %v2907 = vrcp.pop %v2900
      %v2908 = vrcp.pop %v2903
      %v2909 = vrcp.pop %v2906
      %v2910 = vmul.f32 %v2893, %v2907
      %v2911 = vmul.f32 %v2895, %v2908
      %v2912 = vmul.f32 %v2897, %v2909
      %v2913 = vadd.f32 %v2776, %v2910
      %v2914 = vadd.f32 %v2777, %v2911
      %v2915 = vadd.f32 %v2778, %v2912
      %2916 = vrot.lane.b32.xlu0 %v2545, 48
      %v2917 = vpop.permute.xlu0 %2916
      %2918 = vrot.lane.b32.xlu0 %v2548, 48
      %v2919 = vpop.permute.xlu0 %2918
      %2920 = vrot.lane.b32.xlu0 %v2551, 48
      %v2921 = vpop.permute.xlu0 %2920
      %v2925 = vsel %vm740, %v2910, 0
      %v2928 = vsel %vm740, %v2911, 0
      %v2931 = vsel %vm740, %v2912, 0
      %v2933 = vsel %vm795, %v2921, 0
      %2935 = vmatpush.msra.mxu0 0.0
      %2936 = vmatpush.msra.mxu0 0.0
      %2937 = vmatpush.msra.mxu0 0.0
      %2938 = vmatpush.msra.mxu0 0.0
      %2939 = vmatpush.msra.mxu0 0.0
      %2940 = vmatpush.msra.mxu0 0.0
      %2941 = vmatpush.msra.mxu0 0.0
      %2942 = vmatpush.msra.mxu0 0.0
      %2943 = vmatpush.msra.mxu0 0.0
      %2944 = vmatpush.msra.mxu0 0.0
      %2945 = vmatpush.msra.mxu0 0.0
      %2946 = vmatpush.msra.mxu0 0.0
      %2947 = vmatpush.msra.mxu0 0.0
      %2948 = vmatpush.msra.mxu0 %v2933
      %2949 = vmatpush.msra.mxu0 %v2919
      %2950 = vmatpush.msra.mxu0 %v2917
      %2951 = vmatmul.f32.gmra.mxu0 %v2925
      %v2952 = vpop.f32.mrf.mxu0
      %v2953 = vadd.f32 0.0, %v2952
      %2954 = vmatmul.f32.gmra.mxu0 %v2928
      %v2955 = vpop.f32.mrf.mxu0
      %v2956 = vadd.f32 0.0, %v2955
      %2957 = vmatmul.f32.gmra.mxu0 %v2931
      %v2958 = vpop.f32.mrf.mxu0
      %v2959 = vadd.f32 0.0, %v2958
      %2960 = vdwg.mxu0
      %2961 = vrot.lane.b32.xlu0 %v2545, 104
      %v2962 = vpop.permute.xlu0 %2961
      %2963 = vrot.lane.b32.xlu0 %v2548, 104
      %v2964 = vpop.permute.xlu0 %2963
      %2965 = vrot.lane.b32.xlu0 %v2551, 104
      %v2966 = vpop.permute.xlu0 %2965
      %2967 = vrot.lane.b32.xlu0 %v2545, 72
      %v2968 = vpop.permute.xlu0 %2967
      %2969 = vrot.lane.b32.xlu0 %v2548, 72
      %v2970 = vpop.permute.xlu0 %2969
      %2971 = vrot.lane.b32.xlu0 %v2551, 72
      %v2972 = vpop.permute.xlu0 %2971
      %v2973 = vsel %vm695, %v2962, 0
      %v2975 = vsel %vm695, %v2964, 0
      %v2977 = vsel %vm695, %v2966, 0
      %v2979 = vsel %vm695, %v2968, 0
      %v2981 = vsel %vm695, %v2970, 0
      %v2983 = vsel %vm695, %v2972, 0
      %2985 = vmatpush.xpose.msra.mxu0 0.0
      %2986 = vmatpush.xpose.msra.mxu0 0.0
      %2987 = vmatpush.xpose.msra.mxu0 0.0
      %2988 = vmatpush.xpose.msra.mxu0 0.0
      %2989 = vmatpush.xpose.msra.mxu0 0.0
      %2990 = vmatpush.xpose.msra.mxu0 0.0
      %2991 = vmatpush.xpose.msra.mxu0 0.0
      %2992 = vmatpush.xpose.msra.mxu0 0.0
      %2993 = vmatpush.xpose.msra.mxu0 0.0
      %2994 = vmatpush.xpose.msra.mxu0 0.0
      %2995 = vmatpush.xpose.msra.mxu0 0.0
      %2996 = vmatpush.xpose.msra.mxu0 0.0
      %2997 = vmatpush.xpose.msra.mxu0 0.0
      %2998 = vmatpush.xpose.msra.mxu0 %v2983
      %2999 = vmatpush.xpose.msra.mxu0 %v2981
      %3000 = vmatpush.xpose.msra.mxu0 %v2979
      %3001 = vmatmul.f32.gmra.mxu0 %v2973
      %v3002 = vpop.f32.mrf.mxu0
      %v3003 = vadd.f32 0.0, %v3002
      %3004 = vmatmul.f32.gmra.mxu0 %v2975
      %v3005 = vpop.f32.mrf.mxu0
      %v3006 = vadd.f32 0.0, %v3005
      %3007 = vmatmul.f32.gmra.mxu0 %v2977
      %v3008 = vpop.f32.mrf.mxu0
      %v3009 = vadd.f32 0.0, %v3008
      %3010 = vdwg.mxu0
      %v3011 = vmul.f32 %v3003, 0.35355338
      %v3012 = vmul.f32 %v3006, 0.35355338
      %v3013 = vmul.f32 %v3009, 0.35355338
      %v3014 = vadd.f32 %v3011, %v415
      %v3015 = vadd.f32 %v3012, %v416
      %v3016 = vadd.f32 %v3013, %v417
      %v3017 = vsel %vm740, %v3014, -inf
      %3018 = vmax.xlane.f32.xlu0 %v3017
      %v3019 = vpop.xlane.xlu0 %3018
      %v3020 = vsel %vm740, %v3015, -inf
      %3021 = vmax.xlane.f32.xlu0 %v3020
      %v3022 = vpop.xlane.xlu0 %3021
      %v3023 = vsel %vm747, %v3016, -inf
      %3024 = vmax.xlane.f32.xlu0 %v3023
      %v3025 = vpop.xlane.xlu0 %3024
      %v3026 = vsub.f32 %v3014, %v3019
      %v3027 = vsub.f32 %v3015, %v3022
      %v3028 = vsub.f32 %v3016, %v3025
      %v3029 = vmul.f32 %v3026, 1.442695
      %v3030 = vpow.pop %v3029
      %v3031 = vmul.f32 %v3027, 1.442695
      %v3032 = vpow.pop %v3031
      %v3033 = vmul.f32 %v3028, 1.442695
      %v3034 = vpow.pop %v3033
      %v3035 = vsel %vm740, %v3030, 0.0
      %3036 = vadd.xlane.f32.xlu0 %v3035
      %v3037 = vpop.xlane.xlu0 %3036
      %v3038 = vsel %vm740, %v3032, 0.0
      %3039 = vadd.xlane.f32.xlu0 %v3038
      %v3040 = vpop.xlane.xlu0 %3039
      %v3041 = vsel %vm747, %v3034, 0.0
      %3042 = vadd.xlane.f32.xlu0 %v3041
      %v3043 = vpop.xlane.xlu0 %3042
      %v3044 = vrcp.pop %v3037
      %v3045 = vrcp.pop %v3040
      %v3046 = vrcp.pop %v3043
      %v3047 = vmul.f32 %v3030, %v3044
      %v3048 = vmul.f32 %v3032, %v3045
      %v3049 = vmul.f32 %v3034, %v3046
      %v3050 = vadd.f32 %v2913, %v3047
      %v3051 = vadd.f32 %v2914, %v3048
      %v3052 = vadd.f32 %v2915, %v3049
      %3053 = vrot.lane.b32.xlu0 %v2545, 40
      %v3054 = vpop.permute.xlu0 %3053
      %3055 = vrot.lane.b32.xlu0 %v2548, 40
      %v3056 = vpop.permute.xlu0 %3055
      %3057 = vrot.lane.b32.xlu0 %v2551, 40
      %v3058 = vpop.permute.xlu0 %3057
      %v3062 = vsel %vm740, %v3047, 0
      %v3065 = vsel %vm740, %v3048, 0
      %v3068 = vsel %vm740, %v3049, 0
      %v3070 = vsel %vm795, %v3058, 0
      %3072 = vmatpush.msra.mxu0 0.0
      %3073 = vmatpush.msra.mxu0 0.0
      %3074 = vmatpush.msra.mxu0 0.0
      %3075 = vmatpush.msra.mxu0 0.0
      %3076 = vmatpush.msra.mxu0 0.0
      %3077 = vmatpush.msra.mxu0 0.0
      %3078 = vmatpush.msra.mxu0 0.0
      %3079 = vmatpush.msra.mxu0 0.0
      %3080 = vmatpush.msra.mxu0 0.0
      %3081 = vmatpush.msra.mxu0 0.0
      %3082 = vmatpush.msra.mxu0 0.0
      %3083 = vmatpush.msra.mxu0 0.0
      %3084 = vmatpush.msra.mxu0 0.0
      %3085 = vmatpush.msra.mxu0 %v3070
      %3086 = vmatpush.msra.mxu0 %v3056
      %3087 = vmatpush.msra.mxu0 %v3054
      %3088 = vmatmul.f32.gmra.mxu0 %v3062
      %v3089 = vpop.f32.mrf.mxu0
      %v3090 = vadd.f32 0.0, %v3089
      %3091 = vmatmul.f32.gmra.mxu0 %v3065
      %v3092 = vpop.f32.mrf.mxu0
      %v3093 = vadd.f32 0.0, %v3092
      %3094 = vmatmul.f32.gmra.mxu0 %v3068
      %v3095 = vpop.f32.mrf.mxu0
      %v3096 = vadd.f32 0.0, %v3095
      %3097 = vdwg.mxu0
      %3101 = vrot.lane.b32.xlu0 %v2816, 8
      %v3102 = vpop.permute.xlu0 %3101
      %3103 = vrot.lane.b32.xlu0 %v2819, 8
      %v3104 = vpop.permute.xlu0 %3103
      %3105 = vrot.lane.b32.xlu0 %v2822, 8
      %v3106 = vpop.permute.xlu0 %3105
      %3113 = vrot.lane.b32.xlu0 %v2953, 16
      %v3114 = vpop.permute.xlu0 %3113
      %3115 = vrot.lane.b32.xlu0 %v2956, 16
      %v3116 = vpop.permute.xlu0 %3115
      %3117 = vrot.lane.b32.xlu0 %v2959, 16
      %v3118 = vpop.permute.xlu0 %3117
      %3125 = vrot.lane.b32.xlu0 %v3090, 24
      %v3126 = vpop.permute.xlu0 %3125
      %3127 = vrot.lane.b32.xlu0 %v3093, 24
      %v3128 = vpop.permute.xlu0 %3127
      %3129 = vrot.lane.b32.xlu0 %v3096, 24
      %v3130 = vpop.permute.xlu0 %3129
      %v3134 = vsel %vm695, %v2679, %v3102
      %v3135 = vsel %vm695, %v2682, %v3104
      %v3136 = vsel %vm695, %v2685, %v3106
      %v3137 = vsel %vm1274, %v3134, %v3114
      %v3138 = vsel %vm1274, %v3135, %v3116
      %v3139 = vsel %vm1274, %v3136, %v3118
      %v3140 = vsel %vm1278, %v3137, %v3126
      %v3141 = vsel %vm1278, %v3138, %v3128
      %v3142 = vsel %vm1278, %v3139, %v3130
      %v3143 = vperm.slane %v2516, 0
      %v3145 = vsel %vm426, %v3140, 0
      %v3148 = vsel %vm426, %v3141, 0
      %v3151 = vsel %vm426, %v3142, 0
      %3153 = vmatpush.msra.mxu0 0.0
      %3154 = vmatpush.msra.mxu0 0.0
      %3155 = vmatpush.msra.mxu0 0.0
      %3156 = vmatpush.msra.mxu0 0.0
      %3157 = vmatpush.msra.mxu0 0.0
      %3158 = vmatpush.msra.mxu0 0.0
      %3159 = vmatpush.msra.mxu0 0.0
      %3160 = vmatpush.msra.mxu0 0.0
      %3161 = vmatpush.msra.mxu0 0.0
      %3162 = vmatpush.msra.mxu0 0.0
      %3163 = vmatpush.msra.mxu0 0.0
      %3164 = vmatpush.msra.mxu0 0.0
      %3165 = vmatpush.msra.mxu0 %v2515
      %3166 = vmatpush.msra.mxu0 %v2514
      %3167 = vmatpush.msra.mxu0 %v2513
      %3168 = vmatpush.msra.mxu0 %v2512
      %3169 = vmatmul.f32.gmra.mxu0 %v3145
      %v3170 = vpop.f32.mrf.mxu0
      %v3171 = vadd.f32 %v3143, %v3170
      %3172 = vmatmul.f32.gmra.mxu0 %v3148
      %v3173 = vpop.f32.mrf.mxu0
      %v3174 = vadd.f32 %v3143, %v3173
      %3175 = vmatmul.f32.gmra.mxu0 %v3151
      %v3176 = vpop.f32.mrf.mxu0
      %v3177 = vadd.f32 %v3143, %v3176
      %3178 = vdwg.mxu0
      %v3179 = vmul.f32 %v3050, 0.25
      %v3180 = vmul.f32 %v3051, 0.25
      %v3181 = vmul.f32 %v3052, 0.25
      %v3182 = vadd.f32 %v2428, %v3171
      %v3183 = vadd.f32 %v2429, %v3174
      %v3184 = vadd.f32 %v2430, %v3177
      %v3185 = vld [vmem:[%s405 + $0xe] sm:$0x1]
      %v3186 = vld [vmem:[%s405 + $0xf] sm:$0x1]
      %v3187 = vsel %vm426, %v3182, 0.0
      %3188 = vadd.xlane.f32.xlu0 %v3187
      %v3189 = vpop.xlane.xlu0 %3188
      %v3190 = vsel %vm426, %v3183, 0.0
      %3191 = vadd.xlane.f32.xlu0 %v3190
      %v3192 = vpop.xlane.xlu0 %3191
      %v3193 = vsel %vm552, %v3184, 0.0
      %3194 = vadd.xlane.f32.xlu0 %v3193
      %v3195 = vpop.xlane.xlu0 %3194
      %v3196 = vmul.f32 %v3189, %v574
      %v3197 = vmul.f32 %v3192, %v574
      %v3198 = vmul.f32 %v3195, %v574
      %v3199 = vsub.f32 %v3182, %v3196
      %v3200 = vsub.f32 %v3183, %v3197
      %v3201 = vsub.f32 %v3184, %v3198
      %v3202 = vmul.f32 %v3199, %v3199
      %v3203 = vmul.f32 %v3200, %v3200
      %v3204 = vmul.f32 %v3201, %v3201
      %v3205 = vsel %vm426, %v3202, 0.0
      %3206 = vadd.xlane.f32.xlu0 %v3205
      %v3207 = vpop.xlane.xlu0 %3206
      %v3208 = vsel %vm426, %v3203, 0.0
      %3209 = vadd.xlane.f32.xlu0 %v3208
      %v3210 = vpop.xlane.xlu0 %3209
      %v3211 = vsel %vm552, %v3204, 0.0
      %3212 = vadd.xlane.f32.xlu0 %v3211
      %v3213 = vpop.xlane.xlu0 %3212
      %v3214 = vmul.f32 %v3207, %v574
      %v3215 = vmul.f32 %v3210, %v574
      %v3216 = vmul.f32 %v3213, %v574
      %v3217 = vadd.f32 %v3214, 1e-05
      %v3218 = vadd.f32 %v3215, 1e-05
      %v3219 = vadd.f32 %v3216, 1e-05
      %v3220 = vrsqrt.pop %v3217
      %v3221 = vmul.f32 %v3220, %v3217
      %v3222 = vmul.f32 %v3221, %v3220
      %v3223 = vmul.f32 0.5, %v3222
      %v3224 = vsub.f32 1.5, %v3223
      %v3225 = vmul.f32 %v3220, %v3224
      %vm3226 = vweird.f32 %v3217
      %vm3227 = vweird.f32 %v3220
      %vm3228 = vmor %vm3226, %vm3227
      %v3229 = vsel %vm3228, %v3220, %v3225
      %v3230 = vrsqrt.pop %v3218
      %v3231 = vmul.f32 %v3230, %v3218
      %v3232 = vmul.f32 %v3231, %v3230
      %v3233 = vmul.f32 0.5, %v3232
      %v3234 = vsub.f32 1.5, %v3233
      %v3235 = vmul.f32 %v3230, %v3234
      %vm3236 = vweird.f32 %v3218
      %vm3237 = vweird.f32 %v3230
      %vm3238 = vmor %vm3236, %vm3237
      %v3239 = vsel %vm3238, %v3230, %v3235
      %v3240 = vrsqrt.pop %v3219
      %v3241 = vmul.f32 %v3240, %v3219
      %v3242 = vmul.f32 %v3241, %v3240
      %v3243 = vmul.f32 0.5, %v3242
      %v3244 = vsub.f32 1.5, %v3243
      %v3245 = vmul.f32 %v3240, %v3244
      %vm3246 = vweird.f32 %v3219
      %vm3247 = vweird.f32 %v3240
      %vm3248 = vmor %vm3246, %vm3247
      %v3249 = vsel %vm3248, %v3240, %v3245
      %v3250 = vmul.f32 %v3199, %v3229
      %v3251 = vmul.f32 %v3200, %v3239
      %v3252 = vmul.f32 %v3201, %v3249
      %v3253 = vperm.slane %v3185, 0
      %v3254 = vmul.f32 %v3250, %v3253
      %v3255 = vmul.f32 %v3251, %v3253
      %v3256 = vmul.f32 %v3252, %v3253
      %v3257 = vperm.slane %v3186, 0
      %v3258 = vadd.f32 %v3254, %v3257
      %v3259 = vadd.f32 %v3255, %v3257
      %v3260 = vadd.f32 %v3256, %v3257
      %v3261 = vld [vmem:[%s395 + $0x120] sm:$0xff]
      %v3262 = vld [vmem:[%s395 + $0x128] sm:$0xff]
      %v3263 = vld [vmem:[%s395 + $0x130] sm:$0xff]
      %v3264 = vld [vmem:[%s395 + $0x138] sm:$0xff]
      %v3265 = vld [vmem:[%s405 + $0x11] sm:$0x1]
      %v3266 = vperm.slane %v3265, 0
      %v3268 = vsel %vm426, %v3258, 0
      %v3271 = vsel %vm426, %v3259, 0
      %v3274 = vsel %vm426, %v3260, 0
      %3276 = vmatpush.msra.mxu0 0.0
      %3277 = vmatpush.msra.mxu0 0.0
      %3278 = vmatpush.msra.mxu0 0.0
      %3279 = vmatpush.msra.mxu0 0.0
      %3280 = vmatpush.msra.mxu0 0.0
      %3281 = vmatpush.msra.mxu0 0.0
      %3282 = vmatpush.msra.mxu0 0.0
      %3283 = vmatpush.msra.mxu0 0.0
      %3284 = vmatpush.msra.mxu0 0.0
      %3285 = vmatpush.msra.mxu0 0.0
      %3286 = vmatpush.msra.mxu0 0.0
      %3287 = vmatpush.msra.mxu0 0.0
      %3288 = vmatpush.msra.mxu0 %v3264
      %3289 = vmatpush.msra.mxu0 %v3263
      %3290 = vmatpush.msra.mxu0 %v3262
      %3291 = vmatpush.msra.mxu0 %v3261
      %3292 = vmatmul.f32.gmra.mxu0 %v3268
      %v3293 = vpop.f32.mrf.mxu0
      %v3294 = vadd.f32 %v3266, %v3293
      %3295 = vmatmul.f32.gmra.mxu0 %v3271
      %v3296 = vpop.f32.mrf.mxu0
      %v3297 = vadd.f32 %v3266, %v3296
      %3298 = vmatmul.f32.gmra.mxu0 %v3274
      %v3299 = vpop.f32.mrf.mxu0
      %v3300 = vadd.f32 %v3266, %v3299
      %3301 = vdwg.mxu0
      %vm3302 = vcmp.gt.f32.partialorder %v3294, 0.0
      %vm3303 = vcmp.gt.f32.partialorder %v3297, 0.0
      %vm3304 = vcmp.gt.f32.partialorder %v3300, 0.0
      %v3305 = vmul.f32 %v3294, 1.442695
      %v3306 = vpow.pop %v3305
      %v3307 = vmul.f32 %v3297, 1.442695
      %v3308 = vpow.pop %v3307
      %v3309 = vmul.f32 %v3300, 1.442695
      %v3310 = vpow.pop %v3309
      %v3311 = vsub.f32 %v3306, 1.0
      %v3312 = vsub.f32 %v3308, 1.0
      %v3313 = vsub.f32 %v3310, 1.0
      %v3314 = vmul.f32 %v3311, 1.6732632
      %v3315 = vmul.f32 %v3312, 1.6732632
      %v3316 = vmul.f32 %v3313, 1.6732632
      %v3317 = vsel %vm3302, %v3294, %v3314
      %v3318 = vsel %vm3303, %v3297, %v3315
      %v3319 = vsel %vm3304, %v3300, %v3316
      %v3320 = vmul.f32 %v3317, 1.050701
      %v3321 = vmul.f32 %v3318, 1.050701
      %v3322 = vmul.f32 %v3319, 1.050701
      %v3323 = vld [vmem:[%s395 + $0x140] sm:$0xff]
      %v3324 = vld [vmem:[%s395 + $0x148] sm:$0xff]
      %v3325 = vld [vmem:[%s395 + $0x150] sm:$0xff]
      %v3326 = vld [vmem:[%s395 + $0x158] sm:$0xff]
      %v3328 = vsel %vm426, %v3320, 0
      %v3331 = vsel %vm426, %v3321, 0
      %v3334 = vsel %vm426, %v3322, 0
      %3336 = vmatpush.msra.mxu0 0.0
      %3337 = vmatpush.msra.mxu0 0.0
      %3338 = vmatpush.msra.mxu0 0.0
      %3339 = vmatpush.msra.mxu0 0.0
      %3340 = vmatpush.msra.mxu0 0.0
      %3341 = vmatpush.msra.mxu0 0.0
      %3342 = vmatpush.msra.mxu0 0.0
      %3343 = vmatpush.msra.mxu0 0.0
      %3344 = vmatpush.msra.mxu0 0.0
      %3345 = vmatpush.msra.mxu0 0.0
      %3346 = vmatpush.msra.mxu0 0.0
      %3347 = vmatpush.msra.mxu0 0.0
      %3348 = vmatpush.msra.mxu0 %v3326
      %3349 = vmatpush.msra.mxu0 %v3325
      %3350 = vmatpush.msra.mxu0 %v3324
      %3351 = vmatpush.msra.mxu0 %v3323
      %3352 = vmatmul.f32.gmra.mxu0 %v3328
      %v3353 = vpop.f32.mrf.mxu0
      %v3354 = vadd.f32 0.0, %v3353
      %3355 = vmatmul.f32.gmra.mxu0 %v3331
      %v3356 = vpop.f32.mrf.mxu0
      %v3357 = vadd.f32 0.0, %v3356
      %3358 = vmatmul.f32.gmra.mxu0 %v3334
      %v3359 = vpop.f32.mrf.mxu0
      %v3360 = vadd.f32 0.0, %v3359
      %3361 = vdwg.mxu0
      %v3362 = vadd.f32 %v3182, %v3354
      %v3363 = vadd.f32 %v3183, %v3357
      %v3364 = vadd.f32 %v3184, %v3360
      %v3365 = vld [vmem:[%s405 + $0x12] sm:$0x1]
      %v3366 = vperm.slane %v3365, 0
      %v3367 = vadd.f32 %v3362, %v3366
      %v3368 = vadd.f32 %v3363, %v3366
      %v3369 = vadd.f32 %v3364, %v3366
      %3370 = vst.msk [vmem:[#allocation2] sm:$0xff] %vm426, %v3367
      %3371 = vst.msk [vmem:[#allocation2 + $0x8] sm:$0xff] %vm426, %v3368
      %3372 = vst.msk [vmem:[#allocation2 + $0x10] sm:$0x3] %vm552, %v3369
      %v3373 = vld [vmem:[#allocation3] sm:$0xff]
      %v3374 = vld [vmem:[#allocation3 + $0x8] sm:$0xf]
      %v3375 = vld [vmem:[%s395 + $0x160] sm:$0xff]
      %v3376 = vld [vmem:[%s395 + $0x168] sm:$0xff]
      %v3377 = vld [vmem:[%s395 + $0x170] sm:$0xff]
      %v3378 = vld [vmem:[%s395 + $0x178] sm:$0xff]
      %v3380 = vsel %vm426, %v3373, 0
      %v3383 = vsel %vm426, %v3374, 0
      %3385 = vmatpush.msra.mxu0 0.0
      %3386 = vmatpush.msra.mxu0 0.0
      %3387 = vmatpush.msra.mxu0 0.0
      %3388 = vmatpush.msra.mxu0 0.0
      %3389 = vmatpush.msra.mxu0 0.0
      %3390 = vmatpush.msra.mxu0 0.0
      %3391 = vmatpush.msra.mxu0 0.0
      %3392 = vmatpush.msra.mxu0 0.0
      %3393 = vmatpush.msra.mxu0 0.0
      %3394 = vmatpush.msra.mxu0 0.0
      %3395 = vmatpush.msra.mxu0 0.0
      %3396 = vmatpush.msra.mxu0 0.0
      %3397 = vmatpush.msra.mxu0 %v3378
      %3398 = vmatpush.msra.mxu0 %v3377
      %3399 = vmatpush.msra.mxu0 %v3376
      %3400 = vmatpush.msra.mxu0 %v3375
      %3401 = vmatmul.f32.gmra.mxu0 %v3380
      %v3402 = vpop.f32.mrf.mxu0
      %v3403 = vadd.f32 0.0, %v3402
      %3404 = vmatmul.f32.gmra.mxu0 %v3383
      %v3405 = vpop.f32.mrf.mxu0
      %v3406 = vadd.f32 0.0, %v3405
      %3407 = vdwg.mxu0
      %v3408 = vld [vmem:[%s405 + $0x13] sm:$0x1]
      %v3409 = vperm.slane %v3408, 0
      %v3411 = vsel %vm1556, %v3406, 0
      %3413 = vmatpush.msra.mxu0 0.0
      %3414 = vmatpush.msra.mxu0 0.0
      %3415 = vmatpush.msra.mxu0 0.0
      %3416 = vmatpush.msra.mxu0 0.0
      %3417 = vmatpush.msra.mxu0 0.0
      %3418 = vmatpush.msra.mxu0 0.0
      %3419 = vmatpush.msra.mxu0 0.0
      %3420 = vmatpush.msra.mxu0 0.0
      %3421 = vmatpush.msra.mxu0 0.0
      %3422 = vmatpush.msra.mxu0 0.0
      %3423 = vmatpush.msra.mxu0 0.0
      %3424 = vmatpush.msra.mxu0 0.0
      %3425 = vmatpush.msra.mxu0 0.0
      %3426 = vmatpush.msra.mxu0 0.0
      %3427 = vmatpush.msra.mxu0 %v3411
      %3428 = vmatpush.msra.mxu0 %v3403
      %3429 = vmatmul.f32.gmra.mxu0 %v1551
      %v3430 = vpop.f32.mrf.mxu0
      %v3431 = vadd.f32 %v3409, %v3430
      %3432 = vmatmul.f32.gmra.mxu0 %v1554
      %v3433 = vpop.f32.mrf.mxu0
      %v3434 = vadd.f32 %v3409, %v3433
      %3435 = vdwg.mxu0
      %vm3436 = vcmp.ge.f32.partialorder %v3431, 0.0
      %vm3437 = vcmp.ge.f32.partialorder %v3434, 0.0
      %v3438 = vmul.f32 %v3431, 0.01
      %v3439 = vmul.f32 %v3434, 0.01
      %v3440 = vsel %vm3436, %v3431, %v3438
      %v3441 = vsel %vm3437, %v3434, %v3439
      %3442 = vst.msk [vmem:[#allocation3] sm:$0xff] %vm426, %v3440
      %3443 = vst.msk [vmem:[#allocation3 + $0x8] sm:$0xf] %vm504, %v3441
      %v3444 = vld [vmem:[#allocation3] sm:$0x1]
      %v3445 = vld [vmem:[#allocation3 + $0x1] sm:$0x1]
      %v3446 = vld [vmem:[#allocation3 + $0x2] sm:$0x1]
      %v3447 = vld [vmem:[#allocation3 + $0x3] sm:$0x1]
      %v3449 = vrot.slane %v3445, 7
      %v3452 = vrot.slane %v3446, 6
      %v3455 = vrot.slane %v3447, 5
      %v3457 = vsel %vm1604, %v3444, %v3449
      %v3458 = vsel %vm795, %v3457, %v3452
      %v3459 = vsel %vm1607, %v3458, %v3455
      %v3460 = vld [vmem:[%s400 + $0x60] sm:$0xff]
      %v3461 = vld [vmem:[%s400 + $0x68] sm:$0xff]
      %v3462 = vld [vmem:[%s400 + $0x70] sm:$0xff]
      %v3463 = vld [vmem:[%s400 + $0x78] sm:$0xff]
      %v3464 = vld [vmem:[%s409 + $0x3] sm:$0x1]
      %v3465 = vld [vmem:[%s395 + $0x180] sm:$0xff]
      %v3466 = vld [vmem:[%s395 + $0x188] sm:$0xff]
      %v3467 = vld [vmem:[%s395 + $0x190] sm:$0xff]
      %v3468 = vld [vmem:[%s395 + $0x198] sm:$0xff]
      %v3469 = vld [vmem:[%s405 + $0x14] sm:$0x1]
      %v3470 = vperm.slane %v3464, 0
      %v3472 = vsel %vm426, %v3459, 0
      %3474 = vmatpush.msra.mxu0 0.0
      %3475 = vmatpush.msra.mxu0 0.0
      %3476 = vmatpush.msra.mxu0 0.0
      %3477 = vmatpush.msra.mxu0 0.0
      %3478 = vmatpush.msra.mxu0 0.0
      %3479 = vmatpush.msra.mxu0 0.0
      %3480 = vmatpush.msra.mxu0 0.0
      %3481 = vmatpush.msra.mxu0 0.0
      %3482 = vmatpush.msra.mxu0 0.0
      %3483 = vmatpush.msra.mxu0 0.0
      %3484 = vmatpush.msra.mxu0 0.0
      %3485 = vmatpush.msra.mxu0 0.0
      %3486 = vmatpush.msra.mxu0 %v3463
      %3487 = vmatpush.msra.mxu0 %v3462
      %3488 = vmatpush.msra.mxu0 %v3461
      %3489 = vmatpush.msra.mxu0 %v3460
      %3490 = vmatmul.f32.gmra.mxu0 %v3472
      %v3491 = vpop.f32.mrf.mxu0
      %v3492 = vadd.f32 %v3470, %v3491
      %3493 = vdwg.mxu0
      %3495 = vrot.lane.b32.xlu0 %v3492, 96
      %v3496 = vpop.permute.xlu0 %3495
      %v3497 = vsel %vm695, %v3492, 0
      %v3499 = vsel %vm695, %v3496, 0
      %3501 = vmatpush.xpose.msra.mxu0 0.0
      %3502 = vmatpush.xpose.msra.mxu0 0.0
      %3503 = vmatpush.xpose.msra.mxu0 0.0
      %3504 = vmatpush.xpose.msra.mxu0 0.0
      %3505 = vmatpush.xpose.msra.mxu0 0.0
      %3506 = vmatpush.xpose.msra.mxu0 0.0
      %3507 = vmatpush.xpose.msra.mxu0 0.0
      %3508 = vmatpush.xpose.msra.mxu0 0.0
      %3509 = vmatpush.xpose.msra.mxu0 0.0
      %3510 = vmatpush.xpose.msra.mxu0 0.0
      %3511 = vmatpush.xpose.msra.mxu0 0.0
      %3512 = vmatpush.xpose.msra.mxu0 0.0
      %3513 = vmatpush.xpose.msra.mxu0 0.0
      %3514 = vmatpush.xpose.msra.mxu0 0.0
      %3515 = vmatpush.xpose.msra.mxu0 0.0
      %3516 = vmatpush.xpose.msra.mxu0 %v3499
      %3517 = vmatmul.f32.gmra.mxu0 %v3497
      %v3518 = vpop.f32.mrf.mxu0
      %v3519 = vadd.f32 0.0, %v3518
      %3520 = vdwg.mxu0
      %3521 = vrot.lane.b32.xlu0 %v3492, 120
      %v3522 = vpop.permute.xlu0 %3521
      %3523 = vrot.lane.b32.xlu0 %v3492, 88
      %v3524 = vpop.permute.xlu0 %3523
      %v3525 = vsel %vm695, %v3522, 0
      %v3527 = vsel %vm695, %v3524, 0
      %3529 = vmatpush.xpose.msra.mxu0 0.0
      %3530 = vmatpush.xpose.msra.mxu0 0.0
      %3531 = vmatpush.xpose.msra.mxu0 0.0
      %3532 = vmatpush.xpose.msra.mxu0 0.0
      %3533 = vmatpush.xpose.msra.mxu0 0.0
      %3534 = vmatpush.xpose.msra.mxu0 0.0
      %3535 = vmatpush.xpose.msra.mxu0 0.0
      %3536 = vmatpush.xpose.msra.mxu0 0.0
      %3537 = vmatpush.xpose.msra.mxu0 0.0
      %3538 = vmatpush.xpose.msra.mxu0 0.0
      %3539 = vmatpush.xpose.msra.mxu0 0.0
      %3540 = vmatpush.xpose.msra.mxu0 0.0
      %3541 = vmatpush.xpose.msra.mxu0 0.0
      %3542 = vmatpush.xpose.msra.mxu0 0.0
      %3543 = vmatpush.xpose.msra.mxu0 0.0
      %3544 = vmatpush.xpose.msra.mxu0 %v3527
      %3545 = vmatmul.f32.gmra.mxu0 %v3525
      %v3546 = vpop.f32.mrf.mxu0
      %v3547 = vadd.f32 0.0, %v3546
      %3548 = vdwg.mxu0
      %3549 = vrot.lane.b32.xlu0 %v3492, 112
      %v3550 = vpop.permute.xlu0 %3549
      %3551 = vrot.lane.b32.xlu0 %v3492, 80
      %v3552 = vpop.permute.xlu0 %3551
      %v3553 = vsel %vm695, %v3550, 0
      %v3555 = vsel %vm695, %v3552, 0
      %3557 = vmatpush.xpose.msra.mxu0 0.0
      %3558 = vmatpush.xpose.msra.mxu0 0.0
      %3559 = vmatpush.xpose.msra.mxu0 0.0
      %3560 = vmatpush.xpose.msra.mxu0 0.0
      %3561 = vmatpush.xpose.msra.mxu0 0.0
      %3562 = vmatpush.xpose.msra.mxu0 0.0
      %3563 = vmatpush.xpose.msra.mxu0 0.0
      %3564 = vmatpush.xpose.msra.mxu0 0.0
      %3565 = vmatpush.xpose.msra.mxu0 0.0
      %3566 = vmatpush.xpose.msra.mxu0 0.0
      %3567 = vmatpush.xpose.msra.mxu0 0.0
      %3568 = vmatpush.xpose.msra.mxu0 0.0
      %3569 = vmatpush.xpose.msra.mxu0 0.0
      %3570 = vmatpush.xpose.msra.mxu0 0.0
      %3571 = vmatpush.xpose.msra.mxu0 0.0
      %3572 = vmatpush.xpose.msra.mxu0 %v3555
      %3573 = vmatmul.f32.gmra.mxu0 %v3553
      %v3574 = vpop.f32.mrf.mxu0
      %v3575 = vadd.f32 0.0, %v3574
      %3576 = vdwg.mxu0
      %3577 = vrot.lane.b32.xlu0 %v3492, 104
      %v3578 = vpop.permute.xlu0 %3577
      %3579 = vrot.lane.b32.xlu0 %v3492, 72
      %v3580 = vpop.permute.xlu0 %3579
      %v3581 = vsel %vm695, %v3578, 0
      %v3583 = vsel %vm695, %v3580, 0
      %3585 = vmatpush.xpose.msra.mxu0 0.0
      %3586 = vmatpush.xpose.msra.mxu0 0.0
      %3587 = vmatpush.xpose.msra.mxu0 0.0
      %3588 = vmatpush.xpose.msra.mxu0 0.0
      %3589 = vmatpush.xpose.msra.mxu0 0.0
      %3590 = vmatpush.xpose.msra.mxu0 0.0
      %3591 = vmatpush.xpose.msra.mxu0 0.0
      %3592 = vmatpush.xpose.msra.mxu0 0.0
      %3593 = vmatpush.xpose.msra.mxu0 0.0
      %3594 = vmatpush.xpose.msra.mxu0 0.0
      %3595 = vmatpush.xpose.msra.mxu0 0.0
      %3596 = vmatpush.xpose.msra.mxu0 0.0
      %3597 = vmatpush.xpose.msra.mxu0 0.0
      %3598 = vmatpush.xpose.msra.mxu0 0.0
      %3599 = vmatpush.xpose.msra.mxu0 0.0
      %3600 = vmatpush.xpose.msra.mxu0 %v3583
      %3601 = vmatmul.f32.gmra.mxu0 %v3581
      %v3602 = vpop.f32.mrf.mxu0
      %v3603 = vadd.f32 0.0, %v3602
      %3604 = vdwg.mxu0
      %v3606 = vrot.slane %v3547, 7
      %v3609 = vrot.slane %v3575, 6
      %v3612 = vrot.slane %v3603, 5
      %v3614 = vsel %vm1604, %v3519, %v3606
      %v3615 = vsel %vm795, %v3614, %v3609
      %v3616 = vsel %vm1607, %v3615, %v3612
      %v3617 = vmul.f32 %v3616, 0.35355338
      %v3618 = vsel %vm1767, %v3617, -inf
      %3619 = vmax.xlane.f32.xlu0 %v3618
      %v3620 = vpop.xlane.xlu0 %3619
      %v3621 = vsub.f32 %v3617, %v3620
      %v3622 = vmul.f32 %v3621, 1.442695
      %v3623 = vpow.pop %v3622
      %v3624 = vsel %vm1767, %v3623, 0.0
      %3625 = vadd.xlane.f32.xlu0 %v3624
      %v3626 = vpop.xlane.xlu0 %3625
      %v3627 = vrcp.pop %v3626
      %v3628 = vmul.f32 %v3623, %v3627
      %3629 = vrot.lane.b32.xlu0 %v3492, 64
      %v3630 = vpop.permute.xlu0 %3629
      %v3632 = vsel %vm1781, %v3628, 0
      %v3634 = vsel %vm1556, %v3630, 0
      %3636 = vmatpush.msra.mxu0 0.0
      %3637 = vmatpush.msra.mxu0 0.0
      %3638 = vmatpush.msra.mxu0 0.0
      %3639 = vmatpush.msra.mxu0 0.0
      %3640 = vmatpush.msra.mxu0 0.0
      %3641 = vmatpush.msra.mxu0 0.0
      %3642 = vmatpush.msra.mxu0 0.0
      %3643 = vmatpush.msra.mxu0 0.0
      %3644 = vmatpush.msra.mxu0 0.0
      %3645 = vmatpush.msra.mxu0 0.0
      %3646 = vmatpush.msra.mxu0 0.0
      %3647 = vmatpush.msra.mxu0 0.0
      %3648 = vmatpush.msra.mxu0 0.0
      %3649 = vmatpush.msra.mxu0 0.0
      %3650 = vmatpush.msra.mxu0 0.0
      %3651 = vmatpush.msra.mxu0 %v3634
      %3652 = vmatmul.f32.gmra.mxu0 %v3632
      %v3653 = vpop.f32.mrf.mxu0
      %v3654 = vadd.f32 0.0, %v3653
      %3655 = vdwg.mxu0
      %v3656 = vrot.slane %v3628, 1
      %3657 = vrot.lane.b32.xlu0 %v3492, 56
      %v3658 = vpop.permute.xlu0 %3657
      %v3659 = vsel %vm1781, %v3656, 0
      %v3661 = vsel %vm1556, %v3658, 0
      %3663 = vmatpush.msra.mxu0 0.0
      %3664 = vmatpush.msra.mxu0 0.0
      %3665 = vmatpush.msra.mxu0 0.0
      %3666 = vmatpush.msra.mxu0 0.0
      %3667 = vmatpush.msra.mxu0 0.0
      %3668 = vmatpush.msra.mxu0 0.0
      %3669 = vmatpush.msra.mxu0 0.0
      %3670 = vmatpush.msra.mxu0 0.0
      %3671 = vmatpush.msra.mxu0 0.0
      %3672 = vmatpush.msra.mxu0 0.0
      %3673 = vmatpush.msra.mxu0 0.0
      %3674 = vmatpush.msra.mxu0 0.0
      %3675 = vmatpush.msra.mxu0 0.0
      %3676 = vmatpush.msra.mxu0 0.0
      %3677 = vmatpush.msra.mxu0 0.0
      %3678 = vmatpush.msra.mxu0 %v3661
      %3679 = vmatmul.f32.gmra.mxu0 %v3659
      %v3680 = vpop.f32.mrf.mxu0
      %v3681 = vadd.f32 0.0, %v3680
      %3682 = vdwg.mxu0
      %v3683 = vrot.slane %v3628, 2
      %3684 = vrot.lane.b32.xlu0 %v3492, 48
      %v3685 = vpop.permute.xlu0 %3684
      %v3686 = vsel %vm1781, %v3683, 0
      %v3688 = vsel %vm1556, %v3685, 0
      %3690 = vmatpush.msra.mxu0 0.0
      %3691 = vmatpush.msra.mxu0 0.0
      %3692 = vmatpush.msra.mxu0 0.0
      %3693 = vmatpush.msra.mxu0 0.0
      %3694 = vmatpush.msra.mxu0 0.0
      %3695 = vmatpush.msra.mxu0 0.0
      %3696 = vmatpush.msra.mxu0 0.0
      %3697 = vmatpush.msra.mxu0 0.0
      %3698 = vmatpush.msra.mxu0 0.0
      %3699 = vmatpush.msra.mxu0 0.0
      %3700 = vmatpush.msra.mxu0 0.0
      %3701 = vmatpush.msra.mxu0 0.0
      %3702 = vmatpush.msra.mxu0 0.0
      %3703 = vmatpush.msra.mxu0 0.0
      %3704 = vmatpush.msra.mxu0 0.0
      %3705 = vmatpush.msra.mxu0 %v3688
      %3706 = vmatmul.f32.gmra.mxu0 %v3686
      %v3707 = vpop.f32.mrf.mxu0
      %v3708 = vadd.f32 0.0, %v3707
      %3709 = vdwg.mxu0
      %v3710 = vrot.slane %v3628, 3
      %3711 = vrot.lane.b32.xlu0 %v3492, 40
      %v3712 = vpop.permute.xlu0 %3711
      %v3713 = vsel %vm1781, %v3710, 0
      %v3715 = vsel %vm1556, %v3712, 0
      %3717 = vmatpush.msra.mxu0 0.0
      %3718 = vmatpush.msra.mxu0 0.0
      %3719 = vmatpush.msra.mxu0 0.0
      %3720 = vmatpush.msra.mxu0 0.0
      %3721 = vmatpush.msra.mxu0 0.0
      %3722 = vmatpush.msra.mxu0 0.0
      %3723 = vmatpush.msra.mxu0 0.0
      %3724 = vmatpush.msra.mxu0 0.0
      %3725 = vmatpush.msra.mxu0 0.0
      %3726 = vmatpush.msra.mxu0 0.0
      %3727 = vmatpush.msra.mxu0 0.0
      %3728 = vmatpush.msra.mxu0 0.0
      %3729 = vmatpush.msra.mxu0 0.0
      %3730 = vmatpush.msra.mxu0 0.0
      %3731 = vmatpush.msra.mxu0 0.0
      %3732 = vmatpush.msra.mxu0 %v3715
      %3733 = vmatmul.f32.gmra.mxu0 %v3713
      %v3734 = vpop.f32.mrf.mxu0
      %v3735 = vadd.f32 0.0, %v3734
      %3736 = vdwg.mxu0
      %3738 = vrot.lane.b32.xlu0 %v3681, 8
      %v3739 = vpop.permute.xlu0 %3738
      %3742 = vrot.lane.b32.xlu0 %v3708, 16
      %v3743 = vpop.permute.xlu0 %3742
      %3746 = vrot.lane.b32.xlu0 %v3735, 24
      %v3747 = vpop.permute.xlu0 %3746
      %v3749 = vsel %vm695, %v3654, %v3739
      %v3750 = vsel %vm1274, %v3749, %v3743
      %v3751 = vsel %vm1278, %v3750, %v3747
      %v3753 = vsel %vm426, %v3751, 0
      %3755 = vmatpush.msra.mxu0 0.0
      %3756 = vmatpush.msra.mxu0 0.0
      %3757 = vmatpush.msra.mxu0 0.0
      %3758 = vmatpush.msra.mxu0 0.0
      %3759 = vmatpush.msra.mxu0 0.0
      %3760 = vmatpush.msra.mxu0 0.0
      %3761 = vmatpush.msra.mxu0 0.0
      %3762 = vmatpush.msra.mxu0 0.0
      %3763 = vmatpush.msra.mxu0 0.0
      %3764 = vmatpush.msra.mxu0 0.0
      %3765 = vmatpush.msra.mxu0 0.0
      %3766 = vmatpush.msra.mxu0 0.0
      %3767 = vmatpush.msra.mxu0 %v3468
      %3768 = vmatpush.msra.mxu0 %v3467
      %3769 = vmatpush.msra.mxu0 %v3466
      %3770 = vmatpush.msra.mxu0 %v3465
      %3771 = vmatmul.f32.gmra.mxu0 %v3753
      %v3772 = vpop.f32.mrf.mxu0
      %v3773 = vadd.f32 %v3469, %v3772
      %3774 = vdwg.mxu0
      %3775 = vst.msk [vmem:[#allocation3] sm:$0x1] %vm1926, %v3773
      %v3776 = vld [vmem:[#allocation3 + $0x4] sm:$0x1]
      %v3777 = vld [vmem:[#allocation3 + $0x5] sm:$0x1]
      %v3778 = vld [vmem:[#allocation3 + $0x6] sm:$0x1]
      %v3780 = vrot.slane %v3777, 7
      %v3783 = vrot.slane %v3778, 6
      %v3785 = vsel %vm1604, %v3776, %v3780
      %v3786 = vsel %vm795, %v3785, %v3783
      %v3787 = vld [vmem:[%s400 + $0x60] sm:$0xff]
      %v3788 = vld [vmem:[%s400 + $0x68] sm:$0xff]
      %v3789 = vld [vmem:[%s400 + $0x70] sm:$0xff]
      %v3790 = vld [vmem:[%s400 + $0x78] sm:$0xff]
      %v3791 = vld [vmem:[%s409 + $0x3] sm:$0x1]
      %v3792 = vld [vmem:[%s395 + $0x180] sm:$0xff]
      %v3793 = vld [vmem:[%s395 + $0x188] sm:$0xff]
      %v3794 = vld [vmem:[%s395 + $0x190] sm:$0xff]
      %v3795 = vld [vmem:[%s395 + $0x198] sm:$0xff]
      %v3796 = vld [vmem:[%s405 + $0x14] sm:$0x1]
      %v3797 = vperm.slane %v3791, 0
      %v3799 = vsel %vm426, %v3786, 0
      %3801 = vmatpush.msra.mxu0 0.0
      %3802 = vmatpush.msra.mxu0 0.0
      %3803 = vmatpush.msra.mxu0 0.0
      %3804 = vmatpush.msra.mxu0 0.0
      %3805 = vmatpush.msra.mxu0 0.0
      %3806 = vmatpush.msra.mxu0 0.0
      %3807 = vmatpush.msra.mxu0 0.0
      %3808 = vmatpush.msra.mxu0 0.0
      %3809 = vmatpush.msra.mxu0 0.0
      %3810 = vmatpush.msra.mxu0 0.0
      %3811 = vmatpush.msra.mxu0 0.0
      %3812 = vmatpush.msra.mxu0 0.0
      %3813 = vmatpush.msra.mxu0 %v3790
      %3814 = vmatpush.msra.mxu0 %v3789
      %3815 = vmatpush.msra.mxu0 %v3788
      %3816 = vmatpush.msra.mxu0 %v3787
      %3817 = vmatmul.f32.gmra.mxu0 %v3799
      %v3818 = vpop.f32.mrf.mxu0
      %v3819 = vadd.f32 %v3797, %v3818
      %3820 = vdwg.mxu0
      %3822 = vrot.lane.b32.xlu0 %v3819, 96
      %v3823 = vpop.permute.xlu0 %3822
      %v3824 = vsel %vm695, %v3819, 0
      %v3826 = vsel %vm695, %v3823, 0
      %3828 = vmatpush.xpose.msra.mxu0 0.0
      %3829 = vmatpush.xpose.msra.mxu0 0.0
      %3830 = vmatpush.xpose.msra.mxu0 0.0
      %3831 = vmatpush.xpose.msra.mxu0 0.0
      %3832 = vmatpush.xpose.msra.mxu0 0.0
      %3833 = vmatpush.xpose.msra.mxu0 0.0
      %3834 = vmatpush.xpose.msra.mxu0 0.0
      %3835 = vmatpush.xpose.msra.mxu0 0.0
      %3836 = vmatpush.xpose.msra.mxu0 0.0
      %3837 = vmatpush.xpose.msra.mxu0 0.0
      %3838 = vmatpush.xpose.msra.mxu0 0.0
      %3839 = vmatpush.xpose.msra.mxu0 0.0
      %3840 = vmatpush.xpose.msra.mxu0 0.0
      %3841 = vmatpush.xpose.msra.mxu0 0.0
      %3842 = vmatpush.xpose.msra.mxu0 0.0
      %3843 = vmatpush.xpose.msra.mxu0 %v3826
      %3844 = vmatmul.f32.gmra.mxu0 %v3824
      %v3845 = vpop.f32.mrf.mxu0
      %v3846 = vadd.f32 0.0, %v3845
      %3847 = vdwg.mxu0
      %3848 = vrot.lane.b32.xlu0 %v3819, 120
      %v3849 = vpop.permute.xlu0 %3848
      %3850 = vrot.lane.b32.xlu0 %v3819, 88
      %v3851 = vpop.permute.xlu0 %3850
      %v3852 = vsel %vm695, %v3849, 0
      %v3854 = vsel %vm695, %v3851, 0
      %3856 = vmatpush.xpose.msra.mxu0 0.0
      %3857 = vmatpush.xpose.msra.mxu0 0.0
      %3858 = vmatpush.xpose.msra.mxu0 0.0
      %3859 = vmatpush.xpose.msra.mxu0 0.0
      %3860 = vmatpush.xpose.msra.mxu0 0.0
      %3861 = vmatpush.xpose.msra.mxu0 0.0
      %3862 = vmatpush.xpose.msra.mxu0 0.0
      %3863 = vmatpush.xpose.msra.mxu0 0.0
      %3864 = vmatpush.xpose.msra.mxu0 0.0
      %3865 = vmatpush.xpose.msra.mxu0 0.0
      %3866 = vmatpush.xpose.msra.mxu0 0.0
      %3867 = vmatpush.xpose.msra.mxu0 0.0
      %3868 = vmatpush.xpose.msra.mxu0 0.0
      %3869 = vmatpush.xpose.msra.mxu0 0.0
      %3870 = vmatpush.xpose.msra.mxu0 0.0
      %3871 = vmatpush.xpose.msra.mxu0 %v3854
      %3872 = vmatmul.f32.gmra.mxu0 %v3852
      %v3873 = vpop.f32.mrf.mxu0
      %v3874 = vadd.f32 0.0, %v3873
      %3875 = vdwg.mxu0
      %3876 = vrot.lane.b32.xlu0 %v3819, 112
      %v3877 = vpop.permute.xlu0 %3876
      %3878 = vrot.lane.b32.xlu0 %v3819, 80
      %v3879 = vpop.permute.xlu0 %3878
      %v3880 = vsel %vm695, %v3877, 0
      %v3882 = vsel %vm695, %v3879, 0
      %3884 = vmatpush.xpose.msra.mxu0 0.0
      %3885 = vmatpush.xpose.msra.mxu0 0.0
      %3886 = vmatpush.xpose.msra.mxu0 0.0
      %3887 = vmatpush.xpose.msra.mxu0 0.0
      %3888 = vmatpush.xpose.msra.mxu0 0.0
      %3889 = vmatpush.xpose.msra.mxu0 0.0
      %3890 = vmatpush.xpose.msra.mxu0 0.0
      %3891 = vmatpush.xpose.msra.mxu0 0.0
      %3892 = vmatpush.xpose.msra.mxu0 0.0
      %3893 = vmatpush.xpose.msra.mxu0 0.0
      %3894 = vmatpush.xpose.msra.mxu0 0.0
      %3895 = vmatpush.xpose.msra.mxu0 0.0
      %3896 = vmatpush.xpose.msra.mxu0 0.0
      %3897 = vmatpush.xpose.msra.mxu0 0.0
      %3898 = vmatpush.xpose.msra.mxu0 0.0
      %3899 = vmatpush.xpose.msra.mxu0 %v3882
      %3900 = vmatmul.f32.gmra.mxu0 %v3880
      %v3901 = vpop.f32.mrf.mxu0
      %v3902 = vadd.f32 0.0, %v3901
      %3903 = vdwg.mxu0
      %3904 = vrot.lane.b32.xlu0 %v3819, 104
      %v3905 = vpop.permute.xlu0 %3904
      %3906 = vrot.lane.b32.xlu0 %v3819, 72
      %v3907 = vpop.permute.xlu0 %3906
      %v3908 = vsel %vm695, %v3905, 0
      %v3910 = vsel %vm695, %v3907, 0
      %3912 = vmatpush.xpose.msra.mxu0 0.0
      %3913 = vmatpush.xpose.msra.mxu0 0.0
      %3914 = vmatpush.xpose.msra.mxu0 0.0
      %3915 = vmatpush.xpose.msra.mxu0 0.0
      %3916 = vmatpush.xpose.msra.mxu0 0.0
      %3917 = vmatpush.xpose.msra.mxu0 0.0
      %3918 = vmatpush.xpose.msra.mxu0 0.0
      %3919 = vmatpush.xpose.msra.mxu0 0.0
      %3920 = vmatpush.xpose.msra.mxu0 0.0
      %3921 = vmatpush.xpose.msra.mxu0 0.0
      %3922 = vmatpush.xpose.msra.mxu0 0.0
      %3923 = vmatpush.xpose.msra.mxu0 0.0
      %3924 = vmatpush.xpose.msra.mxu0 0.0
      %3925 = vmatpush.xpose.msra.mxu0 0.0
      %3926 = vmatpush.xpose.msra.mxu0 0.0
      %3927 = vmatpush.xpose.msra.mxu0 %v3910
      %3928 = vmatmul.f32.gmra.mxu0 %v3908
      %v3929 = vpop.f32.mrf.mxu0
      %v3930 = vadd.f32 0.0, %v3929
      %3931 = vdwg.mxu0
      %v3933 = vrot.slane %v3874, 7
      %v3936 = vrot.slane %v3902, 6
      %v3939 = vrot.slane %v3930, 5
      %v3941 = vsel %vm1604, %v3846, %v3933
      %v3942 = vsel %vm795, %v3941, %v3936
      %v3943 = vsel %vm1607, %v3942, %v3939
      %v3944 = vmul.f32 %v3943, 0.35355338
      %v3945 = vsel %vm2097, %v3944, -inf
      %3946 = vmax.xlane.f32.xlu0 %v3945
      %v3947 = vpop.xlane.xlu0 %3946
      %v3948 = vsub.f32 %v3944, %v3947
      %v3949 = vmul.f32 %v3948, 1.442695
      %v3950 = vpow.pop %v3949
      %v3951 = vsel %vm2097, %v3950, 0.0
      %3952 = vadd.xlane.f32.xlu0 %v3951
      %v3953 = vpop.xlane.xlu0 %3952
      %v3954 = vrcp.pop %v3953
      %v3955 = vmul.f32 %v3950, %v3954
      %3956 = vrot.lane.b32.xlu0 %v3819, 64
      %v3957 = vpop.permute.xlu0 %3956
      %v3959 = vsel %vm2111, %v3955, 0
      %v3961 = vsel %vm1607, %v3957, 0
      %3963 = vmatpush.msra.mxu0 0.0
      %3964 = vmatpush.msra.mxu0 0.0
      %3965 = vmatpush.msra.mxu0 0.0
      %3966 = vmatpush.msra.mxu0 0.0
      %3967 = vmatpush.msra.mxu0 0.0
      %3968 = vmatpush.msra.mxu0 0.0
      %3969 = vmatpush.msra.mxu0 0.0
      %3970 = vmatpush.msra.mxu0 0.0
      %3971 = vmatpush.msra.mxu0 0.0
      %3972 = vmatpush.msra.mxu0 0.0
      %3973 = vmatpush.msra.mxu0 0.0
      %3974 = vmatpush.msra.mxu0 0.0
      %3975 = vmatpush.msra.mxu0 0.0
      %3976 = vmatpush.msra.mxu0 0.0
      %3977 = vmatpush.msra.mxu0 0.0
      %3978 = vmatpush.msra.mxu0 %v3961
      %3979 = vmatmul.f32.gmra.mxu0 %v3959
      %v3980 = vpop.f32.mrf.mxu0
      %v3981 = vadd.f32 0.0, %v3980
      %3982 = vdwg.mxu0
      %v3983 = vrot.slane %v3955, 1
      %3984 = vrot.lane.b32.xlu0 %v3819, 56
      %v3985 = vpop.permute.xlu0 %3984
      %v3986 = vsel %vm2111, %v3983, 0
      %v3988 = vsel %vm1607, %v3985, 0
      %3990 = vmatpush.msra.mxu0 0.0
      %3991 = vmatpush.msra.mxu0 0.0
      %3992 = vmatpush.msra.mxu0 0.0
      %3993 = vmatpush.msra.mxu0 0.0
      %3994 = vmatpush.msra.mxu0 0.0
      %3995 = vmatpush.msra.mxu0 0.0
      %3996 = vmatpush.msra.mxu0 0.0
      %3997 = vmatpush.msra.mxu0 0.0
      %3998 = vmatpush.msra.mxu0 0.0
      %3999 = vmatpush.msra.mxu0 0.0
      %4000 = vmatpush.msra.mxu0 0.0
      %4001 = vmatpush.msra.mxu0 0.0
      %4002 = vmatpush.msra.mxu0 0.0
      %4003 = vmatpush.msra.mxu0 0.0
      %4004 = vmatpush.msra.mxu0 0.0
      %4005 = vmatpush.msra.mxu0 %v3988
      %4006 = vmatmul.f32.gmra.mxu0 %v3986
      %v4007 = vpop.f32.mrf.mxu0
      %v4008 = vadd.f32 0.0, %v4007
      %4009 = vdwg.mxu0
      %v4010 = vrot.slane %v3955, 2
      %4011 = vrot.lane.b32.xlu0 %v3819, 48
      %v4012 = vpop.permute.xlu0 %4011
      %v4013 = vsel %vm2111, %v4010, 0
      %v4015 = vsel %vm1607, %v4012, 0
      %4017 = vmatpush.msra.mxu0 0.0
      %4018 = vmatpush.msra.mxu0 0.0
      %4019 = vmatpush.msra.mxu0 0.0
      %4020 = vmatpush.msra.mxu0 0.0
      %4021 = vmatpush.msra.mxu0 0.0
      %4022 = vmatpush.msra.mxu0 0.0
      %4023 = vmatpush.msra.mxu0 0.0
      %4024 = vmatpush.msra.mxu0 0.0
      %4025 = vmatpush.msra.mxu0 0.0
      %4026 = vmatpush.msra.mxu0 0.0
      %4027 = vmatpush.msra.mxu0 0.0
      %4028 = vmatpush.msra.mxu0 0.0
      %4029 = vmatpush.msra.mxu0 0.0
      %4030 = vmatpush.msra.mxu0 0.0
      %4031 = vmatpush.msra.mxu0 0.0
      %4032 = vmatpush.msra.mxu0 %v4015
      %4033 = vmatmul.f32.gmra.mxu0 %v4013
      %v4034 = vpop.f32.mrf.mxu0
      %v4035 = vadd.f32 0.0, %v4034
      %4036 = vdwg.mxu0
      %v4037 = vrot.slane %v3955, 3
      %4038 = vrot.lane.b32.xlu0 %v3819, 40
      %v4039 = vpop.permute.xlu0 %4038
      %v4040 = vsel %vm2111, %v4037, 0
      %v4042 = vsel %vm1607, %v4039, 0
      %4044 = vmatpush.msra.mxu0 0.0
      %4045 = vmatpush.msra.mxu0 0.0
      %4046 = vmatpush.msra.mxu0 0.0
      %4047 = vmatpush.msra.mxu0 0.0
      %4048 = vmatpush.msra.mxu0 0.0
      %4049 = vmatpush.msra.mxu0 0.0
      %4050 = vmatpush.msra.mxu0 0.0
      %4051 = vmatpush.msra.mxu0 0.0
      %4052 = vmatpush.msra.mxu0 0.0
      %4053 = vmatpush.msra.mxu0 0.0
      %4054 = vmatpush.msra.mxu0 0.0
      %4055 = vmatpush.msra.mxu0 0.0
      %4056 = vmatpush.msra.mxu0 0.0
      %4057 = vmatpush.msra.mxu0 0.0
      %4058 = vmatpush.msra.mxu0 0.0
      %4059 = vmatpush.msra.mxu0 %v4042
      %4060 = vmatmul.f32.gmra.mxu0 %v4040
      %v4061 = vpop.f32.mrf.mxu0
      %v4062 = vadd.f32 0.0, %v4061
      %4063 = vdwg.mxu0
      %4065 = vrot.lane.b32.xlu0 %v4008, 8
      %v4066 = vpop.permute.xlu0 %4065
      %4069 = vrot.lane.b32.xlu0 %v4035, 16
      %v4070 = vpop.permute.xlu0 %4069
      %4073 = vrot.lane.b32.xlu0 %v4062, 24
      %v4074 = vpop.permute.xlu0 %4073
      %v4076 = vsel %vm695, %v3981, %v4066
      %v4077 = vsel %vm1274, %v4076, %v4070
      %v4078 = vsel %vm1278, %v4077, %v4074
      %v4080 = vsel %vm426, %v4078, 0
      %4082 = vmatpush.msra.mxu0 0.0
      %4083 = vmatpush.msra.mxu0 0.0
      %4084 = vmatpush.msra.mxu0 0.0
      %4085 = vmatpush.msra.mxu0 0.0
      %4086 = vmatpush.msra.mxu0 0.0
      %4087 = vmatpush.msra.mxu0 0.0
      %4088 = vmatpush.msra.mxu0 0.0
      %4089 = vmatpush.msra.mxu0 0.0
      %4090 = vmatpush.msra.mxu0 0.0
      %4091 = vmatpush.msra.mxu0 0.0
      %4092 = vmatpush.msra.mxu0 0.0
      %4093 = vmatpush.msra.mxu0 0.0
      %4094 = vmatpush.msra.mxu0 %v3795
      %4095 = vmatpush.msra.mxu0 %v3794
      %4096 = vmatpush.msra.mxu0 %v3793
      %4097 = vmatpush.msra.mxu0 %v3792
      %4098 = vmatmul.f32.gmra.mxu0 %v4080
      %v4099 = vpop.f32.mrf.mxu0
      %v4100 = vadd.f32 %v3796, %v4099
      %4101 = vdwg.mxu0
      %4102 = vst.msk [vmem:[#allocation3 + $0x4] sm:$0x1] %vm1926, %v4100
      %v4103 = vld [vmem:[%s4] sm:$0xff]
      %v4105 = vsel %vm740, %v4103, 0
      %v4108 = vsel %vm795, %v3181, 0
      %4110 = vmatpush.msra.mxu0 0.0
      %4111 = vmatpush.msra.mxu0 0.0
      %4112 = vmatpush.msra.mxu0 0.0
      %4113 = vmatpush.msra.mxu0 0.0
      %4114 = vmatpush.msra.mxu0 0.0
      %4115 = vmatpush.msra.mxu0 0.0
      %4116 = vmatpush.msra.mxu0 0.0
      %4117 = vmatpush.msra.mxu0 0.0
      %4118 = vmatpush.msra.mxu0 0.0
      %4119 = vmatpush.msra.mxu0 0.0
      %4120 = vmatpush.msra.mxu0 0.0
      %4121 = vmatpush.msra.mxu0 0.0
      %4122 = vmatpush.msra.mxu0 0.0
      %4123 = vmatpush.msra.mxu0 %v4108
      %4124 = vmatpush.msra.mxu0 %v3180
      %4125 = vmatpush.msra.mxu0 %v3179
      %4126 = vmatmul.f32.gmra.mxu0 %v4105
      %v4127 = vpop.f32.mrf.mxu0
      %v4128 = vadd.f32 0.0, %v4127
      %4129 = vdwg.mxu0
      %v4130 = vld [vmem:[%s5] sm:$0xff]
      %v4131 = vld [vmem:[%s5 + $0x8] sm:$0xff]
      %v4132 = vld [vmem:[%s5 + $0x10] sm:$0x3]
      %v4134 = vsel %vm740, %v4128, 0
      %v4137 = vsel %vm795, %v4132, 0
      %4139 = vmatpush.msra.mxu0 0.0
      %4140 = vmatpush.msra.mxu0 0.0
      %4141 = vmatpush.msra.mxu0 0.0
      %4142 = vmatpush.msra.mxu0 0.0
      %4143 = vmatpush.msra.mxu0 0.0
      %4144 = vmatpush.msra.mxu0 0.0
      %4145 = vmatpush.msra.mxu0 0.0
      %4146 = vmatpush.msra.mxu0 0.0
      %4147 = vmatpush.msra.mxu0 0.0
      %4148 = vmatpush.msra.mxu0 0.0
      %4149 = vmatpush.msra.mxu0 0.0
      %4150 = vmatpush.msra.mxu0 0.0
      %4151 = vmatpush.msra.mxu0 0.0
      %4152 = vmatpush.msra.mxu0 %v4137
      %4153 = vmatpush.msra.mxu0 %v4131
      %4154 = vmatpush.msra.mxu0 %v4130
      %4155 = vmatmul.f32.gmra.mxu0 %v4134
      %v4156 = vpop.f32.mrf.mxu0
      %v4157 = vadd.f32 0.0, %v4156
      %4158 = vdwg.mxu0
      %v4160 = vrot.slane %v2311, 1
      %4161 = vrot.lane.b32.xlu0 %v4160, 4
      %v4162 = vpop.permute.xlu0 %4161
      %v4164 = vrot.slane %v2311, 2
      %4165 = vrot.lane.b32.xlu0 %v4164, 8
      %v4166 = vpop.permute.xlu0 %4165
      %v4168 = vrot.slane %v2311, 3
      %4169 = vrot.lane.b32.xlu0 %v4168, 12
      %v4170 = vpop.permute.xlu0 %4169
      %v4172 = vsel %vm1781, %v2311, %v4162
      %v4173 = vsel %vm695, %v4172, %v4166
      %v4174 = vsel %vm1549, %v4173, %v4170
      %v4176 = vrot.slane %v4157, 1
      %4177 = vrot.lane.b32.xlu0 %v4176, 4
      %v4178 = vpop.permute.xlu0 %4177
      %v4180 = vrot.slane %v4157, 2
      %4181 = vrot.lane.b32.xlu0 %v4180, 8
      %v4182 = vpop.permute.xlu0 %4181
      %v4184 = vrot.slane %v4157, 3
      %4185 = vrot.lane.b32.xlu0 %v4184, 12
      %v4186 = vpop.permute.xlu0 %4185
      %v4188 = vsel %vm1781, %v4157, %v4178
      %v4189 = vsel %vm695, %v4188, %v4182
      %v4190 = vsel %vm1549, %v4189, %v4186
      %4192 = vrot.lane.b32.xlu0 %v4190, 16
      %v4193 = vpop.permute.xlu0 %4192
      %v4195 = vsel %vm1274, %v4174, %v4193
      %4196 = vrot.lane.b32.xlu0 %v2311, 124
      %v4197 = vpop.permute.xlu0 %4196
      %4200 = vrot.lane.b32.xlu0 %v4164, 4
      %v4201 = vpop.permute.xlu0 %4200
      %4203 = vrot.lane.b32.xlu0 %v4168, 8
      %v4204 = vpop.permute.xlu0 %4203
      %v4206 = vsel %vm1781, %v4197, %v4160
      %v4207 = vsel %vm695, %v4206, %v4201
      %v4208 = vsel %vm1549, %v4207, %v4204
      %4209 = vrot.lane.b32.xlu0 %v4157, 124
      %v4210 = vpop.permute.xlu0 %4209
      %4213 = vrot.lane.b32.xlu0 %v4180, 4
      %v4214 = vpop.permute.xlu0 %4213
      %4216 = vrot.lane.b32.xlu0 %v4184, 8
      %v4217 = vpop.permute.xlu0 %4216
      %v4219 = vsel %vm1781, %v4210, %v4176
      %v4220 = vsel %vm695, %v4219, %v4214
      %v4221 = vsel %vm1549, %v4220, %v4217
      %4223 = vrot.lane.b32.xlu0 %v4221, 16
      %v4224 = vpop.permute.xlu0 %4223
      %v4226 = vsel %vm1274, %v4208, %v4224
      %v4228 = vrot.slane %v4226, 3
      %v4230 = vsel %vm1604, %v4195, %v4228
      %v4231 = vld [vmem:[%s395 + $0x1e0] sm:$0xff]
      %v4232 = vld [vmem:[%s395 + $0x1e8] sm:$0xff]
      %v4233 = vld [vmem:[%s395 + $0x1f0] sm:$0xff]
      %v4234 = vld [vmem:[%s395 + $0x1f8] sm:$0xff]
      %v4235 = vld [vmem:[%s405 + $0x17] sm:$0x1]
      %v4236 = vperm.slane %v4235, 0
      %v4238 = vsel %vm426, %v4230, 0
      %4240 = vmatpush.msra.mxu0 0.0
      %4241 = vmatpush.msra.mxu0 0.0
      %4242 = vmatpush.msra.mxu0 0.0
      %4243 = vmatpush.msra.mxu0 0.0
      %4244 = vmatpush.msra.mxu0 0.0
      %4245 = vmatpush.msra.mxu0 0.0
      %4246 = vmatpush.msra.mxu0 0.0
      %4247 = vmatpush.msra.mxu0 0.0
      %4248 = vmatpush.msra.mxu0 0.0
      %4249 = vmatpush.msra.mxu0 0.0
      %4250 = vmatpush.msra.mxu0 0.0
      %4251 = vmatpush.msra.mxu0 0.0
      %4252 = vmatpush.msra.mxu0 %v4234
      %4253 = vmatpush.msra.mxu0 %v4233
      %4254 = vmatpush.msra.mxu0 %v4232
      %4255 = vmatpush.msra.mxu0 %v4231
      %4256 = vmatmul.f32.gmra.mxu0 %v4238
      %v4257 = vpop.f32.mrf.mxu0
      %v4258 = vadd.f32 %v4236, %v4257
      %4259 = vdwg.mxu0
      %vm4260 = vcmp.ge.f32.partialorder %v4258, 0.0
      %v4261 = vmul.f32 %v4258, 0.01
      %v4262 = vsel %vm4260, %v4258, %v4261
      %v4263 = vld [vmem:[%s395 + $0x200] sm:$0xff]
      %v4264 = vld [vmem:[%s395 + $0x208] sm:$0xff]
      %v4265 = vld [vmem:[%s395 + $0x210] sm:$0xff]
      %v4266 = vld [vmem:[%s395 + $0x218] sm:$0xff]
      %v4267 = vld [vmem:[%s405 + $0x18] sm:$0x1]
      %v4268 = vperm.slane %v4267, 0
      %v4270 = vsel %vm426, %v4262, 0
      %4272 = vmatpush.msra.mxu0 0.0
      %4273 = vmatpush.msra.mxu0 0.0
      %4274 = vmatpush.msra.mxu0 0.0
      %4275 = vmatpush.msra.mxu0 0.0
      %4276 = vmatpush.msra.mxu0 0.0
      %4277 = vmatpush.msra.mxu0 0.0
      %4278 = vmatpush.msra.mxu0 0.0
      %4279 = vmatpush.msra.mxu0 0.0
      %4280 = vmatpush.msra.mxu0 0.0
      %4281 = vmatpush.msra.mxu0 0.0
      %4282 = vmatpush.msra.mxu0 0.0
      %4283 = vmatpush.msra.mxu0 0.0
      %4284 = vmatpush.msra.mxu0 %v4266
      %4285 = vmatpush.msra.mxu0 %v4265
      %4286 = vmatpush.msra.mxu0 %v4264
      %4287 = vmatpush.msra.mxu0 %v4263
      %4288 = vmatmul.f32.gmra.mxu0 %v4270
      %v4289 = vpop.f32.mrf.mxu0
      %v4290 = vadd.f32 %v4268, %v4289
      %4291 = vdwg.mxu0
      %v4293 = vrot.slane %v4290, 1
      %4294 = vrot.lane.b32.xlu0 %v4293, 32
      %v4295 = vpop.permute.xlu0 %4294
      %v4297 = vsel %vm426, %v4290, %v4295
      %vm4298 = vcmask 516096
      %4299 = vst.msk [vmem:[%s412] sm:$0x1] %vm4298, %v4297
      %p4300 = scmp.lt.s32.totalorder %s21, 4
      %s4301 = scalar_select %p4300, %s21, 4
      %s4302 = scalar_lea.vmem %s10, %s4301
      // Predicated region
      $region61: #{model_forward.1} parent=59 // pred_check
        %p4303 = pneg %p269
      $region62: #{model_forward.1} parent=59 // pred_check_branch
        %4305 = sbr.rel (%p4303) target = $region64
      $region63: #{model_forward.1} parent=59 // pred_region
        _
      $region64: #{model_forward.1} parent=59 // pred_fallthru
        _
    $region60: #{model_forward.1} parent=5 // pred_fallthru
      _
    %p4306 = scmp.le.s32.totalorder 2, %s16
    // Predicated region
    $region65: #{model_forward.1} parent=5 // pred_check
      %p4307 = pneg %p4306
    $region66: #{model_forward.1} parent=5 // pred_check_branch
      %4309 = sbr.rel (%p4307) target = $region68
    $region67: #{model_forward.1} parent=5 // pred_region
      %s4310 = ssub.s32 %s16, 2
      // Predicated region
      $region69: #{model_forward.1} parent=67 // pred_check
        %p4311 = pneg %p275
      $region70: #{model_forward.1} parent=67 // pred_check_branch
        %4313 = sbr.rel (%p4311) target = $region72
      $region71: #{model_forward.1} parent=67 // pred_region
        %p4314 = scmp.lt.s32.totalorder %s22, 4
        %s4315 = scalar_select %p4314, %s22, 4
        %s4316 = scalar_lea.vmem %s10, %s4315
      $region72: #{model_forward.1} parent=67 // pred_fallthru
        _
    $region68: #{model_forward.1} parent=5 // pred_fallthru
      _
  $region6: #{model_forward.1} parent=0 // loop_footer
    %s20 = sadd.s32 1, %s16
  $region7: #{model_forward.1} parent=0 // loop_footer_branch
    %15 = sbr.rel target = $region3
  $region8: #{model_forward.1} parent=0 // loop_exit
    _

</llo_original>
